<compile_context>
chip_gen: v5e
topology: v5e:2x2
jax: 0.10.0
libtpu: 0.0.40
codegen_flags: <defaults>
</compile_context>

<pallas_src>
import functools

import jax
import jax.numpy as jnp
from jax.experimental import pallas as pl
from jax.experimental.pallas import tpu as pltpu


def _round_up(x, m):
    return (x + m - 1) // m * m


def _cdiv(a, b):
    return (a + b - 1) // b


# ---------------------------------------------------------------------------
# Kernel
# ---------------------------------------------------------------------------
def _decoder_kernel(z_ref,
                    w1_ref, b1_ref, w2_ref, b2_ref, w3_ref, b3_ref, w4_ref, b4_ref,
                    wah_ref, waz_ref, ba_ref,
                    wb_ref, bb_ref, wc_ref, bc_ref, wd_ref, bd_ref,
                    wot_ref, bot_ref,
                    out_t_ref, feat_ref=None,
                    *, use_tanh, feat_layer, compute_dtype):
    z = z_ref[...]                                    # (tile, in_ch), f32

    def matmul(x, w_ref):
        # MXU operands in compute_dtype (bf16 by default); f32 accumulation.
        return jnp.dot(x.astype(compute_dtype), w_ref[...],
                       preferred_element_type=jnp.float32)

    def lin_relu(x, w_ref, b_ref):
        # bias add / ReLU in f32 on the VPU (v5e has no bf16 VPU datapath).
        return jnp.maximum(matmul(x, w_ref) + b_ref[...], 0.0)

    # net1: 4x (weight-norm Linear + ReLU); last one narrows to h_ch (padded).
    h = lin_relu(z, w1_ref, b1_ref)
    h = lin_relu(h, w2_ref, b2_ref)
    h = lin_relu(h, w3_ref, b3_ref)
    h = lin_relu(h, w4_ref, b4_ref)                   # (tile, h_pad)

    # DeepSDF skip: concat([h, z], -1) @ wa  ==  h @ wa_h + z @ wa_z.
    o1 = jnp.maximum(matmul(h, wah_ref) + matmul(z, waz_ref) + ba_ref[...], 0.0)
    o2 = lin_relu(o1, wb_ref, bb_ref)
    o3 = lin_relu(o2, wc_ref, bc_ref)
    o4 = lin_relu(o3, wd_ref, bd_ref)

    # SDF head produced directly in transposed (out_ch, tile) layout so the
    # per-step store is lane-dense even when out_ch == 1.
    out_t = jax.lax.dot_general(
        wot_ref[...], o4.astype(compute_dtype),
        dimension_numbers=(((1,), (1,)), ((), ())),
        preferred_element_type=jnp.float32) + bot_ref[...]
    if use_tanh:
        out_t = jnp.tanh(out_t)
    out_t_ref[...] = out_t.astype(out_t_ref.dtype)

    if feat_ref is not None:
        feat = (o1, o2, o3, o4)[feat_layer - 1]
        feat_ref[...] = feat.astype(feat_ref.dtype)


# ---------------------------------------------------------------------------
# One-time parameter preparation (casts / padding / splits hoisted out of the
# per-call wrapper).  Weights are (in, out); biases are (1, out).
# ---------------------------------------------------------------------------
def prepare_params(params, *, compute_dtype=jnp.bfloat16, feat_dtype=None):
    in_ch = params["w1"].shape[0]
    feat_ch = params["wa"].shape[1]
    out_ch = params["wo"].shape[1]
    h_ch = feat_ch - in_ch
    f_pad = _round_up(feat_ch, 128)
    h_pad = _round_up(h_ch, 128)

    cd = jnp.dtype(compute_dtype)
    fd = jnp.dtype(feat_dtype) if feat_dtype is not None else cd

    def pad_w(w, rows, cols):
        w = jnp.pad(w, ((0, rows - w.shape[0]), (0, cols - w.shape[1])))
        return w.astype(cd)

    def pad_b(b, cols):
        return jnp.pad(b, ((0, 0), (0, cols - b.shape[1]))).astype(jnp.float32)

    wa_h = params["wa"][:h_ch, :]            # rows matched to concat order [h, z]
    wa_z = params["wa"][h_ch:, :]
    wo_t = params["wo"].T                    # (out_ch, feat_ch)
    bo_t = params["bo"].reshape(out_ch, 1).astype(jnp.float32)

    ordered = (
        pad_w(params["w1"], in_ch, f_pad), pad_b(params["b1"], f_pad),
        pad_w(params["w2"], f_pad, f_pad), pad_b(params["b2"], f_pad),
        pad_w(params["w3"], f_pad, f_pad), pad_b(params["b3"], f_pad),
        pad_w(params["w4"], f_pad, h_pad), pad_b(params["b4"], h_pad),
        pad_w(wa_h, h_pad, f_pad), pad_w(wa_z, in_ch, f_pad), pad_b(params["ba"], f_pad),
        pad_w(params["wb"], f_pad, f_pad), pad_b(params["bb"], f_pad),
        pad_w(params["wc"], f_pad, f_pad), pad_b(params["bc"], f_pad),
        pad_w(params["wd"], f_pad, f_pad), pad_b(params["bd"], f_pad),
        pad_w(wo_t, out_ch, f_pad), bo_t,
    )
    return dict(ordered=ordered, in_ch=in_ch, feat_ch=feat_ch, out_ch=out_ch,
                f_pad=f_pad, h_pad=h_pad, compute_dtype=cd, feat_dtype=fd)


# ---------------------------------------------------------------------------
# Wrapper
# ---------------------------------------------------------------------------
def decoder_forward(z, prep, *, use_tanh=True, feat_layer=4, tile=None,
                    return_feat=True):
    """z: (N, in_ch) float32.  prep: output of prepare_params()."""
    N, in_ch = z.shape
    assert in_ch == prep["in_ch"], "z last dim must equal in_ch"
    feat_ch, out_ch = prep["feat_ch"], prep["out_ch"]
    f_pad, h_pad = prep["f_pad"], prep["h_pad"]
    cd, fd = prep["compute_dtype"], prep["feat_dtype"]
    ordered = prep["ordered"]

    # Point-tile: large tiles amortize the ~0.35us/step pipeline overhead
    # (tile=1024 allowed for large N on 128MiB-VMEM v5e/v6e), but always keep
    # at least 2 grid steps so both v7x TensorCores get work on the
    # "parallel" axis.  Ragged N handled via padding.
    if tile is None:
        tile = 1024 if N >= 16 * 1024 else 512
    tile = max(128, (int(tile) // 128) * 128)
    tile = min(tile, max(128, _round_up(_cdiv(N, 2), 128)))
    n_pad = _round_up(N, tile)
    if n_pad != N:
        z = jnp.pad(z, ((0, n_pad - N), (0, 0)))
    grid = n_pad // tile

    out_specs = [pl.BlockSpec((out_ch, tile), lambda i: (0, i))]   # lane-dense SDF
    out_shape = [jax.ShapeDtypeStruct((out_ch, n_pad), jnp.float32)]
    if return_feat:
        out_specs.append(pl.BlockSpec((tile, f_pad), lambda i: (i, 0)))
        out_shape.append(jax.ShapeDtypeStruct((n_pad, f_pad), fd))

    # Advisory cost estimate for XLA's scheduler (padded dims).
    layer_dims = [(in_ch, f_pad), (f_pad, f_pad), (f_pad, f_pad), (f_pad, h_pad),
                  (h_pad, f_pad), (in_ch, f_pad),
                  (f_pad, f_pad), (f_pad, f_pad), (f_pad, f_pad), (f_pad, out_ch)]
    flops = 2 * n_pad * sum(a * b for a, b in layer_dims)
    weight_bytes = sum(int(a.size) * a.dtype.itemsize for a in ordered)
    out_bytes = 4 * n_pad * out_ch
    if return_feat:
        out_bytes += jnp.dtype(fd).itemsize * n_pad * f_pad
    cost = pl.CostEstimate(
        flops=int(flops),
        transcendentals=int(n_pad * out_ch) if use_tanh else 0,
        bytes_accessed=int(4 * n_pad * in_ch + out_bytes + weight_bytes))

    kernel = functools.partial(_decoder_kernel, use_tanh=use_tanh,
                               feat_layer=feat_layer, compute_dtype=cd)

    def _run(single_buffer_weights):
        # Weights have constant index_maps -> DMA'd once, VMEM-resident for the
        # whole grid.  Single-buffering them halves their VMEM footprint (they
        # are never re-fetched); fall back to default double-buffering if this
        # jax version rejects pipeline_mode on top-level BlockSpecs.
        if single_buffer_weights:
            def w_spec(shape):
                return pl.BlockSpec(shape, lambda i: (0, 0),
                                    pipeline_mode=pl.Buffered(1))
        else:
            def w_spec(shape):
                return pl.BlockSpec(shape, lambda i: (0, 0))

        in_specs = [pl.BlockSpec((tile, in_ch), lambda i: (i, 0))]
        in_specs += [w_spec(a.shape) for a in ordered]

        # Right-sized VMEM request: weights x buffer-count + double-buffered
        # z / output tiles + a bound on live f32 intermediates, +25% headroom,
        # clamped to [32, 48] MiB (fits v7x's 64 MiB/TC; trivially fits v5e/v6e).
        wbuf = 1 if single_buffer_weights else 2
        io_bytes = (2 * tile * in_ch * 4 + 2 * out_ch * tile * 4
                    + (2 * tile * f_pad * jnp.dtype(fd).itemsize if return_feat else 0))
        act_bytes = 6 * tile * f_pad * 4
        vmem_bytes = int(1.25 * (wbuf * weight_bytes + io_bytes + act_bytes))
        vmem_bytes = min(max(vmem_bytes, 32 * 1024 * 1024), 48 * 1024 * 1024)

        return pl.pallas_call(
            kernel,
            out_shape=out_shape,
            grid_spec=pltpu.PrefetchScalarGridSpec(
                num_scalar_prefetch=0,
                grid=(grid,),
                in_specs=in_specs,
                out_specs=out_specs,
            ),
            compiler_params=pltpu.CompilerParams(
                dimension_semantics=("parallel",),
                vmem_limit_bytes=vmem_bytes),
            cost_estimate=cost,
        )(z, *ordered)

    try:
        results = _run(True)
    except Exception:  # pragma: no cover - pipeline_mode unsupported -> default buffering
        results = _run(False)

    out = results[0][:, :N].T                 # (N, out_ch); drops ragged padding
    if not return_feat:
        return out, None
    feat = results[1][:N, :feat_ch]
    return out, feat


# ---------------------------------------------------------------------------
# Deterministic parameter construction (glue, plain JAX). Mirrors
# nn.utils.weight_norm(nn.Linear(...)) at init: g = ||v||_row so W_eff == v.
# ---------------------------------------------------------------------------
def _wn_linear_params(key, in_dim, out_dim):
    kv, kb = jax.random.split(key)
    bound = 1.0 / (in_dim ** 0.5)
    v = jax.random.uniform(kv, (out_dim, in_dim), jnp.float32, -bound, bound)
    b = jax.random.uniform(kb, (out_dim,), jnp.float32, -bound, bound)
    g = jnp.sqrt(jnp.sum(v * v, axis=1, keepdims=True))          # (out, 1)
    w_eff = g * v / jnp.sqrt(jnp.sum(v * v, axis=1, keepdims=True))
    return w_eff.T, b.reshape(1, out_dim)        # (in, out), (1, out)


def _plain_linear_params(key, in_dim, out_dim):
    kv, kb = jax.random.split(key)
    bound = 1.0 / (in_dim ** 0.5)
    w = jax.random.uniform(kv, (out_dim, in_dim), jnp.float32, -bound, bound)
    b = jax.random.uniform(kb, (out_dim,), jnp.float32, -bound, bound)
    return w.T, b.reshape(1, out_dim)


def make_params(key, in_ch, feat_ch, out_ch):
    keys = jax.random.split(key, 9)
    p = {}
    p["w1"], p["b1"] = _wn_linear_params(keys[0], in_ch, feat_ch)
    p["w2"], p["b2"] = _wn_linear_params(keys[1], feat_ch, feat_ch)
    p["w3"], p["b3"] = _wn_linear_params(keys[2], feat_ch, feat_ch)
    p["w4"], p["b4"] = _wn_linear_params(keys[3], feat_ch, feat_ch - in_ch)
    p["wa"], p["ba"] = _wn_linear_params(keys[4], feat_ch, feat_ch)
    p["wb"], p["bb"] = _wn_linear_params(keys[5], feat_ch, feat_ch)
    p["wc"], p["bc"] = _wn_linear_params(keys[6], feat_ch, feat_ch)
    p["wd"], p["bd"] = _wn_linear_params(keys[7], feat_ch, feat_ch)
    p["wo"], p["bo"] = _plain_linear_params(keys[8], feat_ch, out_ch)
    return p


def decoder_reference(z, params, *, use_tanh=True, feat_layer=4):
    def lr(x, w, b):
        return jnp.maximum(x @ w + b, 0.0)

    h = lr(z, params["w1"], params["b1"])
    h = lr(h, params["w2"], params["b2"])
    h = lr(h, params["w3"], params["b3"])
    h = lr(h, params["w4"], params["b4"])
    in2 = jnp.concatenate([h, z], axis=-1)
    o1 = lr(in2, params["wa"], params["ba"])
    o2 = lr(o1, params["wb"], params["bb"])
    o3 = lr(o2, params["wc"], params["bc"])
    o4 = lr(o3, params["wd"], params["bd"])
    out = o4 @ params["wo"] + params["bo"]
    if use_tanh:
        out = jnp.tanh(out)
    feat = (o1, o2, o3, o4)[feat_layer - 1]
    return out, feat


if __name__ == "__main__":
    # Small DeepSDF-ish config: in_ch = latent(5) + xyz(3) = 8.
    # N deliberately not a multiple of 128 (ragged path); feat_ch=32 exercises
    # the 128-lane padding path (feat_ch -> 128, h_ch=24 -> 128).
    N, in_ch, feat_ch, out_ch = 300, 8, 32, 1
    use_tanh, feat_layer = True, 4

    key = jax.random.PRNGKey(0)
    kz, kp = jax.random.split(key)
    z = jax.random.normal(kz, (N, in_ch), jnp.float32)
    params = make_params(kp, in_ch, feat_ch, out_ch)

    ref_out, ref_feat = decoder_reference(z, params, use_tanh=use_tanh,
                                          feat_layer=feat_layer)

    # f32 MXU-operand path (tight tolerance).
    prep_f32 = prepare_params(params, compute_dtype=jnp.float32)
    out, feat = decoder_forward(z, prep_f32, use_tanh=use_tanh,
                                feat_layer=feat_layer)
    jax.block_until_ready((out, feat))
    assert out.shape == (N, out_ch) and feat.shape == (N, feat_ch)
    assert jnp.allclose(out, ref_out, atol=1e-4, rtol=1e-4)
    assert jnp.allclose(feat, ref_feat, atol=1e-4, rtol=1e-4)

    # Default path: bf16 MXU operands (f32 accumulation), bf16 feat writeback.
    prep_bf16 = prepare_params(params)
    out_bf, feat_bf = decoder_forward(z, prep_bf16, use_tanh=use_tanh,
                                      feat_layer=feat_layer)
    jax.block_until_ready((out_bf, feat_bf))
    assert out_bf.shape == (N, out_ch) and feat_bf.shape == (N, feat_ch)
    assert jnp.allclose(out_bf, ref_out, atol=1e-1, rtol=1e-1)
    assert jnp.allclose(feat_bf.astype(jnp.float32), ref_feat, atol=1e-1, rtol=1e-1)

    # SDF-only path (no feat writeback -> no feat HBM traffic).
    out_only, no_feat = decoder_forward(z, prep_bf16, use_tanh=use_tanh,
                                        feat_layer=feat_layer, return_feat=False)
    jax.block_until_ready(out_only)
    assert no_feat is None and out_only.shape == (N, out_ch)
    assert jnp.allclose(out_only, ref_out, atol=1e-1, rtol=1e-1)

    print("KERNEL_OK")
</pallas_src>

<mosaic_0001>
module attributes {stable_mosaic.version = 11 : i64} {
  func.func @_decoder_kernel(%arg0: i32, %arg1: memref<256x8xf32, #tpu.memory_space<vmem>>, %arg2: memref<8x128xf32, #tpu.memory_space<vmem>>, %arg3: memref<1x128xf32, #tpu.memory_space<vmem>>, %arg4: memref<128x128xf32, #tpu.memory_space<vmem>>, %arg5: memref<1x128xf32, #tpu.memory_space<vmem>>, %arg6: memref<128x128xf32, #tpu.memory_space<vmem>>, %arg7: memref<1x128xf32, #tpu.memory_space<vmem>>, %arg8: memref<128x128xf32, #tpu.memory_space<vmem>>, %arg9: memref<1x128xf32, #tpu.memory_space<vmem>>, %arg10: memref<128x128xf32, #tpu.memory_space<vmem>>, %arg11: memref<8x128xf32, #tpu.memory_space<vmem>>, %arg12: memref<1x128xf32, #tpu.memory_space<vmem>>, %arg13: memref<128x128xf32, #tpu.memory_space<vmem>>, %arg14: memref<1x128xf32, #tpu.memory_space<vmem>>, %arg15: memref<128x128xf32, #tpu.memory_space<vmem>>, %arg16: memref<1x128xf32, #tpu.memory_space<vmem>>, %arg17: memref<128x128xf32, #tpu.memory_space<vmem>>, %arg18: memref<1x128xf32, #tpu.memory_space<vmem>>, %arg19: memref<1x128xf32, #tpu.memory_space<vmem>>, %arg20: memref<1x1xf32, #tpu.memory_space<vmem>>, %arg21: memref<1x256xf32, #tpu.memory_space<vmem>>, %arg22: memref<256x128xf32, #tpu.memory_space<vmem>>) attributes {dimension_semantics = [#tpu.dimension_semantics<parallel>], iteration_bounds = array<i64: 2>, scalar_prefetch = 0 : i64, scratch_operands = 0 : i64, tpu.core_type = #tpu.core_type<tc>, window_params = [{transform_indices = @transform_0, window_bounds = array<i64: 256, 8>}, {pipeline_mode = #tpu.pipeline_mode<synchronous>, transform_indices = @transform_1, window_bounds = array<i64: 8, 128>}, {pipeline_mode = #tpu.pipeline_mode<synchronous>, transform_indices = @transform_2, window_bounds = array<i64: 1, 128>}, {pipeline_mode = #tpu.pipeline_mode<synchronous>, transform_indices = @transform_3, window_bounds = array<i64: 128, 128>}, {pipeline_mode = #tpu.pipeline_mode<synchronous>, transform_indices = @transform_4, window_bounds = array<i64: 1, 128>}, {pipeline_mode = #tpu.pipeline_mode<synchronous>, transform_indices = @transform_5, window_bounds = array<i64: 128, 128>}, {pipeline_mode = #tpu.pipeline_mode<synchronous>, transform_indices = @transform_6, window_bounds = array<i64: 1, 128>}, {pipeline_mode = #tpu.pipeline_mode<synchronous>, transform_indices = @transform_7, window_bounds = array<i64: 128, 128>}, {pipeline_mode = #tpu.pipeline_mode<synchronous>, transform_indices = @transform_8, window_bounds = array<i64: 1, 128>}, {pipeline_mode = #tpu.pipeline_mode<synchronous>, transform_indices = @transform_9, window_bounds = array<i64: 128, 128>}, {pipeline_mode = #tpu.pipeline_mode<synchronous>, transform_indices = @transform_10, window_bounds = array<i64: 8, 128>}, {pipeline_mode = #tpu.pipeline_mode<synchronous>, transform_indices = @transform_11, window_bounds = array<i64: 1, 128>}, {pipeline_mode = #tpu.pipeline_mode<synchronous>, transform_indices = @transform_12, window_bounds = array<i64: 128, 128>}, {pipeline_mode = #tpu.pipeline_mode<synchronous>, transform_indices = @transform_13, window_bounds = array<i64: 1, 128>}, {pipeline_mode = #tpu.pipeline_mode<synchronous>, transform_indices = @transform_14, window_bounds = array<i64: 128, 128>}, {pipeline_mode = #tpu.pipeline_mode<synchronous>, transform_indices = @transform_15, window_bounds = array<i64: 1, 128>}, {pipeline_mode = #tpu.pipeline_mode<synchronous>, transform_indices = @transform_16, window_bounds = array<i64: 128, 128>}, {pipeline_mode = #tpu.pipeline_mode<synchronous>, transform_indices = @transform_17, window_bounds = array<i64: 1, 128>}, {pipeline_mode = #tpu.pipeline_mode<synchronous>, transform_indices = @transform_18, window_bounds = array<i64: 1, 128>}, {pipeline_mode = #tpu.pipeline_mode<synchronous>, transform_indices = @transform_19, window_bounds = array<i64: 1, 1>}, {transform_indices = @transform_20, window_bounds = array<i64: 1, 256>}, {transform_indices = @transform_21, window_bounds = array<i64: 256, 128>}]} {
    %c0 = arith.constant 0 : index
    %c0_0 = arith.constant 0 : index
    %0 = vector.load %arg1[%c0, %c0_0] : memref<256x8xf32, #tpu.memory_space<vmem>>, vector<256x8xf32>
    %c0_1 = arith.constant 0 : index
    %c0_2 = arith.constant 0 : index
    %1 = vector.load %arg2[%c0_1, %c0_2] : memref<8x128xf32, #tpu.memory_space<vmem>>, vector<8x128xf32>
    %cst = arith.constant dense<0.000000e+00> : vector<256x128xf32>
    %2 = tpu.matmul %0, %1, %cst {dimension_numbers = #tpu.dot_dimension_numbers<[1], [0], [0], [1], [0, 0, 1, 1], [], []>} : vector<256x8xf32>, vector<8x128xf32>, vector<256x128xf32> -> vector<256x128xf32>
    %c0_3 = arith.constant 0 : index
    %c0_4 = arith.constant 0 : index
    %3 = vector.load %arg3[%c0_3, %c0_4] : memref<1x128xf32, #tpu.memory_space<vmem>>, vector<1x128xf32>
    %4 = vector.broadcast %3 : vector<1x128xf32> to vector<256x128xf32>
    %5 = arith.addf %2, %4 : vector<256x128xf32>
    %cst_5 = arith.constant 0.000000e+00 : f32
    %6 = vector.broadcast %cst_5 : f32 to vector<256x128xf32>
    %7 = arith.maximumf %5, %6 : vector<256x128xf32>
    %c0_6 = arith.constant 0 : index
    %c0_7 = arith.constant 0 : index
    %8 = vector.load %arg4[%c0_6, %c0_7] : memref<128x128xf32, #tpu.memory_space<vmem>>, vector<128x128xf32>
    %cst_8 = arith.constant dense<0.000000e+00> : vector<256x128xf32>
    %9 = tpu.matmul %7, %8, %cst_8 {dimension_numbers = #tpu.dot_dimension_numbers<[1], [0], [0], [1], [0, 0, 1, 1], [], []>} : vector<256x128xf32>, vector<128x128xf32>, vector<256x128xf32> -> vector<256x128xf32>
    %c0_9 = arith.constant 0 : index
    %c0_10 = arith.constant 0 : index
    %10 = vector.load %arg5[%c0_9, %c0_10] : memref<1x128xf32, #tpu.memory_space<vmem>>, vector<1x128xf32>
    %11 = vector.broadcast %10 : vector<1x128xf32> to vector<256x128xf32>
    %12 = arith.addf %9, %11 : vector<256x128xf32>
    %cst_11 = arith.constant 0.000000e+00 : f32
    %13 = vector.broadcast %cst_11 : f32 to vector<256x128xf32>
    %14 = arith.maximumf %12, %13 : vector<256x128xf32>
    %c0_12 = arith.constant 0 : index
    %c0_13 = arith.constant 0 : index
    %15 = vector.load %arg6[%c0_12, %c0_13] : memref<128x128xf32, #tpu.memory_space<vmem>>, vector<128x128xf32>
    %cst_14 = arith.constant dense<0.000000e+00> : vector<256x128xf32>
    %16 = tpu.matmul %14, %15, %cst_14 {dimension_numbers = #tpu.dot_dimension_numbers<[1], [0], [0], [1], [0, 0, 1, 1], [], []>} : vector<256x128xf32>, vector<128x128xf32>, vector<256x128xf32> -> vector<256x128xf32>
    %c0_15 = arith.constant 0 : index
    %c0_16 = arith.constant 0 : index
    %17 = vector.load %arg7[%c0_15, %c0_16] : memref<1x128xf32, #tpu.memory_space<vmem>>, vector<1x128xf32>
    %18 = vector.broadcast %17 : vector<1x128xf32> to vector<256x128xf32>
    %19 = arith.addf %16, %18 : vector<256x128xf32>
    %cst_17 = arith.constant 0.000000e+00 : f32
    %20 = vector.broadcast %cst_17 : f32 to vector<256x128xf32>
    %21 = arith.maximumf %19, %20 : vector<256x128xf32>
    %c0_18 = arith.constant 0 : index
    %c0_19 = arith.constant 0 : index
    %22 = vector.load %arg8[%c0_18, %c0_19] : memref<128x128xf32, #tpu.memory_space<vmem>>, vector<128x128xf32>
    %cst_20 = arith.constant dense<0.000000e+00> : vector<256x128xf32>
    %23 = tpu.matmul %21, %22, %cst_20 {dimension_numbers = #tpu.dot_dimension_numbers<[1], [0], [0], [1], [0, 0, 1, 1], [], []>} : vector<256x128xf32>, vector<128x128xf32>, vector<256x128xf32> -> vector<256x128xf32>
    %c0_21 = arith.constant 0 : index
    %c0_22 = arith.constant 0 : index
    %24 = vector.load %arg9[%c0_21, %c0_22] : memref<1x128xf32, #tpu.memory_space<vmem>>, vector<1x128xf32>
    %25 = vector.broadcast %24 : vector<1x128xf32> to vector<256x128xf32>
    %26 = arith.addf %23, %25 : vector<256x128xf32>
    %cst_23 = arith.constant 0.000000e+00 : f32
    %27 = vector.broadcast %cst_23 : f32 to vector<256x128xf32>
    %28 = arith.maximumf %26, %27 : vector<256x128xf32>
    %c0_24 = arith.constant 0 : index
    %c0_25 = arith.constant 0 : index
    %29 = vector.load %arg10[%c0_24, %c0_25] : memref<128x128xf32, #tpu.memory_space<vmem>>, vector<128x128xf32>
    %cst_26 = arith.constant dense<0.000000e+00> : vector<256x128xf32>
    %30 = tpu.matmul %28, %29, %cst_26 {dimension_numbers = #tpu.dot_dimension_numbers<[1], [0], [0], [1], [0, 0, 1, 1], [], []>} : vector<256x128xf32>, vector<128x128xf32>, vector<256x128xf32> -> vector<256x128xf32>
    %c0_27 = arith.constant 0 : index
    %c0_28 = arith.constant 0 : index
    %31 = vector.load %arg11[%c0_27, %c0_28] : memref<8x128xf32, #tpu.memory_space<vmem>>, vector<8x128xf32>
    %cst_29 = arith.constant dense<0.000000e+00> : vector<256x128xf32>
    %32 = tpu.matmul %0, %31, %cst_29 {dimension_numbers = #tpu.dot_dimension_numbers<[1], [0], [0], [1], [0, 0, 1, 1], [], []>} : vector<256x8xf32>, vector<8x128xf32>, vector<256x128xf32> -> vector<256x128xf32>
    %33 = arith.addf %30, %32 : vector<256x128xf32>
    %c0_30 = arith.constant 0 : index
    %c0_31 = arith.constant 0 : index
    %34 = vector.load %arg12[%c0_30, %c0_31] : memref<1x128xf32, #tpu.memory_space<vmem>>, vector<1x128xf32>
    %35 = vector.broadcast %34 : vector<1x128xf32> to vector<256x128xf32>
    %36 = arith.addf %33, %35 : vector<256x128xf32>
    %cst_32 = arith.constant 0.000000e+00 : f32
    %37 = vector.broadcast %cst_32 : f32 to vector<256x128xf32>
    %38 = arith.maximumf %36, %37 : vector<256x128xf32>
    %c0_33 = arith.constant 0 : index
    %c0_34 = arith.constant 0 : index
    %39 = vector.load %arg13[%c0_33, %c0_34] : memref<128x128xf32, #tpu.memory_space<vmem>>, vector<128x128xf32>
    %cst_35 = arith.constant dense<0.000000e+00> : vector<256x128xf32>
    %40 = tpu.matmul %38, %39, %cst_35 {dimension_numbers = #tpu.dot_dimension_numbers<[1], [0], [0], [1], [0, 0, 1, 1], [], []>} : vector<256x128xf32>, vector<128x128xf32>, vector<256x128xf32> -> vector<256x128xf32>
    %c0_36 = arith.constant 0 : index
    %c0_37 = arith.constant 0 : index
    %41 = vector.load %arg14[%c0_36, %c0_37] : memref<1x128xf32, #tpu.memory_space<vmem>>, vector<1x128xf32>
    %42 = vector.broadcast %41 : vector<1x128xf32> to vector<256x128xf32>
    %43 = arith.addf %40, %42 : vector<256x128xf32>
    %cst_38 = arith.constant 0.000000e+00 : f32
    %44 = vector.broadcast %cst_38 : f32 to vector<256x128xf32>
    %45 = arith.maximumf %43, %44 : vector<256x128xf32>
    %c0_39 = arith.constant 0 : index
    %c0_40 = arith.constant 0 : index
    %46 = vector.load %arg15[%c0_39, %c0_40] : memref<128x128xf32, #tpu.memory_space<vmem>>, vector<128x128xf32>
    %cst_41 = arith.constant dense<0.000000e+00> : vector<256x128xf32>
    %47 = tpu.matmul %45, %46, %cst_41 {dimension_numbers = #tpu.dot_dimension_numbers<[1], [0], [0], [1], [0, 0, 1, 1], [], []>} : vector<256x128xf32>, vector<128x128xf32>, vector<256x128xf32> -> vector<256x128xf32>
    %c0_42 = arith.constant 0 : index
    %c0_43 = arith.constant 0 : index
    %48 = vector.load %arg16[%c0_42, %c0_43] : memref<1x128xf32, #tpu.memory_space<vmem>>, vector<1x128xf32>
    %49 = vector.broadcast %48 : vector<1x128xf32> to vector<256x128xf32>
    %50 = arith.addf %47, %49 : vector<256x128xf32>
    %cst_44 = arith.constant 0.000000e+00 : f32
    %51 = vector.broadcast %cst_44 : f32 to vector<256x128xf32>
    %52 = arith.maximumf %50, %51 : vector<256x128xf32>
    %c0_45 = arith.constant 0 : index
    %c0_46 = arith.constant 0 : index
    %53 = vector.load %arg17[%c0_45, %c0_46] : memref<128x128xf32, #tpu.memory_space<vmem>>, vector<128x128xf32>
    %cst_47 = arith.constant dense<0.000000e+00> : vector<256x128xf32>
    %54 = tpu.matmul %52, %53, %cst_47 {dimension_numbers = #tpu.dot_dimension_numbers<[1], [0], [0], [1], [0, 0, 1, 1], [], []>} : vector<256x128xf32>, vector<128x128xf32>, vector<256x128xf32> -> vector<256x128xf32>
    %c0_48 = arith.constant 0 : index
    %c0_49 = arith.constant 0 : index
    %55 = vector.load %arg18[%c0_48, %c0_49] : memref<1x128xf32, #tpu.memory_space<vmem>>, vector<1x128xf32>
    %56 = vector.broadcast %55 : vector<1x128xf32> to vector<256x128xf32>
    %57 = arith.addf %54, %56 : vector<256x128xf32>
    %cst_50 = arith.constant 0.000000e+00 : f32
    %58 = vector.broadcast %cst_50 : f32 to vector<256x128xf32>
    %59 = arith.maximumf %57, %58 : vector<256x128xf32>
    %c0_51 = arith.constant 0 : index
    %c0_52 = arith.constant 0 : index
    %60 = vector.load %arg19[%c0_51, %c0_52] : memref<1x128xf32, #tpu.memory_space<vmem>>, vector<1x128xf32>
    %cst_53 = arith.constant dense<0.000000e+00> : vector<1x256xf32>
    %61 = tpu.matmul %60, %59, %cst_53 {dimension_numbers = #tpu.dot_dimension_numbers<[1], [1], [0], [0], [0, 0, 1, 0], [], []>} : vector<1x128xf32>, vector<256x128xf32>, vector<1x256xf32> -> vector<1x256xf32>
    %c0_54 = arith.constant 0 : index
    %c0_55 = arith.constant 0 : index
    %62 = vector.load %arg20[%c0_54, %c0_55] : memref<1x1xf32, #tpu.memory_space<vmem>>, vector<1x1xf32>
    %63 = vector.broadcast %62 : vector<1x1xf32> to vector<1x256xf32>
    %64 = arith.addf %61, %63 : vector<1x256xf32>
    %65 = math.tanh %64 : vector<1x256xf32>
    %c0_56 = arith.constant 0 : index
    %c0_57 = arith.constant 0 : index
    %66 = vector.load %arg21[%c0_56, %c0_57] : memref<1x256xf32, #tpu.memory_space<vmem>>, vector<1x256xf32>
    tpu.vector_store %arg21[%c0_56, %c0_57], %65 {strides = array<i32>} : memref<1x256xf32, #tpu.memory_space<vmem>>, vector<1x256xf32>,
    %c0_58 = arith.constant 0 : index
    %c0_59 = arith.constant 0 : index
    %67 = vector.load %arg22[%c0_58, %c0_59] : memref<256x128xf32, #tpu.memory_space<vmem>>, vector<256x128xf32>
    tpu.vector_store %arg22[%c0_58, %c0_59], %59 {strides = array<i32>} : memref<256x128xf32, #tpu.memory_space<vmem>>, vector<256x128xf32>,
    return
  }
  func.func @transform_0(%arg0: i32) -> (i32, i32) {
    %c0_i32 = arith.constant 0 : i32
    %c0_i32_0 = arith.constant 0 : i32
    return %arg0, %c0_i32 : i32, i32
  }
  func.func @transform_1(%arg0: i32) -> (i32, i32) {
    %c0_i32 = arith.constant 0 : i32
    %c0_i32_0 = arith.constant 0 : i32
    %c0_i32_1 = arith.constant 0 : i32
    return %c0_i32, %c0_i32_0 : i32, i32
  }
  func.func @transform_2(%arg0: i32) -> (i32, i32) {
    %c0_i32 = arith.constant 0 : i32
    %c0_i32_0 = arith.constant 0 : i32
    %c0_i32_1 = arith.constant 0 : i32
    return %c0_i32, %c0_i32_0 : i32, i32
  }
  func.func @transform_3(%arg0: i32) -> (i32, i32) {
    %c0_i32 = arith.constant 0 : i32
    %c0_i32_0 = arith.constant 0 : i32
    %c0_i32_1 = arith.constant 0 : i32
    return %c0_i32, %c0_i32_0 : i32, i32
  }
  func.func @transform_4(%arg0: i32) -> (i32, i32) {
    %c0_i32 = arith.constant 0 : i32
    %c0_i32_0 = arith.constant 0 : i32
    %c0_i32_1 = arith.constant 0 : i32
    return %c0_i32, %c0_i32_0 : i32, i32
  }
  func.func @transform_5(%arg0: i32) -> (i32, i32) {
    %c0_i32 = arith.constant 0 : i32
    %c0_i32_0 = arith.constant 0 : i32
    %c0_i32_1 = arith.constant 0 : i32
    return %c0_i32, %c0_i32_0 : i32, i32
  }
  func.func @transform_6(%arg0: i32) -> (i32, i32) {
    %c0_i32 = arith.constant 0 : i32
    %c0_i32_0 = arith.constant 0 : i32
    %c0_i32_1 = arith.constant 0 : i32
    return %c0_i32, %c0_i32_0 : i32, i32
  }
  func.func @transform_7(%arg0: i32) -> (i32, i32) {
    %c0_i32 = arith.constant 0 : i32
    %c0_i32_0 = arith.constant 0 : i32
    %c0_i32_1 = arith.constant 0 : i32
    return %c0_i32, %c0_i32_0 : i32, i32
  }
  func.func @transform_8(%arg0: i32) -> (i32, i32) {
    %c0_i32 = arith.constant 0 : i32
    %c0_i32_0 = arith.constant 0 : i32
    %c0_i32_1 = arith.constant 0 : i32
    return %c0_i32, %c0_i32_0 : i32, i32
  }
  func.func @transform_9(%arg0: i32) -> (i32, i32) {
    %c0_i32 = arith.constant 0 : i32
    %c0_i32_0 = arith.constant 0 : i32
    %c0_i32_1 = arith.constant 0 : i32
    return %c0_i32, %c0_i32_0 : i32, i32
  }
  func.func @transform_10(%arg0: i32) -> (i32, i32) {
    %c0_i32 = arith.constant 0 : i32
    %c0_i32_0 = arith.constant 0 : i32
    %c0_i32_1 = arith.constant 0 : i32
    return %c0_i32, %c0_i32_0 : i32, i32
  }
  func.func @transform_11(%arg0: i32) -> (i32, i32) {
    %c0_i32 = arith.constant 0 : i32
    %c0_i32_0 = arith.constant 0 : i32
    %c0_i32_1 = arith.constant 0 : i32
    return %c0_i32, %c0_i32_0 : i32, i32
  }
  func.func @transform_12(%arg0: i32) -> (i32, i32) {
    %c0_i32 = arith.constant 0 : i32
    %c0_i32_0 = arith.constant 0 : i32
    %c0_i32_1 = arith.constant 0 : i32
    return %c0_i32, %c0_i32_0 : i32, i32
  }
  func.func @transform_13(%arg0: i32) -> (i32, i32) {
    %c0_i32 = arith.constant 0 : i32
    %c0_i32_0 = arith.constant 0 : i32
    %c0_i32_1 = arith.constant 0 : i32
    return %c0_i32, %c0_i32_0 : i32, i32
  }
  func.func @transform_14(%arg0: i32) -> (i32, i32) {
    %c0_i32 = arith.constant 0 : i32
    %c0_i32_0 = arith.constant 0 : i32
    %c0_i32_1 = arith.constant 0 : i32
    return %c0_i32, %c0_i32_0 : i32, i32
  }
  func.func @transform_15(%arg0: i32) -> (i32, i32) {
    %c0_i32 = arith.constant 0 : i32
    %c0_i32_0 = arith.constant 0 : i32
    %c0_i32_1 = arith.constant 0 : i32
    return %c0_i32, %c0_i32_0 : i32, i32
  }
  func.func @transform_16(%arg0: i32) -> (i32, i32) {
    %c0_i32 = arith.constant 0 : i32
    %c0_i32_0 = arith.constant 0 : i32
    %c0_i32_1 = arith.constant 0 : i32
    return %c0_i32, %c0_i32_0 : i32, i32
  }
  func.func @transform_17(%arg0: i32) -> (i32, i32) {
    %c0_i32 = arith.constant 0 : i32
    %c0_i32_0 = arith.constant 0 : i32
    %c0_i32_1 = arith.constant 0 : i32
    return %c0_i32, %c0_i32_0 : i32, i32
  }
  func.func @transform_18(%arg0: i32) -> (i32, i32) {
    %c0_i32 = arith.constant 0 : i32
    %c0_i32_0 = arith.constant 0 : i32
    %c0_i32_1 = arith.constant 0 : i32
    return %c0_i32, %c0_i32_0 : i32, i32
  }
  func.func @transform_19(%arg0: i32) -> (i32, i32) {
    %c0_i32 = arith.constant 0 : i32
    %c0_i32_0 = arith.constant 0 : i32
    %c0_i32_1 = arith.constant 0 : i32
    return %c0_i32, %c0_i32_0 : i32, i32
  }
  func.func @transform_20(%arg0: i32) -> (i32, i32) {
    %c0_i32 = arith.constant 0 : i32
    %c0_i32_0 = arith.constant 0 : i32
    return %c0_i32, %arg0 : i32, i32
  }
  func.func @transform_21(%arg0: i32) -> (i32, i32) {
    %c0_i32 = arith.constant 0 : i32
    %c0_i32_0 = arith.constant 0 : i32
    return %arg0, %c0_i32 : i32, i32
  }
}

module attributes {stable_mosaic.version = 11 : i64} {
  func.func @_decoder_kernel(%arg0: i32, %arg1: memref<256x8xf32, #tpu.memory_space<vmem>>, %arg2: memref<8x128xf32, #tpu.memory_space<vmem>>, %arg3: memref<1x128xf32, #tpu.memory_space<vmem>>, %arg4: memref<128x128xf32, #tpu.memory_space<vmem>>, %arg5: memref<1x128xf32, #tpu.memory_space<vmem>>, %arg6: memref<128x128xf32, #tpu.memory_space<vmem>>, %arg7: memref<1x128xf32, #tpu.memory_space<vmem>>, %arg8: memref<128x128xf32, #tpu.memory_space<vmem>>, %arg9: memref<1x128xf32, #tpu.memory_space<vmem>>, %arg10: memref<128x128xf32, #tpu.memory_space<vmem>>, %arg11: memref<8x128xf32, #tpu.memory_space<vmem>>, %arg12: memref<1x128xf32, #tpu.memory_space<vmem>>, %arg13: memref<128x128xf32, #tpu.memory_space<vmem>>, %arg14: memref<1x128xf32, #tpu.memory_space<vmem>>, %arg15: memref<128x128xf32, #tpu.memory_space<vmem>>, %arg16: memref<1x128xf32, #tpu.memory_space<vmem>>, %arg17: memref<128x128xf32, #tpu.memory_space<vmem>>, %arg18: memref<1x128xf32, #tpu.memory_space<vmem>>, %arg19: memref<1x128xf32, #tpu.memory_space<vmem>>, %arg20: memref<1x1xf32, #tpu.memory_space<vmem>>, %arg21: memref<1x256xf32, #tpu.memory_space<vmem>>, %arg22: memref<256x128xf32, #tpu.memory_space<vmem>>) attributes {dimension_semantics = [#tpu.dimension_semantics<parallel>], iteration_bounds = array<i64: 2>, scalar_prefetch = 0 : i64, scratch_operands = 0 : i64, tpu.core_type = #tpu.core_type<tc>, window_params = [{transform_indices = @transform_0, window_bounds = array<i64: 256, 8>}, {pipeline_mode = #tpu.pipeline_mode<synchronous>, transform_indices = @transform_1, window_bounds = array<i64: 8, 128>}, {pipeline_mode = #tpu.pipeline_mode<synchronous>, transform_indices = @transform_2, window_bounds = array<i64: 1, 128>}, {pipeline_mode = #tpu.pipeline_mode<synchronous>, transform_indices = @transform_3, window_bounds = array<i64: 128, 128>}, {pipeline_mode = #tpu.pipeline_mode<synchronous>, transform_indices = @transform_4, window_bounds = array<i64: 1, 128>}, {pipeline_mode = #tpu.pipeline_mode<synchronous>, transform_indices = @transform_5, window_bounds = array<i64: 128, 128>}, {pipeline_mode = #tpu.pipeline_mode<synchronous>, transform_indices = @transform_6, window_bounds = array<i64: 1, 128>}, {pipeline_mode = #tpu.pipeline_mode<synchronous>, transform_indices = @transform_7, window_bounds = array<i64: 128, 128>}, {pipeline_mode = #tpu.pipeline_mode<synchronous>, transform_indices = @transform_8, window_bounds = array<i64: 1, 128>}, {pipeline_mode = #tpu.pipeline_mode<synchronous>, transform_indices = @transform_9, window_bounds = array<i64: 128, 128>}, {pipeline_mode = #tpu.pipeline_mode<synchronous>, transform_indices = @transform_10, window_bounds = array<i64: 8, 128>}, {pipeline_mode = #tpu.pipeline_mode<synchronous>, transform_indices = @transform_11, window_bounds = array<i64: 1, 128>}, {pipeline_mode = #tpu.pipeline_mode<synchronous>, transform_indices = @transform_12, window_bounds = array<i64: 128, 128>}, {pipeline_mode = #tpu.pipeline_mode<synchronous>, transform_indices = @transform_13, window_bounds = array<i64: 1, 128>}, {pipeline_mode = #tpu.pipeline_mode<synchronous>, transform_indices = @transform_14, window_bounds = array<i64: 128, 128>}, {pipeline_mode = #tpu.pipeline_mode<synchronous>, transform_indices = @transform_15, window_bounds = array<i64: 1, 128>}, {pipeline_mode = #tpu.pipeline_mode<synchronous>, transform_indices = @transform_16, window_bounds = array<i64: 128, 128>}, {pipeline_mode = #tpu.pipeline_mode<synchronous>, transform_indices = @transform_17, window_bounds = array<i64: 1, 128>}, {pipeline_mode = #tpu.pipeline_mode<synchronous>, transform_indices = @transform_18, window_bounds = array<i64: 1, 128>}, {pipeline_mode = #tpu.pipeline_mode<synchronous>, transform_indices = @transform_19, window_bounds = array<i64: 1, 1>}, {transform_indices = @transform_20, window_bounds = array<i64: 1, 256>}, {transform_indices = @transform_21, window_bounds = array<i64: 256, 128>}]} {
    %c0 = arith.constant 0 : index
    %c0_0 = arith.constant 0 : index
    %0 = vector.load %arg1[%c0, %c0_0] : memref<256x8xf32, #tpu.memory_space<vmem>>, vector<256x8xf32>
    %c0_1 = arith.constant 0 : index
    %c0_2 = arith.constant 0 : index
    %1 = vector.load %arg2[%c0_1, %c0_2] : memref<8x128xf32, #tpu.memory_space<vmem>>, vector<8x128xf32>
    %cst = arith.constant dense<0.000000e+00> : vector<256x128xf32>
    %2 = tpu.matmul %0, %1, %cst {dimension_numbers = #tpu.dot_dimension_numbers<[1], [0], [0], [1], [0, 0, 1, 1], [], []>} : vector<256x8xf32>, vector<8x128xf32>, vector<256x128xf32> -> vector<256x128xf32>
    %c0_3 = arith.constant 0 : index
    %c0_4 = arith.constant 0 : index
    %3 = vector.load %arg3[%c0_3, %c0_4] : memref<1x128xf32, #tpu.memory_space<vmem>>, vector<1x128xf32>
    %4 = vector.broadcast %3 : vector<1x128xf32> to vector<256x128xf32>
    %5 = arith.addf %2, %4 : vector<256x128xf32>
    %cst_5 = arith.constant 0.000000e+00 : f32
    %6 = vector.broadcast %cst_5 : f32 to vector<256x128xf32>
    %7 = arith.maximumf %5, %6 : vector<256x128xf32>
    %c0_6 = arith.constant 0 : index
    %c0_7 = arith.constant 0 : index
    %8 = vector.load %arg4[%c0_6, %c0_7] : memref<128x128xf32, #tpu.memory_space<vmem>>, vector<128x128xf32>
    %cst_8 = arith.constant dense<0.000000e+00> : vector<256x128xf32>
    %9 = tpu.matmul %7, %8, %cst_8 {dimension_numbers = #tpu.dot_dimension_numbers<[1], [0], [0], [1], [0, 0, 1, 1], [], []>} : vector<256x128xf32>, vector<128x128xf32>, vector<256x128xf32> -> vector<256x128xf32>
    %c0_9 = arith.constant 0 : index
    %c0_10 = arith.constant 0 : index
    %10 = vector.load %arg5[%c0_9, %c0_10] : memref<1x128xf32, #tpu.memory_space<vmem>>, vector<1x128xf32>
    %11 = vector.broadcast %10 : vector<1x128xf32> to vector<256x128xf32>
    %12 = arith.addf %9, %11 : vector<256x128xf32>
    %cst_11 = arith.constant 0.000000e+00 : f32
    %13 = vector.broadcast %cst_11 : f32 to vector<256x128xf32>
    %14 = arith.maximumf %12, %13 : vector<256x128xf32>
    %c0_12 = arith.constant 0 : index
    %c0_13 = arith.constant 0 : index
    %15 = vector.load %arg6[%c0_12, %c0_13] : memref<128x128xf32, #tpu.memory_space<vmem>>, vector<128x128xf32>
    %cst_14 = arith.constant dense<0.000000e+00> : vector<256x128xf32>
    %16 = tpu.matmul %14, %15, %cst_14 {dimension_numbers = #tpu.dot_dimension_numbers<[1], [0], [0], [1], [0, 0, 1, 1], [], []>} : vector<256x128xf32>, vector<128x128xf32>, vector<256x128xf32> -> vector<256x128xf32>
    %c0_15 = arith.constant 0 : index
    %c0_16 = arith.constant 0 : index
    %17 = vector.load %arg7[%c0_15, %c0_16] : memref<1x128xf32, #tpu.memory_space<vmem>>, vector<1x128xf32>
    %18 = vector.broadcast %17 : vector<1x128xf32> to vector<256x128xf32>
    %19 = arith.addf %16, %18 : vector<256x128xf32>
    %cst_17 = arith.constant 0.000000e+00 : f32
    %20 = vector.broadcast %cst_17 : f32 to vector<256x128xf32>
    %21 = arith.maximumf %19, %20 : vector<256x128xf32>
    %c0_18 = arith.constant 0 : index
    %c0_19 = arith.constant 0 : index
    %22 = vector.load %arg8[%c0_18, %c0_19] : memref<128x128xf32, #tpu.memory_space<vmem>>, vector<128x128xf32>
    %cst_20 = arith.constant dense<0.000000e+00> : vector<256x128xf32>
    %23 = tpu.matmul %21, %22, %cst_20 {dimension_numbers = #tpu.dot_dimension_numbers<[1], [0], [0], [1], [0, 0, 1, 1], [], []>} : vector<256x128xf32>, vector<128x128xf32>, vector<256x128xf32> -> vector<256x128xf32>
    %c0_21 = arith.constant 0 : index
    %c0_22 = arith.constant 0 : index
    %24 = vector.load %arg9[%c0_21, %c0_22] : memref<1x128xf32, #tpu.memory_space<vmem>>, vector<1x128xf32>
    %25 = vector.broadcast %24 : vector<1x128xf32> to vector<256x128xf32>
    %26 = arith.addf %23, %25 : vector<256x128xf32>
    %cst_23 = arith.constant 0.000000e+00 : f32
    %27 = vector.broadcast %cst_23 : f32 to vector<256x128xf32>
    %28 = arith.maximumf %26, %27 : vector<256x128xf32>
    %c0_24 = arith.constant 0 : index
    %c0_25 = arith.constant 0 : index
    %29 = vector.load %arg10[%c0_24, %c0_25] : memref<128x128xf32, #tpu.memory_space<vmem>>, vector<128x128xf32>
    %cst_26 = arith.constant dense<0.000000e+00> : vector<256x128xf32>
    %30 = tpu.matmul %28, %29, %cst_26 {dimension_numbers = #tpu.dot_dimension_numbers<[1], [0], [0], [1], [0, 0, 1, 1], [], []>} : vector<256x128xf32>, vector<128x128xf32>, vector<256x128xf32> -> vector<256x128xf32>
    %c0_27 = arith.constant 0 : index
    %c0_28 = arith.constant 0 : index
    %31 = vector.load %arg11[%c0_27, %c0_28] : memref<8x128xf32, #tpu.memory_space<vmem>>, vector<8x128xf32>
    %cst_29 = arith.constant dense<0.000000e+00> : vector<256x128xf32>
    %32 = tpu.matmul %0, %31, %cst_29 {dimension_numbers = #tpu.dot_dimension_numbers<[1], [0], [0], [1], [0, 0, 1, 1], [], []>} : vector<256x8xf32>, vector<8x128xf32>, vector<256x128xf32> -> vector<256x128xf32>
    %33 = arith.addf %30, %32 : vector<256x128xf32>
    %c0_30 = arith.constant 0 : index
    %c0_31 = arith.constant 0 : index
    %34 = vector.load %arg12[%c0_30, %c0_31] : memref<1x128xf32, #tpu.memory_space<vmem>>, vector<1x128xf32>
    %35 = vector.broadcast %34 : vector<1x128xf32> to vector<256x128xf32>
    %36 = arith.addf %33, %35 : vector<256x128xf32>
    %cst_32 = arith.constant 0.000000e+00 : f32
    %37 = vector.broadcast %cst_32 : f32 to vector<256x128xf32>
    %38 = arith.maximumf %36, %37 : vector<256x128xf32>
    %c0_33 = arith.constant 0 : index
    %c0_34 = arith.constant 0 : index
    %39 = vector.load %arg13[%c0_33, %c0_34] : memref<128x128xf32, #tpu.memory_space<vmem>>, vector<128x128xf32>
    %cst_35 = arith.constant dense<0.000000e+00> : vector<256x128xf32>
    %40 = tpu.matmul %38, %39, %cst_35 {dimension_numbers = #tpu.dot_dimension_numbers<[1], [0], [0], [1], [0, 0, 1, 1], [], []>} : vector<256x128xf32>, vector<128x128xf32>, vector<256x128xf32> -> vector<256x128xf32>
    %c0_36 = arith.constant 0 : index
    %c0_37 = arith.constant 0 : index
    %41 = vector.load %arg14[%c0_36, %c0_37] : memref<1x128xf32, #tpu.memory_space<vmem>>, vector<1x128xf32>
    %42 = vector.broadcast %41 : vector<1x128xf32> to vector<256x128xf32>
    %43 = arith.addf %40, %42 : vector<256x128xf32>
    %cst_38 = arith.constant 0.000000e+00 : f32
    %44 = vector.broadcast %cst_38 : f32 to vector<256x128xf32>
    %45 = arith.maximumf %43, %44 : vector<256x128xf32>
    %c0_39 = arith.constant 0 : index
    %c0_40 = arith.constant 0 : index
    %46 = vector.load %arg15[%c0_39, %c0_40] : memref<128x128xf32, #tpu.memory_space<vmem>>, vector<128x128xf32>
    %cst_41 = arith.constant dense<0.000000e+00> : vector<256x128xf32>
    %47 = tpu.matmul %45, %46, %cst_41 {dimension_numbers = #tpu.dot_dimension_numbers<[1], [0], [0], [1], [0, 0, 1, 1], [], []>} : vector<256x128xf32>, vector<128x128xf32>, vector<256x128xf32> -> vector<256x128xf32>
    %c0_42 = arith.constant 0 : index
    %c0_43 = arith.constant 0 : index
    %48 = vector.load %arg16[%c0_42, %c0_43] : memref<1x128xf32, #tpu.memory_space<vmem>>, vector<1x128xf32>
    %49 = vector.broadcast %48 : vector<1x128xf32> to vector<256x128xf32>
    %50 = arith.addf %47, %49 : vector<256x128xf32>
    %cst_44 = arith.constant 0.000000e+00 : f32
    %51 = vector.broadcast %cst_44 : f32 to vector<256x128xf32>
    %52 = arith.maximumf %50, %51 : vector<256x128xf32>
    %c0_45 = arith.constant 0 : index
    %c0_46 = arith.constant 0 : index
    %53 = vector.load %arg17[%c0_45, %c0_46] : memref<128x128xf32, #tpu.memory_space<vmem>>, vector<128x128xf32>
    %cst_47 = arith.constant dense<0.000000e+00> : vector<256x128xf32>
    %54 = tpu.matmul %52, %53, %cst_47 {dimension_numbers = #tpu.dot_dimension_numbers<[1], [0], [0], [1], [0, 0, 1, 1], [], []>} : vector<256x128xf32>, vector<128x128xf32>, vector<256x128xf32> -> vector<256x128xf32>
    %c0_48 = arith.constant 0 : index
    %c0_49 = arith.constant 0 : index
    %55 = vector.load %arg18[%c0_48, %c0_49] : memref<1x128xf32, #tpu.memory_space<vmem>>, vector<1x128xf32>
    %56 = vector.broadcast %55 : vector<1x128xf32> to vector<256x128xf32>
    %57 = arith.addf %54, %56 : vector<256x128xf32>
    %cst_50 = arith.constant 0.000000e+00 : f32
    %58 = vector.broadcast %cst_50 : f32 to vector<256x128xf32>
    %59 = arith.maximumf %57, %58 : vector<256x128xf32>
    %c0_51 = arith.constant 0 : index
    %c0_52 = arith.constant 0 : index
    %60 = vector.load %arg19[%c0_51, %c0_52] : memref<1x128xf32, #tpu.memory_space<vmem>>, vector<1x128xf32>
    %cst_53 = arith.constant dense<0.000000e+00> : vector<1x256xf32>
    %61 = tpu.matmul %60, %59, %cst_53 {dimension_numbers = #tpu.dot_dimension_numbers<[1], [1], [0], [0], [0, 0, 1, 0], [], []>} : vector<1x128xf32>, vector<256x128xf32>, vector<1x256xf32> -> vector<1x256xf32>
    %c0_54 = arith.constant 0 : index
    %c0_55 = arith.constant 0 : index
    %62 = vector.load %arg20[%c0_54, %c0_55] : memref<1x1xf32, #tpu.memory_space<vmem>>, vector<1x1xf32>
    %63 = vector.broadcast %62 : vector<1x1xf32> to vector<1x256xf32>
    %64 = arith.addf %61, %63 : vector<1x256xf32>
    %65 = math.tanh %64 : vector<1x256xf32>
    %c0_56 = arith.constant 0 : index
    %c0_57 = arith.constant 0 : index
    %66 = vector.load %arg21[%c0_56, %c0_57] : memref<1x256xf32, #tpu.memory_space<vmem>>, vector<1x256xf32>
    tpu.vector_store %arg21[%c0_56, %c0_57], %65 {strides = array<i32>} : memref<1x256xf32, #tpu.memory_space<vmem>>, vector<1x256xf32>,
    %c0_58 = arith.constant 0 : index
    %c0_59 = arith.constant 0 : index
    %67 = vector.load %arg22[%c0_58, %c0_59] : memref<256x128xf32, #tpu.memory_space<vmem>>, vector<256x128xf32>
    tpu.vector_store %arg22[%c0_58, %c0_59], %59 {strides = array<i32>} : memref<256x128xf32, #tpu.memory_space<vmem>>, vector<256x128xf32>,
    return
  }
  func.func @transform_0(%arg0: i32) -> (i32, i32) {
    %c0_i32 = arith.constant 0 : i32
    %c0_i32_0 = arith.constant 0 : i32
    return %arg0, %c0_i32 : i32, i32
  }
  func.func @transform_1(%arg0: i32) -> (i32, i32) {
    %c0_i32 = arith.constant 0 : i32
    %c0_i32_0 = arith.constant 0 : i32
    %c0_i32_1 = arith.constant 0 : i32
    return %c0_i32, %c0_i32_0 : i32, i32
  }
  func.func @transform_2(%arg0: i32) -> (i32, i32) {
    %c0_i32 = arith.constant 0 : i32
    %c0_i32_0 = arith.constant 0 : i32
    %c0_i32_1 = arith.constant 0 : i32
    return %c0_i32, %c0_i32_0 : i32, i32
  }
  func.func @transform_3(%arg0: i32) -> (i32, i32) {
    %c0_i32 = arith.constant 0 : i32
    %c0_i32_0 = arith.constant 0 : i32
    %c0_i32_1 = arith.constant 0 : i32
    return %c0_i32, %c0_i32_0 : i32, i32
  }
  func.func @transform_4(%arg0: i32) -> (i32, i32) {
    %c0_i32 = arith.constant 0 : i32
    %c0_i32_0 = arith.constant 0 : i32
    %c0_i32_1 = arith.constant 0 : i32
    return %c0_i32, %c0_i32_0 : i32, i32
  }
  func.func @transform_5(%arg0: i32) -> (i32, i32) {
    %c0_i32 = arith.constant 0 : i32
    %c0_i32_0 = arith.constant 0 : i32
    %c0_i32_1 = arith.constant 0 : i32
    return %c0_i32, %c0_i32_0 : i32, i32
  }
  func.func @transform_6(%arg0: i32) -> (i32, i32) {
    %c0_i32 = arith.constant 0 : i32
    %c0_i32_0 = arith.constant 0 : i32
    %c0_i32_1 = arith.constant 0 : i32
    return %c0_i32, %c0_i32_0 : i32, i32
  }
  func.func @transform_7(%arg0: i32) -> (i32, i32) {
    %c0_i32 = arith.constant 0 : i32
    %c0_i32_0 = arith.constant 0 : i32
    %c0_i32_1 = arith.constant 0 : i32
    return %c0_i32, %c0_i32_0 : i32, i32
  }
  func.func @transform_8(%arg0: i32) -> (i32, i32) {
    %c0_i32 = arith.constant 0 : i32
    %c0_i32_0 = arith.constant 0 : i32
    %c0_i32_1 = arith.constant 0 : i32
    return %c0_i32, %c0_i32_0 : i32, i32
  }
  func.func @transform_9(%arg0: i32) -> (i32, i32) {
    %c0_i32 = arith.constant 0 : i32
    %c0_i32_0 = arith.constant 0 : i32
    %c0_i32_1 = arith.constant 0 : i32
    return %c0_i32, %c0_i32_0 : i32, i32
  }
  func.func @transform_10(%arg0: i32) -> (i32, i32) {
    %c0_i32 = arith.constant 0 : i32
    %c0_i32_0 = arith.constant 0 : i32
    %c0_i32_1 = arith.constant 0 : i32
    return %c0_i32, %c0_i32_0 : i32, i32
  }
  func.func @transform_11(%arg0: i32) -> (i32, i32) {
    %c0_i32 = arith.constant 0 : i32
    %c0_i32_0 = arith.constant 0 : i32
    %c0_i32_1 = arith.constant 0 : i32
    return %c0_i32, %c0_i32_0 : i32, i32
  }
  func.func @transform_12(%arg0: i32) -> (i32, i32) {
    %c0_i32 = arith.constant 0 : i32
    %c0_i32_0 = arith.constant 0 : i32
    %c0_i32_1 = arith.constant 0 : i32
    return %c0_i32, %c0_i32_0 : i32, i32
  }
  func.func @transform_13(%arg0: i32) -> (i32, i32) {
    %c0_i32 = arith.constant 0 : i32
    %c0_i32_0 = arith.constant 0 : i32
    %c0_i32_1 = arith.constant 0 : i32
    return %c0_i32, %c0_i32_0 : i32, i32
  }
  func.func @transform_14(%arg0: i32) -> (i32, i32) {
    %c0_i32 = arith.constant 0 : i32
    %c0_i32_0 = arith.constant 0 : i32
    %c0_i32_1 = arith.constant 0 : i32
    return %c0_i32, %c0_i32_0 : i32, i32
  }
  func.func @transform_15(%arg0: i32) -> (i32, i32) {
    %c0_i32 = arith.constant 0 : i32
    %c0_i32_0 = arith.constant 0 : i32
    %c0_i32_1 = arith.constant 0 : i32
    return %c0_i32, %c0_i32_0 : i32, i32
  }
  func.func @transform_16(%arg0: i32) -> (i32, i32) {
    %c0_i32 = arith.constant 0 : i32
    %c0_i32_0 = arith.constant 0 : i32
    %c0_i32_1 = arith.constant 0 : i32
    return %c0_i32, %c0_i32_0 : i32, i32
  }
  func.func @transform_17(%arg0: i32) -> (i32, i32) {
    %c0_i32 = arith.constant 0 : i32
    %c0_i32_0 = arith.constant 0 : i32
    %c0_i32_1 = arith.constant 0 : i32
    return %c0_i32, %c0_i32_0 : i32, i32
  }
  func.func @transform_18(%arg0: i32) -> (i32, i32) {
    %c0_i32 = arith.constant 0 : i32
    %c0_i32_0 = arith.constant 0 : i32
    %c0_i32_1 = arith.constant 0 : i32
    return %c0_i32, %c0_i32_0 : i32, i32
  }
  func.func @transform_19(%arg0: i32) -> (i32, i32) {
    %c0_i32 = arith.constant 0 : i32
    %c0_i32_0 = arith.constant 0 : i32
    %c0_i32_1 = arith.constant 0 : i32
    return %c0_i32, %c0_i32_0 : i32, i32
  }
  func.func @transform_20(%arg0: i32) -> (i32, i32) {
    %c0_i32 = arith.constant 0 : i32
    %c0_i32_0 = arith.constant 0 : i32
    return %c0_i32, %arg0 : i32, i32
  }
  func.func @transform_21(%arg0: i32) -> (i32, i32) {
    %c0_i32 = arith.constant 0 : i32
    %c0_i32_0 = arith.constant 0 : i32
    return %arg0, %c0_i32 : i32, i32
  }
}

</mosaic_0001>

<llo_original>
// kernel: tpu_custom_call.1
$region0: #{tpu_custom_call.1}
  #allocation0 [shape = 'u32[]', space=smem, size = 0x4, offset = 0x4, fixed_abs, tag = 'smem constant byte address 0x4 - core index']
  #allocation1 [shape = 'u32[72,128]{1,0:T(1,128)}', space=vmem, size = 0x9000, scoped, tag = 'internal scratch']
  #allocation2 [shape = 'f32[1,1]{1,0:T(1,128)S(1)}', space=vmem, size = 0x200, scoped, tag = 'scoped memory for tpu_custom_call.1']
  %s0 = inlined_call_operand.vmem [shape: f32[512,8], index: 0, kind: input, shape index: {}]
  %s1 = inlined_call_operand.vmem [shape: f32[8,128], index: 1, kind: input, shape index: {}]
  %s2 = inlined_call_operand.vmem [shape: f32[1,128], index: 2, kind: input, shape index: {}]
  %s3 = inlined_call_operand.vmem [shape: f32[128,128], index: 3, kind: input, shape index: {}]
  %s4 = inlined_call_operand.vmem [shape: f32[1,128], index: 4, kind: input, shape index: {}]
  %s5 = inlined_call_operand.vmem [shape: f32[128,128], index: 5, kind: input, shape index: {}]
  %s6 = inlined_call_operand.vmem [shape: f32[1,128], index: 6, kind: input, shape index: {}]
  %s7 = inlined_call_operand.vmem [shape: f32[128,128], index: 7, kind: input, shape index: {}]
  %s8 = inlined_call_operand.vmem [shape: f32[1,128], index: 8, kind: input, shape index: {}]
  %s9 = inlined_call_operand.vmem [shape: f32[128,128], index: 9, kind: input, shape index: {}]
  %s10 = inlined_call_operand.vmem [shape: f32[8,128], index: 10, kind: input, shape index: {}]
  %s11 = inlined_call_operand.vmem [shape: f32[1,128], index: 11, kind: input, shape index: {}]
  %s12 = inlined_call_operand.hbm [shape: f32[128,128], index: 12, kind: input, shape index: {}]
  %s13 = inlined_call_operand.vmem [shape: f32[1,128], index: 13, kind: input, shape index: {}]
  %s14 = inlined_call_operand.hbm [shape: f32[128,128], index: 14, kind: input, shape index: {}]
  %s15 = inlined_call_operand.vmem [shape: f32[1,128], index: 15, kind: input, shape index: {}]
  %s16 = inlined_call_operand.hbm [shape: f32[128,128], index: 16, kind: input, shape index: {}]
  %s17 = inlined_call_operand.vmem [shape: f32[1,128], index: 17, kind: input, shape index: {}]
  %s18 = inlined_call_operand.vmem [shape: f32[1,128], index: 18, kind: input, shape index: {}]
  %s19 = inlined_call_operand.<no memory space> [shape: f32[1,1], index: 19, kind: input, shape index: {}]
  %s20 = inlined_call_operand.hbm [shape: f32[1,512], index: 20, kind: output, shape index: {0}]
  %s21 = inlined_call_operand.hbm [shape: f32[512,128], index: 21, kind: output, shape index: {1}]
  %22 = xla_tuple %s20, %s21
  %s23 = sld [smem:[#allocation0]]
  $region133: #{tpu_custom_call.1} parent=0
    _
  %s25 = ssub.s32 1, %s23
  %s26 = scalar_select 0, %s25, %s23
  %v27 = vstv %s19
  %28 = vst [vmem:[#allocation2] sm:$0x1] %v27
  $region1: #{tpu_custom_call.1} parent=0
    #allocation3 [shape = 'u8[65536]{0}', space=vmem, size = 0x10000, scoped, tag = 'input window, operand 12, single buffered']
    #allocation4 [shape = 's32[2]{0}', space=sflag, size = 0x8, scoped, tag = 'scoped memory for tpu_custom_call.1']
    #allocation5 [shape = 's32[2]{0}', space=sflag, size = 0x8, scoped, tag = 'scoped memory for tpu_custom_call.1']
    #allocation6 [shape = 'u8[65536]{0}', space=vmem, size = 0x10000, scoped, tag = 'input window, operand 14, single buffered']
    #allocation7 [shape = 's32[1]{0}', space=sflag, size = 0x4, scoped, tag = 'scoped memory for tpu_custom_call.1']
    #allocation8 [shape = 'u8[65536]{0}', space=vmem, size = 0x10000, scoped, tag = 'input window, operand 16, single buffered']
    #allocation9 [shape = 'u8[2048]{0}', space=vmem, size = 0x800, scoped, tag = 'output window, operand 0']
    #allocation10 [shape = 'u8[262144]{0}', space=vmem, size = 0x40000, scoped, tag = 'output window, operand 1']
    #allocation11 [shape = 's32[2]{0}', space=sflag, size = 0x8, scoped, tag = 'scoped memory for tpu_custom_call.1']
    %29 = vsyncpa [#allocation4], 0
    %30 = vsyncpa [#allocation7], 0
    %31 = vsyncpa [#allocation5], 0
    %s32 = scalar_lea.sflag [#allocation5], 1
    %33 = vsyncpa %s32, 0
    %34 = vsyncpa [#allocation11], 0
    %s35 = scalar_lea.sflag [#allocation11], 1
    %36 = vsyncpa %s35, 0
    loop: start=0, step=1, limit=4
    $region2: #{tpu_custom_call.1} parent=1 // loop_pre_header
      _
    $region3: #{tpu_custom_call.1} parent=1 // loop_header
      %s38 = sphi 0, %s42
      %p39 = scmp.ge.s32.totalorder %s38, 4
      %s48 = sphi 0, %s50
      %s51 = sphi 0, %s48
      %s52 = sphi 0, %s51
      %s68 = sphi 0, %s52
      %s72 = sphi 0, %s72
      %s74 = sphi 0, %s72
      %s75 = sphi 0, %s74
      %s89 = sphi 0, %s75
      %s93 = sphi 0, %s93
      %s95 = sphi 0, %s93
      %s96 = sphi 0, %s95
      %s110 = sphi 0, %s96
      %s114 = sphi 0, %s114
      %s116 = sphi 0, %s114
      %s117 = sphi 0, %s116
      %s131 = sphi 0, %s117
      %s135 = sphi 0, %s135
      %s137 = sphi 0, %s135
      %s138 = sphi 0, %s137
      %s152 = sphi 0, %s138
      %s156 = sphi 0, %s156
      %s158 = sphi 0, %s156
      %s159 = sphi 0, %s158
      %s173 = sphi 0, %s159
      %s177 = sphi 0, %s177
      %s179 = sphi 0, %s177
      %s180 = sphi 0, %s179
      %s194 = sphi 0, %s180
      %s198 = sphi 0, %s198
      %s200 = sphi 0, %s198
      %s201 = sphi 0, %s200
      %s215 = sphi 0, %s201
      %s219 = sphi 0, %s219
      %s221 = sphi 0, %s219
      %s222 = sphi 0, %s221
      %s236 = sphi 0, %s222
      %s240 = sphi 0, %s240
      %s242 = sphi 0, %s240
      %s243 = sphi 0, %s242
      %s257 = sphi 0, %s243
      %s261 = sphi 0, %s261
      %s263 = sphi 0, %s261
      %s264 = sphi 0, %s263
      %s278 = sphi 0, %s264
      %s282 = sphi 0, %s282
      %s284 = sphi 0, %s282
      %s285 = sphi 0, %s284
      %s299 = sphi 0, %s285
      %s303 = sphi 0, %s303
      %s305 = sphi 0, %s303
      %s306 = sphi 0, %s305
      %s320 = sphi 0, %s306
      %s324 = sphi 0, %s324
      %s326 = sphi 0, %s324
      %s327 = sphi 0, %s326
      %s341 = sphi 0, %s327
      %s345 = sphi 0, %s345
      %s347 = sphi 0, %s345
      %s348 = sphi 0, %s347
      %s362 = sphi 0, %s348
      %s366 = sphi 0, %s366
      %s368 = sphi 0, %s366
      %s369 = sphi 0, %s368
      %s383 = sphi 0, %s369
      %s387 = sphi 0, %s387
      %s389 = sphi 0, %s387
      %s390 = sphi 0, %s389
      %s404 = sphi 0, %s390
      %s408 = sphi 0, %s408
      %s410 = sphi 0, %s408
      %s411 = sphi 0, %s410
      %s425 = sphi 0, %s411
      %s429 = sphi 0, %s429
      %s431 = sphi 0, %s429
      %s432 = sphi 0, %s431
      %s446 = sphi 0, %s432
      %s450 = sphi 0, %s450
      %s452 = sphi 0, %s450
      %s453 = sphi 0, %s452
      %s467 = sphi 0, %s453
      %s473 = sphi 0, %s475
      %s476 = sphi 0, %s473
      %s477 = sphi 0, %s476
      %s493 = sphi 0, %s477
      %s499 = sphi 0, %s501
      %s502 = sphi 0, %s499
      %s503 = sphi 0, %s502
      %s519 = sphi 0, %s503
    $region4: #{tpu_custom_call.1} parent=1 // loop_header_branch
      %41 = sbr.rel (%p39) target = $region8
    $region5: #{tpu_custom_call.1} parent=1 // loop_body
      %s43 = ssub.s32 %s38, 1
      %s44 = ssub.s32 %s38, 2
      %s45 = sadd.s32 %s38, 1
      %s46 = ssub.s32 %s38, %s45
      %p47 = scmp.eq.s32.totalorder %s46, 0
      %s49 = sadd.s32 %s48, 1
      %s50 = scalar_select %p47, %s48, %s49
      %p53 = pneg %p47
      %p54 = scmp.eq.s32.totalorder %s38, 1
      %p55 = por %p53, %p54
      %p56 = scmp.ne.s32.totalorder %s48, %s51
      %p57 = scmp.eq.s32.totalorder %s38, 0
      %p58 = por %p56, %p57
      %p59 = scmp.ne.s32.totalorder %s48, %s51
      %p60 = scmp.eq.s32.totalorder %s43, 1
      %p61 = por %p59, %p60
      %p62 = scmp.ne.s32.totalorder %s51, %s52
      %p63 = scmp.eq.s32.totalorder %s43, 0
      %p64 = por %p62, %p63
      %p65 = scmp.ne.s32.totalorder %s51, %s52
      %p66 = scmp.eq.s32.totalorder %s44, 1
      %p67 = por %p65, %p66
      %p69 = scmp.ne.s32.totalorder %s52, %s68
      %p70 = scmp.eq.s32.totalorder %s44, 0
      %p71 = por %p69, %p70
      %s73 = sadd.s32 %s72, 1
      %p76 = scmp.eq.s32.totalorder %s38, 1
      %p77 = scmp.ne.s32.totalorder %s72, %s74
      %p78 = scmp.eq.s32.totalorder %s38, 0
      %p79 = por %p77, %p78
      %p80 = scmp.ne.s32.totalorder %s72, %s74
      %p81 = scmp.eq.s32.totalorder %s43, 1
      %p82 = por %p80, %p81
      %p83 = scmp.ne.s32.totalorder %s74, %s75
      %p84 = scmp.eq.s32.totalorder %s43, 0
      %p85 = por %p83, %p84
      %p86 = scmp.ne.s32.totalorder %s74, %s75
      %p87 = scmp.eq.s32.totalorder %s44, 1
      %p88 = por %p86, %p87
      %p90 = scmp.ne.s32.totalorder %s75, %s89
      %p91 = scmp.eq.s32.totalorder %s44, 0
      %p92 = por %p90, %p91
      %s94 = sadd.s32 %s93, 1
      %p97 = scmp.eq.s32.totalorder %s38, 1
      %p98 = scmp.ne.s32.totalorder %s93, %s95
      %p99 = scmp.eq.s32.totalorder %s38, 0
      %p100 = por %p98, %p99
      %p101 = scmp.ne.s32.totalorder %s93, %s95
      %p102 = scmp.eq.s32.totalorder %s43, 1
      %p103 = por %p101, %p102
      %p104 = scmp.ne.s32.totalorder %s95, %s96
      %p105 = scmp.eq.s32.totalorder %s43, 0
      %p106 = por %p104, %p105
      %p107 = scmp.ne.s32.totalorder %s95, %s96
      %p108 = scmp.eq.s32.totalorder %s44, 1
      %p109 = por %p107, %p108
      %p111 = scmp.ne.s32.totalorder %s96, %s110
      %p112 = scmp.eq.s32.totalorder %s44, 0
      %p113 = por %p111, %p112
      %s115 = sadd.s32 %s114, 1
      %p118 = scmp.eq.s32.totalorder %s38, 1
      %p119 = scmp.ne.s32.totalorder %s114, %s116
      %p120 = scmp.eq.s32.totalorder %s38, 0
      %p121 = por %p119, %p120
      %p122 = scmp.ne.s32.totalorder %s114, %s116
      %p123 = scmp.eq.s32.totalorder %s43, 1
      %p124 = por %p122, %p123
      %p125 = scmp.ne.s32.totalorder %s116, %s117
      %p126 = scmp.eq.s32.totalorder %s43, 0
      %p127 = por %p125, %p126
      %p128 = scmp.ne.s32.totalorder %s116, %s117
      %p129 = scmp.eq.s32.totalorder %s44, 1
      %p130 = por %p128, %p129
      %p132 = scmp.ne.s32.totalorder %s117, %s131
      %p133 = scmp.eq.s32.totalorder %s44, 0
      %p134 = por %p132, %p133
      %s136 = sadd.s32 %s135, 1
      %p139 = scmp.eq.s32.totalorder %s38, 1
      %p140 = scmp.ne.s32.totalorder %s135, %s137
      %p141 = scmp.eq.s32.totalorder %s38, 0
      %p142 = por %p140, %p141
      %p143 = scmp.ne.s32.totalorder %s135, %s137
      %p144 = scmp.eq.s32.totalorder %s43, 1
      %p145 = por %p143, %p144
      %p146 = scmp.ne.s32.totalorder %s137, %s138
      %p147 = scmp.eq.s32.totalorder %s43, 0
      %p148 = por %p146, %p147
      %p149 = scmp.ne.s32.totalorder %s137, %s138
      %p150 = scmp.eq.s32.totalorder %s44, 1
      %p151 = por %p149, %p150
      %p153 = scmp.ne.s32.totalorder %s138, %s152
      %p154 = scmp.eq.s32.totalorder %s44, 0
      %p155 = por %p153, %p154
      %s157 = sadd.s32 %s156, 1
      %p160 = scmp.eq.s32.totalorder %s38, 1
      %p161 = scmp.ne.s32.totalorder %s156, %s158
      %p162 = scmp.eq.s32.totalorder %s38, 0
      %p163 = por %p161, %p162
      %p164 = scmp.ne.s32.totalorder %s156, %s158
      %p165 = scmp.eq.s32.totalorder %s43, 1
      %p166 = por %p164, %p165
      %p167 = scmp.ne.s32.totalorder %s158, %s159
      %p168 = scmp.eq.s32.totalorder %s43, 0
      %p169 = por %p167, %p168
      %p170 = scmp.ne.s32.totalorder %s158, %s159
      %p171 = scmp.eq.s32.totalorder %s44, 1
      %p172 = por %p170, %p171
      %p174 = scmp.ne.s32.totalorder %s159, %s173
      %p175 = scmp.eq.s32.totalorder %s44, 0
      %p176 = por %p174, %p175
      %s178 = sadd.s32 %s177, 1
      %p181 = scmp.eq.s32.totalorder %s38, 1
      %p182 = scmp.ne.s32.totalorder %s177, %s179
      %p183 = scmp.eq.s32.totalorder %s38, 0
      %p184 = por %p182, %p183
      %p185 = scmp.ne.s32.totalorder %s177, %s179
      %p186 = scmp.eq.s32.totalorder %s43, 1
      %p187 = por %p185, %p186
      %p188 = scmp.ne.s32.totalorder %s179, %s180
      %p189 = scmp.eq.s32.totalorder %s43, 0
      %p190 = por %p188, %p189
      %p191 = scmp.ne.s32.totalorder %s179, %s180
      %p192 = scmp.eq.s32.totalorder %s44, 1
      %p193 = por %p191, %p192
      %p195 = scmp.ne.s32.totalorder %s180, %s194
      %p196 = scmp.eq.s32.totalorder %s44, 0
      %p197 = por %p195, %p196
      %s199 = sadd.s32 %s198, 1
      %p202 = scmp.eq.s32.totalorder %s38, 1
      %p203 = scmp.ne.s32.totalorder %s198, %s200
      %p204 = scmp.eq.s32.totalorder %s38, 0
      %p205 = por %p203, %p204
      %p206 = scmp.ne.s32.totalorder %s198, %s200
      %p207 = scmp.eq.s32.totalorder %s43, 1
      %p208 = por %p206, %p207
      %p209 = scmp.ne.s32.totalorder %s200, %s201
      %p210 = scmp.eq.s32.totalorder %s43, 0
      %p211 = por %p209, %p210
      %p212 = scmp.ne.s32.totalorder %s200, %s201
      %p213 = scmp.eq.s32.totalorder %s44, 1
      %p214 = por %p212, %p213
      %p216 = scmp.ne.s32.totalorder %s201, %s215
      %p217 = scmp.eq.s32.totalorder %s44, 0
      %p218 = por %p216, %p217
      %s220 = sadd.s32 %s219, 1
      %p223 = scmp.eq.s32.totalorder %s38, 1
      %p224 = scmp.ne.s32.totalorder %s219, %s221
      %p225 = scmp.eq.s32.totalorder %s38, 0
      %p226 = por %p224, %p225
      %p227 = scmp.ne.s32.totalorder %s219, %s221
      %p228 = scmp.eq.s32.totalorder %s43, 1
      %p229 = por %p227, %p228
      %p230 = scmp.ne.s32.totalorder %s221, %s222
      %p231 = scmp.eq.s32.totalorder %s43, 0
      %p232 = por %p230, %p231
      %p233 = scmp.ne.s32.totalorder %s221, %s222
      %p234 = scmp.eq.s32.totalorder %s44, 1
      %p235 = por %p233, %p234
      %p237 = scmp.ne.s32.totalorder %s222, %s236
      %p238 = scmp.eq.s32.totalorder %s44, 0
      %p239 = por %p237, %p238
      %s241 = sadd.s32 %s240, 1
      %p244 = scmp.eq.s32.totalorder %s38, 1
      %p245 = scmp.ne.s32.totalorder %s240, %s242
      %p246 = scmp.eq.s32.totalorder %s38, 0
      %p247 = por %p245, %p246
      %p248 = scmp.ne.s32.totalorder %s240, %s242
      %p249 = scmp.eq.s32.totalorder %s43, 1
      %p250 = por %p248, %p249
      %p251 = scmp.ne.s32.totalorder %s242, %s243
      %p252 = scmp.eq.s32.totalorder %s43, 0
      %p253 = por %p251, %p252
      %p254 = scmp.ne.s32.totalorder %s242, %s243
      %p255 = scmp.eq.s32.totalorder %s44, 1
      %p256 = por %p254, %p255
      %p258 = scmp.ne.s32.totalorder %s243, %s257
      %p259 = scmp.eq.s32.totalorder %s44, 0
      %p260 = por %p258, %p259
      %s262 = sadd.s32 %s261, 1
      %p265 = scmp.eq.s32.totalorder %s38, 1
      %p266 = scmp.ne.s32.totalorder %s261, %s263
      %p267 = scmp.eq.s32.totalorder %s38, 0
      %p268 = por %p266, %p267
      %p269 = scmp.ne.s32.totalorder %s261, %s263
      %p270 = scmp.eq.s32.totalorder %s43, 1
      %p271 = por %p269, %p270
      %p272 = scmp.ne.s32.totalorder %s263, %s264
      %p273 = scmp.eq.s32.totalorder %s43, 0
      %p274 = por %p272, %p273
      %p275 = scmp.ne.s32.totalorder %s263, %s264
      %p276 = scmp.eq.s32.totalorder %s44, 1
      %p277 = por %p275, %p276
      %p279 = scmp.ne.s32.totalorder %s264, %s278
      %p280 = scmp.eq.s32.totalorder %s44, 0
      %p281 = por %p279, %p280
      %s283 = sadd.s32 %s282, 1
      %p286 = scmp.eq.s32.totalorder %s38, 1
      %p287 = scmp.ne.s32.totalorder %s282, %s284
      %p288 = scmp.eq.s32.totalorder %s38, 0
      %p289 = por %p287, %p288
      %p290 = scmp.ne.s32.totalorder %s282, %s284
      %p291 = scmp.eq.s32.totalorder %s43, 1
      %p292 = por %p290, %p291
      %p293 = scmp.ne.s32.totalorder %s284, %s285
      %p294 = scmp.eq.s32.totalorder %s43, 0
      %p295 = por %p293, %p294
      %p296 = scmp.ne.s32.totalorder %s284, %s285
      %p297 = scmp.eq.s32.totalorder %s44, 1
      %p298 = por %p296, %p297
      %p300 = scmp.ne.s32.totalorder %s285, %s299
      %p301 = scmp.eq.s32.totalorder %s44, 0
      %p302 = por %p300, %p301
      %s304 = sadd.s32 %s303, 1
      %p307 = scmp.eq.s32.totalorder %s38, 1
      %p308 = scmp.ne.s32.totalorder %s303, %s305
      %p309 = scmp.eq.s32.totalorder %s38, 0
      %p310 = por %p308, %p309
      %p311 = scmp.ne.s32.totalorder %s303, %s305
      %p312 = scmp.eq.s32.totalorder %s43, 1
      %p313 = por %p311, %p312
      %p314 = scmp.ne.s32.totalorder %s305, %s306
      %p315 = scmp.eq.s32.totalorder %s43, 0
      %p316 = por %p314, %p315
      %p317 = scmp.ne.s32.totalorder %s305, %s306
      %p318 = scmp.eq.s32.totalorder %s44, 1
      %p319 = por %p317, %p318
      %p321 = scmp.ne.s32.totalorder %s306, %s320
      %p322 = scmp.eq.s32.totalorder %s44, 0
      %p323 = por %p321, %p322
      %s325 = sadd.s32 %s324, 1
      %p328 = scmp.eq.s32.totalorder %s38, 1
      %p329 = scmp.ne.s32.totalorder %s324, %s326
      %p330 = scmp.eq.s32.totalorder %s38, 0
      %p331 = por %p329, %p330
      %p332 = scmp.ne.s32.totalorder %s324, %s326
      %p333 = scmp.eq.s32.totalorder %s43, 1
      %p334 = por %p332, %p333
      %p335 = scmp.ne.s32.totalorder %s326, %s327
      %p336 = scmp.eq.s32.totalorder %s43, 0
      %p337 = por %p335, %p336
      %p338 = scmp.ne.s32.totalorder %s326, %s327
      %p339 = scmp.eq.s32.totalorder %s44, 1
      %p340 = por %p338, %p339
      %p342 = scmp.ne.s32.totalorder %s327, %s341
      %p343 = scmp.eq.s32.totalorder %s44, 0
      %p344 = por %p342, %p343
      %s346 = sadd.s32 %s345, 1
      %p349 = scmp.eq.s32.totalorder %s38, 1
      %p350 = scmp.ne.s32.totalorder %s345, %s347
      %p351 = scmp.eq.s32.totalorder %s38, 0
      %p352 = por %p350, %p351
      %p353 = scmp.ne.s32.totalorder %s345, %s347
      %p354 = scmp.eq.s32.totalorder %s43, 1
      %p355 = por %p353, %p354
      %p356 = scmp.ne.s32.totalorder %s347, %s348
      %p357 = scmp.eq.s32.totalorder %s43, 0
      %p358 = por %p356, %p357
      %p359 = scmp.ne.s32.totalorder %s347, %s348
      %p360 = scmp.eq.s32.totalorder %s44, 1
      %p361 = por %p359, %p360
      %p363 = scmp.ne.s32.totalorder %s348, %s362
      %p364 = scmp.eq.s32.totalorder %s44, 0
      %p365 = por %p363, %p364
      %s367 = sadd.s32 %s366, 1
      %p370 = scmp.eq.s32.totalorder %s38, 1
      %p371 = scmp.ne.s32.totalorder %s366, %s368
      %p372 = scmp.eq.s32.totalorder %s38, 0
      %p373 = por %p371, %p372
      %p374 = scmp.ne.s32.totalorder %s366, %s368
      %p375 = scmp.eq.s32.totalorder %s43, 1
      %p376 = por %p374, %p375
      %p377 = scmp.ne.s32.totalorder %s368, %s369
      %p378 = scmp.eq.s32.totalorder %s43, 0
      %p379 = por %p377, %p378
      %p380 = scmp.ne.s32.totalorder %s368, %s369
      %p381 = scmp.eq.s32.totalorder %s44, 1
      %p382 = por %p380, %p381
      %p384 = scmp.ne.s32.totalorder %s369, %s383
      %p385 = scmp.eq.s32.totalorder %s44, 0
      %p386 = por %p384, %p385
      %s388 = sadd.s32 %s387, 1
      %p391 = scmp.eq.s32.totalorder %s38, 1
      %p392 = scmp.ne.s32.totalorder %s387, %s389
      %p393 = scmp.eq.s32.totalorder %s38, 0
      %p394 = por %p392, %p393
      %p395 = scmp.ne.s32.totalorder %s387, %s389
      %p396 = scmp.eq.s32.totalorder %s43, 1
      %p397 = por %p395, %p396
      %p398 = scmp.ne.s32.totalorder %s389, %s390
      %p399 = scmp.eq.s32.totalorder %s43, 0
      %p400 = por %p398, %p399
      %p401 = scmp.ne.s32.totalorder %s389, %s390
      %p402 = scmp.eq.s32.totalorder %s44, 1
      %p403 = por %p401, %p402
      %p405 = scmp.ne.s32.totalorder %s390, %s404
      %p406 = scmp.eq.s32.totalorder %s44, 0
      %p407 = por %p405, %p406
      %s409 = sadd.s32 %s408, 1
      %p412 = scmp.eq.s32.totalorder %s38, 1
      %p413 = scmp.ne.s32.totalorder %s408, %s410
      %p414 = scmp.eq.s32.totalorder %s38, 0
      %p415 = por %p413, %p414
      %p416 = scmp.ne.s32.totalorder %s408, %s410
      %p417 = scmp.eq.s32.totalorder %s43, 1
      %p418 = por %p416, %p417
      %p419 = scmp.ne.s32.totalorder %s410, %s411
      %p420 = scmp.eq.s32.totalorder %s43, 0
      %p421 = por %p419, %p420
      %p422 = scmp.ne.s32.totalorder %s410, %s411
      %p423 = scmp.eq.s32.totalorder %s44, 1
      %p424 = por %p422, %p423
      %p426 = scmp.ne.s32.totalorder %s411, %s425
      %p427 = scmp.eq.s32.totalorder %s44, 0
      %p428 = por %p426, %p427
      %s430 = sadd.s32 %s429, 1
      %p433 = scmp.eq.s32.totalorder %s38, 1
      %p434 = scmp.ne.s32.totalorder %s429, %s431
      %p435 = scmp.eq.s32.totalorder %s38, 0
      %p436 = por %p434, %p435
      %p437 = scmp.ne.s32.totalorder %s429, %s431
      %p438 = scmp.eq.s32.totalorder %s43, 1
      %p439 = por %p437, %p438
      %p440 = scmp.ne.s32.totalorder %s431, %s432
      %p441 = scmp.eq.s32.totalorder %s43, 0
      %p442 = por %p440, %p441
      %p443 = scmp.ne.s32.totalorder %s431, %s432
      %p444 = scmp.eq.s32.totalorder %s44, 1
      %p445 = por %p443, %p444
      %p447 = scmp.ne.s32.totalorder %s432, %s446
      %p448 = scmp.eq.s32.totalorder %s44, 0
      %p449 = por %p447, %p448
      %s451 = sadd.s32 %s450, 1
      %p454 = scmp.eq.s32.totalorder %s38, 1
      %p455 = scmp.ne.s32.totalorder %s450, %s452
      %p456 = scmp.eq.s32.totalorder %s38, 0
      %p457 = por %p455, %p456
      %p458 = scmp.ne.s32.totalorder %s450, %s452
      %p459 = scmp.eq.s32.totalorder %s43, 1
      %p460 = por %p458, %p459
      %p461 = scmp.ne.s32.totalorder %s452, %s453
      %p462 = scmp.eq.s32.totalorder %s43, 0
      %p463 = por %p461, %p462
      %p464 = scmp.ne.s32.totalorder %s452, %s453
      %p465 = scmp.eq.s32.totalorder %s44, 1
      %p466 = por %p464, %p465
      %p468 = scmp.ne.s32.totalorder %s453, %s467
      %p469 = scmp.eq.s32.totalorder %s44, 0
      %p470 = por %p468, %p469
      %s471 = ssub.s32 %s38, %s45
      %p472 = scmp.eq.s32.totalorder %s471, 0
      %s474 = sadd.s32 %s473, 1
      %s475 = scalar_select %p472, %s473, %s474
      %p478 = pneg %p472
      %p479 = scmp.eq.s32.totalorder %s38, 1
      %p480 = por %p478, %p479
      %p481 = scmp.ne.s32.totalorder %s473, %s476
      %p482 = scmp.eq.s32.totalorder %s38, 0
      %p483 = por %p481, %p482
      %p484 = scmp.ne.s32.totalorder %s473, %s476
      %p485 = scmp.eq.s32.totalorder %s43, 1
      %p486 = por %p484, %p485
      %p487 = scmp.ne.s32.totalorder %s476, %s477
      %p488 = scmp.eq.s32.totalorder %s43, 0
      %p489 = por %p487, %p488
      %p490 = scmp.ne.s32.totalorder %s476, %s477
      %p491 = scmp.eq.s32.totalorder %s44, 1
      %p492 = por %p490, %p491
      %p494 = scmp.ne.s32.totalorder %s477, %s493
      %p495 = scmp.eq.s32.totalorder %s44, 0
      %p496 = por %p494, %p495
      %s497 = ssub.s32 %s38, %s45
      %p498 = scmp.eq.s32.totalorder %s497, 0
      %s500 = sadd.s32 %s499, 1
      %s501 = scalar_select %p498, %s499, %s500
      %p504 = pneg %p498
      %p505 = scmp.eq.s32.totalorder %s38, 1
      %p506 = por %p504, %p505
      %p507 = scmp.ne.s32.totalorder %s499, %s502
      %p508 = scmp.eq.s32.totalorder %s38, 0
      %p509 = por %p507, %p508
      %p510 = scmp.ne.s32.totalorder %s499, %s502
      %p511 = scmp.eq.s32.totalorder %s43, 1
      %p512 = por %p510, %p511
      %p513 = scmp.ne.s32.totalorder %s502, %s503
      %p514 = scmp.eq.s32.totalorder %s43, 0
      %p515 = por %p513, %p514
      %p516 = scmp.ne.s32.totalorder %s502, %s503
      %p517 = scmp.eq.s32.totalorder %s44, 1
      %p518 = por %p516, %p517
      %p520 = scmp.ne.s32.totalorder %s503, %s519
      %p521 = scmp.eq.s32.totalorder %s44, 0
      %p522 = por %p520, %p521
      %p523 = scmp.le.s32.totalorder 1, %s38
      %p524 = scmp.lt.s32.totalorder %s38, 3
      %p525 = pnand %p523, %p524
      %p526 = pneg %p525
      // Predicated region
      $region9: #{tpu_custom_call.1} parent=5 // pred_check
        _
      $region10: #{tpu_custom_call.1} parent=5 // pred_check_branch
        %528 = sbr.rel (%p525) target = $region12
      $region11: #{tpu_custom_call.1} parent=5 // pred_region
        %s529 = ssub.s32 %s38, 1
        // Predicated region
        $region13: #{tpu_custom_call.1} parent=11 // pred_check
          %p530 = pneg %p85
        $region14: #{tpu_custom_call.1} parent=11 // pred_check_branch
          %532 = sbr.rel (%p530) target = $region16
        $region15: #{tpu_custom_call.1} parent=11 // pred_region
          _
        $region16: #{tpu_custom_call.1} parent=11 // pred_fallthru
          _
        // Predicated region
        $region17: #{tpu_custom_call.1} parent=11 // pred_check
          %p533 = pneg %p106
        $region18: #{tpu_custom_call.1} parent=11 // pred_check_branch
          %535 = sbr.rel (%p533) target = $region20
        $region19: #{tpu_custom_call.1} parent=11 // pred_region
          _
        $region20: #{tpu_custom_call.1} parent=11 // pred_fallthru
          _
        // Predicated region
        $region21: #{tpu_custom_call.1} parent=11 // pred_check
          %p536 = pneg %p127
        $region22: #{tpu_custom_call.1} parent=11 // pred_check_branch
          %538 = sbr.rel (%p536) target = $region24
        $region23: #{tpu_custom_call.1} parent=11 // pred_region
          _
        $region24: #{tpu_custom_call.1} parent=11 // pred_fallthru
          _
        // Predicated region
        $region25: #{tpu_custom_call.1} parent=11 // pred_check
          %p539 = pneg %p148
        $region26: #{tpu_custom_call.1} parent=11 // pred_check_branch
          %541 = sbr.rel (%p539) target = $region28
        $region27: #{tpu_custom_call.1} parent=11 // pred_region
          _
        $region28: #{tpu_custom_call.1} parent=11 // pred_fallthru
          _
        // Predicated region
        $region29: #{tpu_custom_call.1} parent=11 // pred_check
          %p542 = pneg %p169
        $region30: #{tpu_custom_call.1} parent=11 // pred_check_branch
          %544 = sbr.rel (%p542) target = $region32
        $region31: #{tpu_custom_call.1} parent=11 // pred_region
          _
        $region32: #{tpu_custom_call.1} parent=11 // pred_fallthru
          _
        // Predicated region
        $region33: #{tpu_custom_call.1} parent=11 // pred_check
          %p545 = pneg %p190
        $region34: #{tpu_custom_call.1} parent=11 // pred_check_branch
          %547 = sbr.rel (%p545) target = $region36
        $region35: #{tpu_custom_call.1} parent=11 // pred_region
          _
        $region36: #{tpu_custom_call.1} parent=11 // pred_fallthru
          _
        // Predicated region
        $region37: #{tpu_custom_call.1} parent=11 // pred_check
          %p548 = pneg %p211
        $region38: #{tpu_custom_call.1} parent=11 // pred_check_branch
          %550 = sbr.rel (%p548) target = $region40
        $region39: #{tpu_custom_call.1} parent=11 // pred_region
          _
        $region40: #{tpu_custom_call.1} parent=11 // pred_fallthru
          _
        // Predicated region
        $region41: #{tpu_custom_call.1} parent=11 // pred_check
          %p551 = pneg %p232
        $region42: #{tpu_custom_call.1} parent=11 // pred_check_branch
          %553 = sbr.rel (%p551) target = $region44
        $region43: #{tpu_custom_call.1} parent=11 // pred_region
          _
        $region44: #{tpu_custom_call.1} parent=11 // pred_fallthru
          _
        // Predicated region
        $region45: #{tpu_custom_call.1} parent=11 // pred_check
          %p554 = pneg %p253
        $region46: #{tpu_custom_call.1} parent=11 // pred_check_branch
          %556 = sbr.rel (%p554) target = $region48
        $region47: #{tpu_custom_call.1} parent=11 // pred_region
          _
        $region48: #{tpu_custom_call.1} parent=11 // pred_fallthru
          _
        // Predicated region
        $region49: #{tpu_custom_call.1} parent=11 // pred_check
          %p557 = pneg %p274
        $region50: #{tpu_custom_call.1} parent=11 // pred_check_branch
          %559 = sbr.rel (%p557) target = $region52
        $region51: #{tpu_custom_call.1} parent=11 // pred_region
          _
        $region52: #{tpu_custom_call.1} parent=11 // pred_fallthru
          _
        // Predicated region
        $region53: #{tpu_custom_call.1} parent=11 // pred_check
          %p560 = pneg %p295
        $region54: #{tpu_custom_call.1} parent=11 // pred_check_branch
          %562 = sbr.rel (%p560) target = $region56
        $region55: #{tpu_custom_call.1} parent=11 // pred_region
          _
        $region56: #{tpu_custom_call.1} parent=11 // pred_fallthru
          _
        // Predicated region
        $region57: #{tpu_custom_call.1} parent=11 // pred_check
          %p563 = pneg %p316
        $region58: #{tpu_custom_call.1} parent=11 // pred_check_branch
          %565 = sbr.rel (%p563) target = $region60
        $region59: #{tpu_custom_call.1} parent=11 // pred_region
          %567 = vsyncadd [#allocation4], 0
          %s568 = sshll.u32 %s12, 4
          %s569 = int_to_ptr.hbm [resolvable:$true] %s568
          %s570 = sshll.u32 [#allocation3], 4
          %s571 = int_to_ptr.vmem [resolvable:$true] %s570
          %576 = dma.hbm_to_vmem [thread:$0]  %s569, 2048, %s571, [#allocation4], 128, 128, 8
        $region60: #{tpu_custom_call.1} parent=11 // pred_fallthru
          _
        // Predicated region
        $region61: #{tpu_custom_call.1} parent=11 // pred_check
          %p577 = pneg %p337
        $region62: #{tpu_custom_call.1} parent=11 // pred_check_branch
          %579 = sbr.rel (%p577) target = $region64
        $region63: #{tpu_custom_call.1} parent=11 // pred_region
          _
        $region64: #{tpu_custom_call.1} parent=11 // pred_fallthru
          _
        // Predicated region
        $region65: #{tpu_custom_call.1} parent=11 // pred_check
          %p580 = pneg %p358
        $region66: #{tpu_custom_call.1} parent=11 // pred_check_branch
          %582 = sbr.rel (%p580) target = $region68
        $region67: #{tpu_custom_call.1} parent=11 // pred_region
          %584 = vsyncadd [#allocation7], 0
          %s585 = sshll.u32 %s14, 4
          %s586 = int_to_ptr.hbm [resolvable:$true] %s585
          %s587 = sshll.u32 [#allocation6], 4
          %s588 = int_to_ptr.vmem [resolvable:$true] %s587
          %593 = dma.hbm_to_vmem [thread:$0]  %s586, 2048, %s588, [#allocation7], 128, 128, 8
        $region68: #{tpu_custom_call.1} parent=11 // pred_fallthru
          _
        // Predicated region
        $region69: #{tpu_custom_call.1} parent=11 // pred_check
          %p594 = pneg %p379
        $region70: #{tpu_custom_call.1} parent=11 // pred_check_branch
          %596 = sbr.rel (%p594) target = $region72
        $region71: #{tpu_custom_call.1} parent=11 // pred_region
          _
        $region72: #{tpu_custom_call.1} parent=11 // pred_fallthru
          _
        // Predicated region
        $region73: #{tpu_custom_call.1} parent=11 // pred_check
          %p597 = pneg %p400
        $region74: #{tpu_custom_call.1} parent=11 // pred_check_branch
          %599 = sbr.rel (%p597) target = $region76
        $region75: #{tpu_custom_call.1} parent=11 // pred_region
          %601 = vsyncadd [#allocation7], 0
          %s602 = sshll.u32 %s16, 4
          %s603 = int_to_ptr.hbm [resolvable:$true] %s602
          %s604 = sshll.u32 [#allocation8], 4
          %s605 = int_to_ptr.vmem [resolvable:$true] %s604
          %610 = dma.hbm_to_vmem [thread:$0]  %s603, 2048, %s605, [#allocation7], 128, 128, 8
        $region76: #{tpu_custom_call.1} parent=11 // pred_fallthru
          _
        // Predicated region
        $region77: #{tpu_custom_call.1} parent=11 // pred_check
          %p611 = pneg %p421
        $region78: #{tpu_custom_call.1} parent=11 // pred_check_branch
          %613 = sbr.rel (%p611) target = $region80
        $region79: #{tpu_custom_call.1} parent=11 // pred_region
          _
        $region80: #{tpu_custom_call.1} parent=11 // pred_fallthru
          _
        // Predicated region
        $region81: #{tpu_custom_call.1} parent=11 // pred_check
          %p614 = pneg %p442
        $region82: #{tpu_custom_call.1} parent=11 // pred_check_branch
          %616 = sbr.rel (%p614) target = $region84
        $region83: #{tpu_custom_call.1} parent=11 // pred_region
          _
        $region84: #{tpu_custom_call.1} parent=11 // pred_fallthru
          _
        // Predicated region
        $region85: #{tpu_custom_call.1} parent=11 // pred_check
          %p617 = pneg %p463
        $region86: #{tpu_custom_call.1} parent=11 // pred_check_branch
          %619 = sbr.rel (%p617) target = $region88
        $region87: #{tpu_custom_call.1} parent=11 // pred_region
          _
        $region88: #{tpu_custom_call.1} parent=11 // pred_fallthru
          _
      $region12: #{tpu_custom_call.1} parent=5 // pred_fallthru
        _
      %p620 = scmp.lt.s32.totalorder %s38, 2
      // Predicated region
      $region89: #{tpu_custom_call.1} parent=5 // pred_check
        %p621 = pneg %p620
      $region90: #{tpu_custom_call.1} parent=5 // pred_check_branch
        %623 = sbr.rel (%p621) target = $region92
      $region91: #{tpu_custom_call.1} parent=5 // pred_region
        // Predicated region
        $region93: #{tpu_custom_call.1} parent=91 // pred_check
          %p624 = pneg %p58
        $region94: #{tpu_custom_call.1} parent=91 // pred_check_branch
          %626 = sbr.rel (%p624) target = $region96
        $region95: #{tpu_custom_call.1} parent=91 // pred_region
          %s627 = smul.u32 32, %s38
          %p628 = scmp.lt.s32.totalorder %s627, 63
          %s629 = scalar_select %p628, %s627, 63
          %s630 = smul.addr %s629, 8
          %s631 = scalar_lea.vmem %s0, %s630
          %s632 = smul.u32 32, %s38
        $region96: #{tpu_custom_call.1} parent=91 // pred_fallthru
          _
      $region92: #{tpu_custom_call.1} parent=5 // pred_fallthru
        _
      %p633 = scmp.le.s32.totalorder 1, %s38
      %p634 = scmp.lt.s32.totalorder %s38, 3
      %p635 = pnand %p633, %p634
      %p636 = pneg %p635
      // Predicated region
      $region97: #{tpu_custom_call.1} parent=5 // pred_check
        _
      $region98: #{tpu_custom_call.1} parent=5 // pred_check_branch
        %638 = sbr.rel (%p635) target = $region100
      $region99: #{tpu_custom_call.1} parent=5 // pred_region
        %s639 = ssub.s32 %s38, 1
        // Predicated region
        $region101: #{tpu_custom_call.1} parent=99 // pred_check
          %p640 = pneg %p316
        $region102: #{tpu_custom_call.1} parent=99 // pred_check_branch
          %642 = sbr.rel (%p640) target = $region104
        $region103: #{tpu_custom_call.1} parent=99 // pred_region
          %644 = dma.done [#allocation4], 2048
        $region104: #{tpu_custom_call.1} parent=99 // pred_fallthru
          _
        // Predicated region
        $region105: #{tpu_custom_call.1} parent=99 // pred_check
          %p645 = pneg %p358
        $region106: #{tpu_custom_call.1} parent=99 // pred_check_branch
          %647 = sbr.rel (%p645) target = $region108
        $region107: #{tpu_custom_call.1} parent=99 // pred_region
          %649 = dma.done [#allocation7], 2048
        $region108: #{tpu_custom_call.1} parent=99 // pred_fallthru
          _
        // Predicated region
        $region109: #{tpu_custom_call.1} parent=99 // pred_check
          %p650 = pneg %p400
        $region110: #{tpu_custom_call.1} parent=99 // pred_check_branch
          %652 = sbr.rel (%p650) target = $region112
        $region111: #{tpu_custom_call.1} parent=99 // pred_region
          %654 = dma.done [#allocation7], 2048
        $region112: #{tpu_custom_call.1} parent=99 // pred_fallthru
          _
        %s655 = smul.u32 32, %s43
        %p656 = scmp.lt.s32.totalorder %s655, 63
        %s657 = scalar_select %p656, %s655, 63
        %s658 = smul.addr %s657, 8
        %s659 = scalar_lea.vmem %s0, %s658
        %p660 = pneg %p64
        %p661 = pneg %p61
        %p662 = pneg %p85
        %p663 = pneg %p82
        %p664 = pneg %p106
        %p665 = pneg %p103
        %p666 = pneg %p127
        %p667 = pneg %p124
        %p668 = pneg %p148
        %p669 = pneg %p145
        %p670 = pneg %p169
        %p671 = pneg %p166
        %p672 = pneg %p190
        %p673 = pneg %p187
        %p674 = pneg %p211
        %p675 = pneg %p208
        %p676 = pneg %p232
        %p677 = pneg %p229
        %p678 = pneg %p253
        %p679 = pneg %p250
        %p680 = pneg %p274
        %p681 = pneg %p271
        %p682 = pneg %p295
        %p683 = pneg %p292
        %p684 = pneg %p316
        %p685 = pneg %p313
        %p686 = pneg %p337
        %p687 = pneg %p334
        %p688 = pneg %p358
        %p689 = pneg %p355
        %p690 = pneg %p379
        %p691 = pneg %p376
        %p692 = pneg %p400
        %p693 = pneg %p397
        %p694 = pneg %p421
        %p695 = pneg %p418
        %p696 = pneg %p442
        %p697 = pneg %p439
        %p698 = pneg %p463
        %p699 = pneg %p460
        %p700 = pneg %p489
        %p701 = pneg %p486
        %s702 = sand.u32 %s476, 1
        %s703 = scalar_lea.sflag [#allocation5], %s702
        %s704 = sand.u32 %s476, 1
        %s705 = smul.addr %s704, 2
        %s706 = scalar_lea.vmem [#allocation9], %s705
        %p707 = pneg %p515
        %p708 = pneg %p512
        %s709 = sand.u32 %s502, 1
        %s710 = scalar_lea.sflag [#allocation11], %s709
        %s711 = sand.u32 %s502, 1
        %s712 = smul.addr %s711, 256
        %s713 = scalar_lea.vmem [#allocation10], %s712
        %s714 = smul.u32 32, %s43
        %p715 = scmp.lt.s32.totalorder %s714, 63
        %s716 = scalar_select %p715, %s714, 63
        %s717 = smul.addr %s716, 8
        %s718 = scalar_lea.vmem %s0, %s717
        %s719 = smul.u32 32, %s43
        %s720 = smul.u32 2, %s43
        %s721 = smul.u32 32, %s43
        %v722 = vld [vmem:[%s718] sm:$0xff]
        %v723 = vld [vmem:[%s718 + $0x8] sm:$0xff]
        %v724 = vld [vmem:[%s718 + $0x10] sm:$0xff]
        %v725 = vld [vmem:[%s718 + $0x18] sm:$0xff]
        %v726 = vld [vmem:[%s718 + $0x20] sm:$0xff]
        %v727 = vld [vmem:[%s718 + $0x28] sm:$0xff]
        %v728 = vld [vmem:[%s718 + $0x30] sm:$0xff]
        %v729 = vld [vmem:[%s718 + $0x38] sm:$0xff]
        %v730 = vld [vmem:[%s718 + $0x40] sm:$0xff]
        %v731 = vld [vmem:[%s718 + $0x48] sm:$0xff]
        %v732 = vld [vmem:[%s718 + $0x50] sm:$0xff]
        %v733 = vld [vmem:[%s718 + $0x58] sm:$0xff]
        %v734 = vld [vmem:[%s718 + $0x60] sm:$0xff]
        %v735 = vld [vmem:[%s718 + $0x68] sm:$0xff]
        %v736 = vld [vmem:[%s718 + $0x70] sm:$0xff]
        %v737 = vld [vmem:[%s718 + $0x78] sm:$0xff]
        %v738 = vld [vmem:[%s718 + $0x80] sm:$0xff]
        %v739 = vld [vmem:[%s718 + $0x88] sm:$0xff]
        %v740 = vld [vmem:[%s718 + $0x90] sm:$0xff]
        %v741 = vld [vmem:[%s718 + $0x98] sm:$0xff]
        %v742 = vld [vmem:[%s718 + $0xa0] sm:$0xff]
        %v743 = vld [vmem:[%s718 + $0xa8] sm:$0xff]
        %v744 = vld [vmem:[%s718 + $0xb0] sm:$0xff]
        %v745 = vld [vmem:[%s718 + $0xb8] sm:$0xff]
        %v746 = vld [vmem:[%s718 + $0xc0] sm:$0xff]
        %v747 = vld [vmem:[%s718 + $0xc8] sm:$0xff]
        %v748 = vld [vmem:[%s718 + $0xd0] sm:$0xff]
        %v749 = vld [vmem:[%s718 + $0xd8] sm:$0xff]
        %v750 = vld [vmem:[%s718 + $0xe0] sm:$0xff]
        %v751 = vld [vmem:[%s718 + $0xe8] sm:$0xff]
        %v752 = vld [vmem:[%s718 + $0xf0] sm:$0xff]
        %v753 = vld [vmem:[%s718 + $0xf8] sm:$0xff]
        %v754 = vld [vmem:[%s1] sm:$0xff]
        %v755 = vld [vmem:[%s2] sm:$0x1]
        %v757 = vperm.slane %v755, 0
        %vm759 = vcmask 64512
        %v761 = vsel %vm759, %v722, 0
        %v764 = vsel %vm759, %v723, 0
        %v767 = vsel %vm759, %v724, 0
        %v770 = vsel %vm759, %v725, 0
        %v773 = vsel %vm759, %v726, 0
        %v776 = vsel %vm759, %v727, 0
        %v779 = vsel %vm759, %v728, 0
        %v782 = vsel %vm759, %v729, 0
        %v785 = vsel %vm759, %v730, 0
        %v788 = vsel %vm759, %v731, 0
        %v791 = vsel %vm759, %v732, 0
        %v794 = vsel %vm759, %v733, 0
        %v797 = vsel %vm759, %v734, 0
        %v800 = vsel %vm759, %v735, 0
        %v803 = vsel %vm759, %v736, 0
        %v806 = vsel %vm759, %v737, 0
        %v809 = vsel %vm759, %v738, 0
        %v812 = vsel %vm759, %v739, 0
        %v815 = vsel %vm759, %v740, 0
        %v818 = vsel %vm759, %v741, 0
        %v821 = vsel %vm759, %v742, 0
        %v824 = vsel %vm759, %v743, 0
        %v827 = vsel %vm759, %v744, 0
        %v830 = vsel %vm759, %v745, 0
        %v833 = vsel %vm759, %v746, 0
        %v836 = vsel %vm759, %v747, 0
        %v839 = vsel %vm759, %v748, 0
        %v842 = vsel %vm759, %v749, 0
        %v845 = vsel %vm759, %v750, 0
        %v848 = vsel %vm759, %v751, 0
        %v851 = vsel %vm759, %v752, 0
        %v854 = vsel %vm759, %v753, 0
        %856 = vmatpush.msra.mxu0 0.0
        %857 = vmatpush.msra.mxu0 0.0
        %858 = vmatpush.msra.mxu0 0.0
        %859 = vmatpush.msra.mxu0 0.0
        %860 = vmatpush.msra.mxu0 0.0
        %861 = vmatpush.msra.mxu0 0.0
        %862 = vmatpush.msra.mxu0 0.0
        %863 = vmatpush.msra.mxu0 0.0
        %864 = vmatpush.msra.mxu0 0.0
        %865 = vmatpush.msra.mxu0 0.0
        %866 = vmatpush.msra.mxu0 0.0
        %867 = vmatpush.msra.mxu0 0.0
        %868 = vmatpush.msra.mxu0 0.0
        %869 = vmatpush.msra.mxu0 0.0
        %870 = vmatpush.msra.mxu0 0.0
        %871 = vmatpush.msra.mxu0 %v754
        %872 = vmatmul.f32.gmra.mxu0 %v761
        %v873 = vpop.f32.mrf.mxu0
        %v874 = vadd.f32 %v757, %v873
        %875 = vmatmul.f32.gmra.mxu0 %v764
        %v876 = vpop.f32.mrf.mxu0
        %v877 = vadd.f32 %v757, %v876
        %878 = vmatmul.f32.gmra.mxu0 %v767
        %v879 = vpop.f32.mrf.mxu0
        %v880 = vadd.f32 %v757, %v879
        %881 = vmatmul.f32.gmra.mxu0 %v770
        %v882 = vpop.f32.mrf.mxu0
        %v883 = vadd.f32 %v757, %v882
        %884 = vmatmul.f32.gmra.mxu0 %v773
        %v885 = vpop.f32.mrf.mxu0
        %v886 = vadd.f32 %v757, %v885
        %887 = vmatmul.f32.gmra.mxu0 %v776
        %v888 = vpop.f32.mrf.mxu0
        %v889 = vadd.f32 %v757, %v888
        %890 = vmatmul.f32.gmra.mxu0 %v779
        %v891 = vpop.f32.mrf.mxu0
        %v892 = vadd.f32 %v757, %v891
        %893 = vmatmul.f32.gmra.mxu0 %v782
        %v894 = vpop.f32.mrf.mxu0
        %v895 = vadd.f32 %v757, %v894
        %896 = vmatmul.f32.gmra.mxu0 %v785
        %v897 = vpop.f32.mrf.mxu0
        %v898 = vadd.f32 %v757, %v897
        %899 = vmatmul.f32.gmra.mxu0 %v788
        %v900 = vpop.f32.mrf.mxu0
        %v901 = vadd.f32 %v757, %v900
        %902 = vmatmul.f32.gmra.mxu0 %v791
        %v903 = vpop.f32.mrf.mxu0
        %v904 = vadd.f32 %v757, %v903
        %905 = vmatmul.f32.gmra.mxu0 %v794
        %v906 = vpop.f32.mrf.mxu0
        %v907 = vadd.f32 %v757, %v906
        %908 = vmatmul.f32.gmra.mxu0 %v797
        %v909 = vpop.f32.mrf.mxu0
        %v910 = vadd.f32 %v757, %v909
        %911 = vmatmul.f32.gmra.mxu0 %v800
        %v912 = vpop.f32.mrf.mxu0
        %v913 = vadd.f32 %v757, %v912
        %914 = vmatmul.f32.gmra.mxu0 %v803
        %v915 = vpop.f32.mrf.mxu0
        %v916 = vadd.f32 %v757, %v915
        %917 = vmatmul.f32.gmra.mxu0 %v806
        %v918 = vpop.f32.mrf.mxu0
        %v919 = vadd.f32 %v757, %v918
        %920 = vmatmul.f32.gmra.mxu0 %v809
        %v921 = vpop.f32.mrf.mxu0
        %v922 = vadd.f32 %v757, %v921
        %923 = vmatmul.f32.gmra.mxu0 %v812
        %v924 = vpop.f32.mrf.mxu0
        %v925 = vadd.f32 %v757, %v924
        %926 = vmatmul.f32.gmra.mxu0 %v815
        %v927 = vpop.f32.mrf.mxu0
        %v928 = vadd.f32 %v757, %v927
        %929 = vmatmul.f32.gmra.mxu0 %v818
        %v930 = vpop.f32.mrf.mxu0
        %v931 = vadd.f32 %v757, %v930
        %932 = vmatmul.f32.gmra.mxu0 %v821
        %v933 = vpop.f32.mrf.mxu0
        %v934 = vadd.f32 %v757, %v933
        %935 = vmatmul.f32.gmra.mxu0 %v824
        %v936 = vpop.f32.mrf.mxu0
        %v937 = vadd.f32 %v757, %v936
        %938 = vmatmul.f32.gmra.mxu0 %v827
        %v939 = vpop.f32.mrf.mxu0
        %v940 = vadd.f32 %v757, %v939
        %941 = vmatmul.f32.gmra.mxu0 %v830
        %v942 = vpop.f32.mrf.mxu0
        %v943 = vadd.f32 %v757, %v942
        %944 = vmatmul.f32.gmra.mxu0 %v833
        %v945 = vpop.f32.mrf.mxu0
        %v946 = vadd.f32 %v757, %v945
        %947 = vmatmul.f32.gmra.mxu0 %v836
        %v948 = vpop.f32.mrf.mxu0
        %v949 = vadd.f32 %v757, %v948
        %950 = vmatmul.f32.gmra.mxu0 %v839
        %v951 = vpop.f32.mrf.mxu0
        %v952 = vadd.f32 %v757, %v951
        %953 = vmatmul.f32.gmra.mxu0 %v842
        %v954 = vpop.f32.mrf.mxu0
        %v955 = vadd.f32 %v757, %v954
        %956 = vmatmul.f32.gmra.mxu0 %v845
        %v957 = vpop.f32.mrf.mxu0
        %v958 = vadd.f32 %v757, %v957
        %959 = vmatmul.f32.gmra.mxu0 %v848
        %v960 = vpop.f32.mrf.mxu0
        %v961 = vadd.f32 %v757, %v960
        %962 = vmatmul.f32.gmra.mxu0 %v851
        %v963 = vpop.f32.mrf.mxu0
        %v964 = vadd.f32 %v757, %v963
        %965 = vmatmul.f32.gmra.mxu0 %v854
        %v966 = vpop.f32.mrf.mxu0
        %v967 = vadd.f32 %v757, %v966
        %968 = vdwg.mxu0
        %v969 = vmax.f32 %v874, 0.0
        %v970 = vmax.f32 %v877, 0.0
        %v971 = vmax.f32 %v880, 0.0
        %v972 = vmax.f32 %v883, 0.0
        %v973 = vmax.f32 %v886, 0.0
        %v974 = vmax.f32 %v889, 0.0
        %v975 = vmax.f32 %v892, 0.0
        %v976 = vmax.f32 %v895, 0.0
        %v977 = vmax.f32 %v898, 0.0
        %v978 = vmax.f32 %v901, 0.0
        %v979 = vmax.f32 %v904, 0.0
        %v980 = vmax.f32 %v907, 0.0
        %v981 = vmax.f32 %v910, 0.0
        %v982 = vmax.f32 %v913, 0.0
        %v983 = vmax.f32 %v916, 0.0
        %v984 = vmax.f32 %v919, 0.0
        %v985 = vmax.f32 %v922, 0.0
        %v986 = vmax.f32 %v925, 0.0
        %v987 = vmax.f32 %v928, 0.0
        %v988 = vmax.f32 %v931, 0.0
        %v989 = vmax.f32 %v934, 0.0
        %v990 = vmax.f32 %v937, 0.0
        %v991 = vmax.f32 %v940, 0.0
        %v992 = vmax.f32 %v943, 0.0
        %v993 = vmax.f32 %v946, 0.0
        %v994 = vmax.f32 %v949, 0.0
        %v995 = vmax.f32 %v952, 0.0
        %v996 = vmax.f32 %v955, 0.0
        %v997 = vmax.f32 %v958, 0.0
        %v998 = vmax.f32 %v961, 0.0
        %v999 = vmax.f32 %v964, 0.0
        %v1000 = vmax.f32 %v967, 0.0
        %v1001 = vld [vmem:[%s3] sm:$0xff]
        %v1002 = vld [vmem:[%s3 + $0x8] sm:$0xff]
        %v1003 = vld [vmem:[%s3 + $0x10] sm:$0xff]
        %v1004 = vld [vmem:[%s3 + $0x18] sm:$0xff]
        %v1005 = vld [vmem:[%s3 + $0x20] sm:$0xff]
        %v1006 = vld [vmem:[%s3 + $0x28] sm:$0xff]
        %v1007 = vld [vmem:[%s3 + $0x30] sm:$0xff]
        %v1008 = vld [vmem:[%s3 + $0x38] sm:$0xff]
        %v1009 = vld [vmem:[%s3 + $0x40] sm:$0xff]
        %v1010 = vld [vmem:[%s3 + $0x48] sm:$0xff]
        %v1011 = vld [vmem:[%s3 + $0x50] sm:$0xff]
        %v1012 = vld [vmem:[%s3 + $0x58] sm:$0xff]
        %v1013 = vld [vmem:[%s3 + $0x60] sm:$0xff]
        %v1014 = vld [vmem:[%s3 + $0x68] sm:$0xff]
        %v1015 = vld [vmem:[%s3 + $0x70] sm:$0xff]
        %v1016 = vld [vmem:[%s3 + $0x78] sm:$0xff]
        %v1017 = vld [vmem:[%s4] sm:$0x1]
        %v1019 = vperm.slane %v1017, 0
        %1021 = vmatpush.msra.mxu0 %v1016
        %1022 = vmatpush.msra.mxu0 %v1015
        %1023 = vmatpush.msra.mxu0 %v1014
        %1024 = vmatpush.msra.mxu0 %v1013
        %1025 = vmatpush.msra.mxu0 %v1012
        %1026 = vmatpush.msra.mxu0 %v1011
        %1027 = vmatpush.msra.mxu0 %v1010
        %1028 = vmatpush.msra.mxu0 %v1009
        %1029 = vmatpush.msra.mxu0 %v1008
        %1030 = vmatpush.msra.mxu0 %v1007
        %1031 = vmatpush.msra.mxu0 %v1006
        %1032 = vmatpush.msra.mxu0 %v1005
        %1033 = vmatpush.msra.mxu0 %v1004
        %1034 = vmatpush.msra.mxu0 %v1003
        %1035 = vmatpush.msra.mxu0 %v1002
        %1036 = vmatpush.msra.mxu0 %v1001
        %1037 = vmatmul.f32.gmra.mxu0 %v969
        %v1038 = vpop.f32.mrf.mxu0
        %v1039 = vadd.f32 %v1019, %v1038
        %1040 = vmatmul.f32.gmra.mxu0 %v970
        %v1041 = vpop.f32.mrf.mxu0
        %v1042 = vadd.f32 %v1019, %v1041
        %1043 = vmatmul.f32.gmra.mxu0 %v971
        %v1044 = vpop.f32.mrf.mxu0
        %v1045 = vadd.f32 %v1019, %v1044
        %1046 = vmatmul.f32.gmra.mxu0 %v972
        %v1047 = vpop.f32.mrf.mxu0
        %v1048 = vadd.f32 %v1019, %v1047
        %1049 = vmatmul.f32.gmra.mxu0 %v973
        %v1050 = vpop.f32.mrf.mxu0
        %v1051 = vadd.f32 %v1019, %v1050
        %1052 = vmatmul.f32.gmra.mxu0 %v974
        %v1053 = vpop.f32.mrf.mxu0
        %v1054 = vadd.f32 %v1019, %v1053
        %1055 = vmatmul.f32.gmra.mxu0 %v975
        %v1056 = vpop.f32.mrf.mxu0
        %v1057 = vadd.f32 %v1019, %v1056
        %1058 = vmatmul.f32.gmra.mxu0 %v976
        %v1059 = vpop.f32.mrf.mxu0
        %v1060 = vadd.f32 %v1019, %v1059
        %1061 = vmatmul.f32.gmra.mxu0 %v977
        %v1062 = vpop.f32.mrf.mxu0
        %v1063 = vadd.f32 %v1019, %v1062
        %1064 = vmatmul.f32.gmra.mxu0 %v978
        %v1065 = vpop.f32.mrf.mxu0
        %v1066 = vadd.f32 %v1019, %v1065
        %1067 = vmatmul.f32.gmra.mxu0 %v979
        %v1068 = vpop.f32.mrf.mxu0
        %v1069 = vadd.f32 %v1019, %v1068
        %1070 = vmatmul.f32.gmra.mxu0 %v980
        %v1071 = vpop.f32.mrf.mxu0
        %v1072 = vadd.f32 %v1019, %v1071
        %1073 = vmatmul.f32.gmra.mxu0 %v981
        %v1074 = vpop.f32.mrf.mxu0
        %v1075 = vadd.f32 %v1019, %v1074
        %1076 = vmatmul.f32.gmra.mxu0 %v982
        %v1077 = vpop.f32.mrf.mxu0
        %v1078 = vadd.f32 %v1019, %v1077
        %1079 = vmatmul.f32.gmra.mxu0 %v983
        %v1080 = vpop.f32.mrf.mxu0
        %v1081 = vadd.f32 %v1019, %v1080
        %1082 = vmatmul.f32.gmra.mxu0 %v984
        %v1083 = vpop.f32.mrf.mxu0
        %v1084 = vadd.f32 %v1019, %v1083
        %1085 = vmatmul.f32.gmra.mxu0 %v985
        %v1086 = vpop.f32.mrf.mxu0
        %v1087 = vadd.f32 %v1019, %v1086
        %1088 = vmatmul.f32.gmra.mxu0 %v986
        %v1089 = vpop.f32.mrf.mxu0
        %v1090 = vadd.f32 %v1019, %v1089
        %1091 = vmatmul.f32.gmra.mxu0 %v987
        %v1092 = vpop.f32.mrf.mxu0
        %v1093 = vadd.f32 %v1019, %v1092
        %1094 = vmatmul.f32.gmra.mxu0 %v988
        %v1095 = vpop.f32.mrf.mxu0
        %v1096 = vadd.f32 %v1019, %v1095
        %1097 = vmatmul.f32.gmra.mxu0 %v989
        %v1098 = vpop.f32.mrf.mxu0
        %v1099 = vadd.f32 %v1019, %v1098
        %1100 = vmatmul.f32.gmra.mxu0 %v990
        %v1101 = vpop.f32.mrf.mxu0
        %v1102 = vadd.f32 %v1019, %v1101
        %1103 = vmatmul.f32.gmra.mxu0 %v991
        %v1104 = vpop.f32.mrf.mxu0
        %v1105 = vadd.f32 %v1019, %v1104
        %1106 = vmatmul.f32.gmra.mxu0 %v992
        %v1107 = vpop.f32.mrf.mxu0
        %v1108 = vadd.f32 %v1019, %v1107
        %1109 = vmatmul.f32.gmra.mxu0 %v993
        %v1110 = vpop.f32.mrf.mxu0
        %v1111 = vadd.f32 %v1019, %v1110
        %1112 = vmatmul.f32.gmra.mxu0 %v994
        %v1113 = vpop.f32.mrf.mxu0
        %v1114 = vadd.f32 %v1019, %v1113
        %1115 = vmatmul.f32.gmra.mxu0 %v995
        %v1116 = vpop.f32.mrf.mxu0
        %v1117 = vadd.f32 %v1019, %v1116
        %1118 = vmatmul.f32.gmra.mxu0 %v996
        %v1119 = vpop.f32.mrf.mxu0
        %v1120 = vadd.f32 %v1019, %v1119
        %1121 = vmatmul.f32.gmra.mxu0 %v997
        %v1122 = vpop.f32.mrf.mxu0
        %v1123 = vadd.f32 %v1019, %v1122
        %1124 = vmatmul.f32.gmra.mxu0 %v998
        %v1125 = vpop.f32.mrf.mxu0
        %v1126 = vadd.f32 %v1019, %v1125
        %1127 = vmatmul.f32.gmra.mxu0 %v999
        %v1128 = vpop.f32.mrf.mxu0
        %v1129 = vadd.f32 %v1019, %v1128
        %1130 = vmatmul.f32.gmra.mxu0 %v1000
        %v1131 = vpop.f32.mrf.mxu0
        %v1132 = vadd.f32 %v1019, %v1131
        %1133 = vdwg.mxu0
        %v1134 = vmax.f32 %v1039, 0.0
        %v1135 = vmax.f32 %v1042, 0.0
        %v1136 = vmax.f32 %v1045, 0.0
        %v1137 = vmax.f32 %v1048, 0.0
        %v1138 = vmax.f32 %v1051, 0.0
        %v1139 = vmax.f32 %v1054, 0.0
        %v1140 = vmax.f32 %v1057, 0.0
        %v1141 = vmax.f32 %v1060, 0.0
        %v1142 = vmax.f32 %v1063, 0.0
        %v1143 = vmax.f32 %v1066, 0.0
        %v1144 = vmax.f32 %v1069, 0.0
        %v1145 = vmax.f32 %v1072, 0.0
        %v1146 = vmax.f32 %v1075, 0.0
        %v1147 = vmax.f32 %v1078, 0.0
        %v1148 = vmax.f32 %v1081, 0.0
        %v1149 = vmax.f32 %v1084, 0.0
        %v1150 = vmax.f32 %v1087, 0.0
        %v1151 = vmax.f32 %v1090, 0.0
        %v1152 = vmax.f32 %v1093, 0.0
        %v1153 = vmax.f32 %v1096, 0.0
        %v1154 = vmax.f32 %v1099, 0.0
        %v1155 = vmax.f32 %v1102, 0.0
        %v1156 = vmax.f32 %v1105, 0.0
        %v1157 = vmax.f32 %v1108, 0.0
        %v1158 = vmax.f32 %v1111, 0.0
        %v1159 = vmax.f32 %v1114, 0.0
        %v1160 = vmax.f32 %v1117, 0.0
        %v1161 = vmax.f32 %v1120, 0.0
        %v1162 = vmax.f32 %v1123, 0.0
        %v1163 = vmax.f32 %v1126, 0.0
        %v1164 = vmax.f32 %v1129, 0.0
        %v1165 = vmax.f32 %v1132, 0.0
        %v1166 = vld [vmem:[%s5] sm:$0xff]
        %v1167 = vld [vmem:[%s5 + $0x8] sm:$0xff]
        %v1168 = vld [vmem:[%s5 + $0x10] sm:$0xff]
        %v1169 = vld [vmem:[%s5 + $0x18] sm:$0xff]
        %v1170 = vld [vmem:[%s5 + $0x20] sm:$0xff]
        %v1171 = vld [vmem:[%s5 + $0x28] sm:$0xff]
        %v1172 = vld [vmem:[%s5 + $0x30] sm:$0xff]
        %v1173 = vld [vmem:[%s5 + $0x38] sm:$0xff]
        %v1174 = vld [vmem:[%s5 + $0x40] sm:$0xff]
        %v1175 = vld [vmem:[%s5 + $0x48] sm:$0xff]
        %v1176 = vld [vmem:[%s5 + $0x50] sm:$0xff]
        %v1177 = vld [vmem:[%s5 + $0x58] sm:$0xff]
        %v1178 = vld [vmem:[%s5 + $0x60] sm:$0xff]
        %v1179 = vld [vmem:[%s5 + $0x68] sm:$0xff]
        %v1180 = vld [vmem:[%s5 + $0x70] sm:$0xff]
        %v1181 = vld [vmem:[%s5 + $0x78] sm:$0xff]
        %v1182 = vld [vmem:[%s6] sm:$0x1]
        %v1184 = vperm.slane %v1182, 0
        %1186 = vmatpush.msra.mxu0 %v1181
        %1187 = vmatpush.msra.mxu0 %v1180
        %1188 = vmatpush.msra.mxu0 %v1179
        %1189 = vmatpush.msra.mxu0 %v1178
        %1190 = vmatpush.msra.mxu0 %v1177
        %1191 = vmatpush.msra.mxu0 %v1176
        %1192 = vmatpush.msra.mxu0 %v1175
        %1193 = vmatpush.msra.mxu0 %v1174
        %1194 = vmatpush.msra.mxu0 %v1173
        %1195 = vmatpush.msra.mxu0 %v1172
        %1196 = vmatpush.msra.mxu0 %v1171
        %1197 = vmatpush.msra.mxu0 %v1170
        %1198 = vmatpush.msra.mxu0 %v1169
        %1199 = vmatpush.msra.mxu0 %v1168
        %1200 = vmatpush.msra.mxu0 %v1167
        %1201 = vmatpush.msra.mxu0 %v1166
        %1202 = vmatmul.f32.gmra.mxu0 %v1134
        %v1203 = vpop.f32.mrf.mxu0
        %v1204 = vadd.f32 %v1184, %v1203
        %1205 = vmatmul.f32.gmra.mxu0 %v1135
        %v1206 = vpop.f32.mrf.mxu0
        %v1207 = vadd.f32 %v1184, %v1206
        %1208 = vmatmul.f32.gmra.mxu0 %v1136
        %v1209 = vpop.f32.mrf.mxu0
        %v1210 = vadd.f32 %v1184, %v1209
        %1211 = vmatmul.f32.gmra.mxu0 %v1137
        %v1212 = vpop.f32.mrf.mxu0
        %v1213 = vadd.f32 %v1184, %v1212
        %1214 = vmatmul.f32.gmra.mxu0 %v1138
        %v1215 = vpop.f32.mrf.mxu0
        %v1216 = vadd.f32 %v1184, %v1215
        %1217 = vmatmul.f32.gmra.mxu0 %v1139
        %v1218 = vpop.f32.mrf.mxu0
        %v1219 = vadd.f32 %v1184, %v1218
        %1220 = vmatmul.f32.gmra.mxu0 %v1140
        %v1221 = vpop.f32.mrf.mxu0
        %v1222 = vadd.f32 %v1184, %v1221
        %1223 = vmatmul.f32.gmra.mxu0 %v1141
        %v1224 = vpop.f32.mrf.mxu0
        %v1225 = vadd.f32 %v1184, %v1224
        %1226 = vmatmul.f32.gmra.mxu0 %v1142
        %v1227 = vpop.f32.mrf.mxu0
        %v1228 = vadd.f32 %v1184, %v1227
        %1229 = vmatmul.f32.gmra.mxu0 %v1143
        %v1230 = vpop.f32.mrf.mxu0
        %v1231 = vadd.f32 %v1184, %v1230
        %1232 = vmatmul.f32.gmra.mxu0 %v1144
        %v1233 = vpop.f32.mrf.mxu0
        %v1234 = vadd.f32 %v1184, %v1233
        %1235 = vmatmul.f32.gmra.mxu0 %v1145
        %v1236 = vpop.f32.mrf.mxu0
        %v1237 = vadd.f32 %v1184, %v1236
        %1238 = vmatmul.f32.gmra.mxu0 %v1146
        %v1239 = vpop.f32.mrf.mxu0
        %v1240 = vadd.f32 %v1184, %v1239
        %1241 = vmatmul.f32.gmra.mxu0 %v1147
        %v1242 = vpop.f32.mrf.mxu0
        %v1243 = vadd.f32 %v1184, %v1242
        %1244 = vmatmul.f32.gmra.mxu0 %v1148
        %v1245 = vpop.f32.mrf.mxu0
        %v1246 = vadd.f32 %v1184, %v1245
        %1247 = vmatmul.f32.gmra.mxu0 %v1149
        %v1248 = vpop.f32.mrf.mxu0
        %v1249 = vadd.f32 %v1184, %v1248
        %1250 = vmatmul.f32.gmra.mxu0 %v1150
        %v1251 = vpop.f32.mrf.mxu0
        %v1252 = vadd.f32 %v1184, %v1251
        %1253 = vmatmul.f32.gmra.mxu0 %v1151
        %v1254 = vpop.f32.mrf.mxu0
        %v1255 = vadd.f32 %v1184, %v1254
        %1256 = vmatmul.f32.gmra.mxu0 %v1152
        %v1257 = vpop.f32.mrf.mxu0
        %v1258 = vadd.f32 %v1184, %v1257
        %1259 = vmatmul.f32.gmra.mxu0 %v1153
        %v1260 = vpop.f32.mrf.mxu0
        %v1261 = vadd.f32 %v1184, %v1260
        %1262 = vmatmul.f32.gmra.mxu0 %v1154
        %v1263 = vpop.f32.mrf.mxu0
        %v1264 = vadd.f32 %v1184, %v1263
        %1265 = vmatmul.f32.gmra.mxu0 %v1155
        %v1266 = vpop.f32.mrf.mxu0
        %v1267 = vadd.f32 %v1184, %v1266
        %1268 = vmatmul.f32.gmra.mxu0 %v1156
        %v1269 = vpop.f32.mrf.mxu0
        %v1270 = vadd.f32 %v1184, %v1269
        %1271 = vmatmul.f32.gmra.mxu0 %v1157
        %v1272 = vpop.f32.mrf.mxu0
        %v1273 = vadd.f32 %v1184, %v1272
        %1274 = vmatmul.f32.gmra.mxu0 %v1158
        %v1275 = vpop.f32.mrf.mxu0
        %v1276 = vadd.f32 %v1184, %v1275
        %1277 = vmatmul.f32.gmra.mxu0 %v1159
        %v1278 = vpop.f32.mrf.mxu0
        %v1279 = vadd.f32 %v1184, %v1278
        %1280 = vmatmul.f32.gmra.mxu0 %v1160
        %v1281 = vpop.f32.mrf.mxu0
        %v1282 = vadd.f32 %v1184, %v1281
        %1283 = vmatmul.f32.gmra.mxu0 %v1161
        %v1284 = vpop.f32.mrf.mxu0
        %v1285 = vadd.f32 %v1184, %v1284
        %1286 = vmatmul.f32.gmra.mxu0 %v1162
        %v1287 = vpop.f32.mrf.mxu0
        %v1288 = vadd.f32 %v1184, %v1287
        %1289 = vmatmul.f32.gmra.mxu0 %v1163
        %v1290 = vpop.f32.mrf.mxu0
        %v1291 = vadd.f32 %v1184, %v1290
        %1292 = vmatmul.f32.gmra.mxu0 %v1164
        %v1293 = vpop.f32.mrf.mxu0
        %v1294 = vadd.f32 %v1184, %v1293
        %1295 = vmatmul.f32.gmra.mxu0 %v1165
        %v1296 = vpop.f32.mrf.mxu0
        %v1297 = vadd.f32 %v1184, %v1296
        %1298 = vdwg.mxu0
        %v1299 = vmax.f32 %v1204, 0.0
        %v1300 = vmax.f32 %v1207, 0.0
        %v1301 = vmax.f32 %v1210, 0.0
        %v1302 = vmax.f32 %v1213, 0.0
        %v1303 = vmax.f32 %v1216, 0.0
        %v1304 = vmax.f32 %v1219, 0.0
        %v1305 = vmax.f32 %v1222, 0.0
        %v1306 = vmax.f32 %v1225, 0.0
        %v1307 = vmax.f32 %v1228, 0.0
        %v1308 = vmax.f32 %v1231, 0.0
        %v1309 = vmax.f32 %v1234, 0.0
        %v1310 = vmax.f32 %v1237, 0.0
        %v1311 = vmax.f32 %v1240, 0.0
        %v1312 = vmax.f32 %v1243, 0.0
        %v1313 = vmax.f32 %v1246, 0.0
        %v1314 = vmax.f32 %v1249, 0.0
        %v1315 = vmax.f32 %v1252, 0.0
        %v1316 = vmax.f32 %v1255, 0.0
        %v1317 = vmax.f32 %v1258, 0.0
        %v1318 = vmax.f32 %v1261, 0.0
        %v1319 = vmax.f32 %v1264, 0.0
        %v1320 = vmax.f32 %v1267, 0.0
        %v1321 = vmax.f32 %v1270, 0.0
        %v1322 = vmax.f32 %v1273, 0.0
        %v1323 = vmax.f32 %v1276, 0.0
        %v1324 = vmax.f32 %v1279, 0.0
        %v1325 = vmax.f32 %v1282, 0.0
        %v1326 = vmax.f32 %v1285, 0.0
        %v1327 = vmax.f32 %v1288, 0.0
        %v1328 = vmax.f32 %v1291, 0.0
        %v1329 = vmax.f32 %v1294, 0.0
        %v1330 = vmax.f32 %v1297, 0.0
        %v1331 = vld [vmem:[%s7] sm:$0xff]
        %v1332 = vld [vmem:[%s7 + $0x8] sm:$0xff]
        %v1333 = vld [vmem:[%s7 + $0x10] sm:$0xff]
        %v1334 = vld [vmem:[%s7 + $0x18] sm:$0xff]
        %v1335 = vld [vmem:[%s7 + $0x20] sm:$0xff]
        %v1336 = vld [vmem:[%s7 + $0x28] sm:$0xff]
        %v1337 = vld [vmem:[%s7 + $0x30] sm:$0xff]
        %v1338 = vld [vmem:[%s7 + $0x38] sm:$0xff]
        %v1339 = vld [vmem:[%s7 + $0x40] sm:$0xff]
        %v1340 = vld [vmem:[%s7 + $0x48] sm:$0xff]
        %v1341 = vld [vmem:[%s7 + $0x50] sm:$0xff]
        %v1342 = vld [vmem:[%s7 + $0x58] sm:$0xff]
        %v1343 = vld [vmem:[%s7 + $0x60] sm:$0xff]
        %v1344 = vld [vmem:[%s7 + $0x68] sm:$0xff]
        %v1345 = vld [vmem:[%s7 + $0x70] sm:$0xff]
        %v1346 = vld [vmem:[%s7 + $0x78] sm:$0xff]
        %v1347 = vld [vmem:[%s8] sm:$0x1]
        %v1349 = vperm.slane %v1347, 0
        %1351 = vmatpush.msra.mxu0 %v1346
        %1352 = vmatpush.msra.mxu0 %v1345
        %1353 = vmatpush.msra.mxu0 %v1344
        %1354 = vmatpush.msra.mxu0 %v1343
        %1355 = vmatpush.msra.mxu0 %v1342
        %1356 = vmatpush.msra.mxu0 %v1341
        %1357 = vmatpush.msra.mxu0 %v1340
        %1358 = vmatpush.msra.mxu0 %v1339
        %1359 = vmatpush.msra.mxu0 %v1338
        %1360 = vmatpush.msra.mxu0 %v1337
        %1361 = vmatpush.msra.mxu0 %v1336
        %1362 = vmatpush.msra.mxu0 %v1335
        %1363 = vmatpush.msra.mxu0 %v1334
        %1364 = vmatpush.msra.mxu0 %v1333
        %1365 = vmatpush.msra.mxu0 %v1332
        %1366 = vmatpush.msra.mxu0 %v1331
        %1367 = vmatmul.f32.gmra.mxu0 %v1299
        %v1368 = vpop.f32.mrf.mxu0
        %v1369 = vadd.f32 %v1349, %v1368
        %1370 = vmatmul.f32.gmra.mxu0 %v1300
        %v1371 = vpop.f32.mrf.mxu0
        %v1372 = vadd.f32 %v1349, %v1371
        %1373 = vmatmul.f32.gmra.mxu0 %v1301
        %v1374 = vpop.f32.mrf.mxu0
        %v1375 = vadd.f32 %v1349, %v1374
        %1376 = vmatmul.f32.gmra.mxu0 %v1302
        %v1377 = vpop.f32.mrf.mxu0
        %v1378 = vadd.f32 %v1349, %v1377
        %1379 = vmatmul.f32.gmra.mxu0 %v1303
        %v1380 = vpop.f32.mrf.mxu0
        %v1381 = vadd.f32 %v1349, %v1380
        %1382 = vmatmul.f32.gmra.mxu0 %v1304
        %v1383 = vpop.f32.mrf.mxu0
        %v1384 = vadd.f32 %v1349, %v1383
        %1385 = vmatmul.f32.gmra.mxu0 %v1305
        %v1386 = vpop.f32.mrf.mxu0
        %v1387 = vadd.f32 %v1349, %v1386
        %1388 = vmatmul.f32.gmra.mxu0 %v1306
        %v1389 = vpop.f32.mrf.mxu0
        %v1390 = vadd.f32 %v1349, %v1389
        %1391 = vmatmul.f32.gmra.mxu0 %v1307
        %v1392 = vpop.f32.mrf.mxu0
        %v1393 = vadd.f32 %v1349, %v1392
        %1394 = vmatmul.f32.gmra.mxu0 %v1308
        %v1395 = vpop.f32.mrf.mxu0
        %v1396 = vadd.f32 %v1349, %v1395
        %1397 = vmatmul.f32.gmra.mxu0 %v1309
        %v1398 = vpop.f32.mrf.mxu0
        %v1399 = vadd.f32 %v1349, %v1398
        %1400 = vmatmul.f32.gmra.mxu0 %v1310
        %v1401 = vpop.f32.mrf.mxu0
        %v1402 = vadd.f32 %v1349, %v1401
        %1403 = vmatmul.f32.gmra.mxu0 %v1311
        %v1404 = vpop.f32.mrf.mxu0
        %v1405 = vadd.f32 %v1349, %v1404
        %1406 = vmatmul.f32.gmra.mxu0 %v1312
        %v1407 = vpop.f32.mrf.mxu0
        %v1408 = vadd.f32 %v1349, %v1407
        %1409 = vmatmul.f32.gmra.mxu0 %v1313
        %v1410 = vpop.f32.mrf.mxu0
        %v1411 = vadd.f32 %v1349, %v1410
        %1412 = vmatmul.f32.gmra.mxu0 %v1314
        %v1413 = vpop.f32.mrf.mxu0
        %v1414 = vadd.f32 %v1349, %v1413
        %1415 = vmatmul.f32.gmra.mxu0 %v1315
        %v1416 = vpop.f32.mrf.mxu0
        %v1417 = vadd.f32 %v1349, %v1416
        %1418 = vmatmul.f32.gmra.mxu0 %v1316
        %v1419 = vpop.f32.mrf.mxu0
        %v1420 = vadd.f32 %v1349, %v1419
        %1421 = vmatmul.f32.gmra.mxu0 %v1317
        %v1422 = vpop.f32.mrf.mxu0
        %v1423 = vadd.f32 %v1349, %v1422
        %1424 = vmatmul.f32.gmra.mxu0 %v1318
        %v1425 = vpop.f32.mrf.mxu0
        %v1426 = vadd.f32 %v1349, %v1425
        %1427 = vmatmul.f32.gmra.mxu0 %v1319
        %v1428 = vpop.f32.mrf.mxu0
        %v1429 = vadd.f32 %v1349, %v1428
        %1430 = vmatmul.f32.gmra.mxu0 %v1320
        %v1431 = vpop.f32.mrf.mxu0
        %v1432 = vadd.f32 %v1349, %v1431
        %1433 = vmatmul.f32.gmra.mxu0 %v1321
        %v1434 = vpop.f32.mrf.mxu0
        %v1435 = vadd.f32 %v1349, %v1434
        %1436 = vmatmul.f32.gmra.mxu0 %v1322
        %v1437 = vpop.f32.mrf.mxu0
        %v1438 = vadd.f32 %v1349, %v1437
        %1439 = vmatmul.f32.gmra.mxu0 %v1323
        %v1440 = vpop.f32.mrf.mxu0
        %v1441 = vadd.f32 %v1349, %v1440
        %1442 = vmatmul.f32.gmra.mxu0 %v1324
        %v1443 = vpop.f32.mrf.mxu0
        %v1444 = vadd.f32 %v1349, %v1443
        %1445 = vmatmul.f32.gmra.mxu0 %v1325
        %v1446 = vpop.f32.mrf.mxu0
        %v1447 = vadd.f32 %v1349, %v1446
        %1448 = vmatmul.f32.gmra.mxu0 %v1326
        %v1449 = vpop.f32.mrf.mxu0
        %v1450 = vadd.f32 %v1349, %v1449
        %1451 = vmatmul.f32.gmra.mxu0 %v1327
        %v1452 = vpop.f32.mrf.mxu0
        %v1453 = vadd.f32 %v1349, %v1452
        %1454 = vmatmul.f32.gmra.mxu0 %v1328
        %v1455 = vpop.f32.mrf.mxu0
        %v1456 = vadd.f32 %v1349, %v1455
        %1457 = vmatmul.f32.gmra.mxu0 %v1329
        %v1458 = vpop.f32.mrf.mxu0
        %v1459 = vadd.f32 %v1349, %v1458
        %1460 = vmatmul.f32.gmra.mxu0 %v1330
        %v1461 = vpop.f32.mrf.mxu0
        %v1462 = vadd.f32 %v1349, %v1461
        %1463 = vdwg.mxu0
        %v1464 = vmax.f32 %v1369, 0.0
        %v1465 = vmax.f32 %v1372, 0.0
        %v1466 = vmax.f32 %v1375, 0.0
        %v1467 = vmax.f32 %v1378, 0.0
        %v1468 = vmax.f32 %v1381, 0.0
        %v1469 = vmax.f32 %v1384, 0.0
        %v1470 = vmax.f32 %v1387, 0.0
        %v1471 = vmax.f32 %v1390, 0.0
        %v1472 = vmax.f32 %v1393, 0.0
        %v1473 = vmax.f32 %v1396, 0.0
        %v1474 = vmax.f32 %v1399, 0.0
        %v1475 = vmax.f32 %v1402, 0.0
        %v1476 = vmax.f32 %v1405, 0.0
        %v1477 = vmax.f32 %v1408, 0.0
        %v1478 = vmax.f32 %v1411, 0.0
        %v1479 = vmax.f32 %v1414, 0.0
        %v1480 = vmax.f32 %v1417, 0.0
        %v1481 = vmax.f32 %v1420, 0.0
        %v1482 = vmax.f32 %v1423, 0.0
        %v1483 = vmax.f32 %v1426, 0.0
        %v1484 = vmax.f32 %v1429, 0.0
        %v1485 = vmax.f32 %v1432, 0.0
        %v1486 = vmax.f32 %v1435, 0.0
        %v1487 = vmax.f32 %v1438, 0.0
        %v1488 = vmax.f32 %v1441, 0.0
        %v1489 = vmax.f32 %v1444, 0.0
        %v1490 = vmax.f32 %v1447, 0.0
        %v1491 = vmax.f32 %v1450, 0.0
        %v1492 = vmax.f32 %v1453, 0.0
        %v1493 = vmax.f32 %v1456, 0.0
        %v1494 = vmax.f32 %v1459, 0.0
        %v1495 = vmax.f32 %v1462, 0.0
        %v1496 = vld [vmem:[%s9] sm:$0xff]
        %v1497 = vld [vmem:[%s9 + $0x8] sm:$0xff]
        %v1498 = vld [vmem:[%s9 + $0x10] sm:$0xff]
        %v1499 = vld [vmem:[%s9 + $0x18] sm:$0xff]
        %v1500 = vld [vmem:[%s9 + $0x20] sm:$0xff]
        %v1501 = vld [vmem:[%s9 + $0x28] sm:$0xff]
        %v1502 = vld [vmem:[%s9 + $0x30] sm:$0xff]
        %v1503 = vld [vmem:[%s9 + $0x38] sm:$0xff]
        %v1504 = vld [vmem:[%s9 + $0x40] sm:$0xff]
        %v1505 = vld [vmem:[%s9 + $0x48] sm:$0xff]
        %v1506 = vld [vmem:[%s9 + $0x50] sm:$0xff]
        %v1507 = vld [vmem:[%s9 + $0x58] sm:$0xff]
        %v1508 = vld [vmem:[%s9 + $0x60] sm:$0xff]
        %v1509 = vld [vmem:[%s9 + $0x68] sm:$0xff]
        %v1510 = vld [vmem:[%s9 + $0x70] sm:$0xff]
        %v1511 = vld [vmem:[%s9 + $0x78] sm:$0xff]
        %v1512 = vld [vmem:[%s10] sm:$0xff]
        %1513 = vmatpush.msra.mxu0 0.0
        %1514 = vmatpush.msra.mxu0 0.0
        %1515 = vmatpush.msra.mxu0 0.0
        %1516 = vmatpush.msra.mxu0 0.0
        %1517 = vmatpush.msra.mxu0 0.0
        %1518 = vmatpush.msra.mxu0 0.0
        %1519 = vmatpush.msra.mxu0 0.0
        %1520 = vmatpush.msra.mxu0 0.0
        %1521 = vmatpush.msra.mxu0 0.0
        %1522 = vmatpush.msra.mxu0 0.0
        %1523 = vmatpush.msra.mxu0 0.0
        %1524 = vmatpush.msra.mxu0 0.0
        %1525 = vmatpush.msra.mxu0 0.0
        %1526 = vmatpush.msra.mxu0 0.0
        %1527 = vmatpush.msra.mxu0 0.0
        %1528 = vmatpush.msra.mxu0 %v1512
        %1529 = vmatmul.f32.gmra.mxu0 %v761
        %v1530 = vpop.f32.mrf.mxu0
        %v1531 = vadd.f32 0.0, %v1530
        %1532 = vmatmul.f32.gmra.mxu0 %v764
        %v1533 = vpop.f32.mrf.mxu0
        %v1534 = vadd.f32 0.0, %v1533
        %1535 = vmatmul.f32.gmra.mxu0 %v767
        %v1536 = vpop.f32.mrf.mxu0
        %v1537 = vadd.f32 0.0, %v1536
        %1538 = vmatmul.f32.gmra.mxu0 %v770
        %v1539 = vpop.f32.mrf.mxu0
        %v1540 = vadd.f32 0.0, %v1539
        %1541 = vmatmul.f32.gmra.mxu0 %v773
        %v1542 = vpop.f32.mrf.mxu0
        %v1543 = vadd.f32 0.0, %v1542
        %1544 = vmatmul.f32.gmra.mxu0 %v776
        %v1545 = vpop.f32.mrf.mxu0
        %v1546 = vadd.f32 0.0, %v1545
        %1547 = vmatmul.f32.gmra.mxu0 %v779
        %v1548 = vpop.f32.mrf.mxu0
        %v1549 = vadd.f32 0.0, %v1548
        %1550 = vmatmul.f32.gmra.mxu0 %v782
        %v1551 = vpop.f32.mrf.mxu0
        %v1552 = vadd.f32 0.0, %v1551
        %1553 = vmatmul.f32.gmra.mxu0 %v785
        %v1554 = vpop.f32.mrf.mxu0
        %v1555 = vadd.f32 0.0, %v1554
        %1556 = vmatmul.f32.gmra.mxu0 %v788
        %v1557 = vpop.f32.mrf.mxu0
        %v1558 = vadd.f32 0.0, %v1557
        %1559 = vmatmul.f32.gmra.mxu0 %v791
        %v1560 = vpop.f32.mrf.mxu0
        %v1561 = vadd.f32 0.0, %v1560
        %1562 = vmatmul.f32.gmra.mxu0 %v794
        %v1563 = vpop.f32.mrf.mxu0
        %v1564 = vadd.f32 0.0, %v1563
        %1565 = vmatmul.f32.gmra.mxu0 %v797
        %v1566 = vpop.f32.mrf.mxu0
        %v1567 = vadd.f32 0.0, %v1566
        %1568 = vmatmul.f32.gmra.mxu0 %v800
        %v1569 = vpop.f32.mrf.mxu0
        %v1570 = vadd.f32 0.0, %v1569
        %1571 = vmatmul.f32.gmra.mxu0 %v803
        %v1572 = vpop.f32.mrf.mxu0
        %v1573 = vadd.f32 0.0, %v1572
        %1574 = vmatmul.f32.gmra.mxu0 %v806
        %v1575 = vpop.f32.mrf.mxu0
        %v1576 = vadd.f32 0.0, %v1575
        %1577 = vmatmul.f32.gmra.mxu0 %v809
        %v1578 = vpop.f32.mrf.mxu0
        %v1579 = vadd.f32 0.0, %v1578
        %1580 = vmatmul.f32.gmra.mxu0 %v812
        %v1581 = vpop.f32.mrf.mxu0
        %v1582 = vadd.f32 0.0, %v1581
        %1583 = vmatmul.f32.gmra.mxu0 %v815
        %v1584 = vpop.f32.mrf.mxu0
        %v1585 = vadd.f32 0.0, %v1584
        %1586 = vmatmul.f32.gmra.mxu0 %v818
        %v1587 = vpop.f32.mrf.mxu0
        %v1588 = vadd.f32 0.0, %v1587
        %1589 = vmatmul.f32.gmra.mxu0 %v821
        %v1590 = vpop.f32.mrf.mxu0
        %v1591 = vadd.f32 0.0, %v1590
        %1592 = vmatmul.f32.gmra.mxu0 %v824
        %v1593 = vpop.f32.mrf.mxu0
        %v1594 = vadd.f32 0.0, %v1593
        %1595 = vmatmul.f32.gmra.mxu0 %v827
        %v1596 = vpop.f32.mrf.mxu0
        %v1597 = vadd.f32 0.0, %v1596
        %1598 = vmatmul.f32.gmra.mxu0 %v830
        %v1599 = vpop.f32.mrf.mxu0
        %v1600 = vadd.f32 0.0, %v1599
        %1601 = vmatmul.f32.gmra.mxu0 %v833
        %v1602 = vpop.f32.mrf.mxu0
        %v1603 = vadd.f32 0.0, %v1602
        %1604 = vmatmul.f32.gmra.mxu0 %v836
        %v1605 = vpop.f32.mrf.mxu0
        %v1606 = vadd.f32 0.0, %v1605
        %1607 = vmatmul.f32.gmra.mxu0 %v839
        %v1608 = vpop.f32.mrf.mxu0
        %v1609 = vadd.f32 0.0, %v1608
        %1610 = vmatmul.f32.gmra.mxu0 %v842
        %v1611 = vpop.f32.mrf.mxu0
        %v1612 = vadd.f32 0.0, %v1611
        %1613 = vmatmul.f32.gmra.mxu0 %v845
        %v1614 = vpop.f32.mrf.mxu0
        %v1615 = vadd.f32 0.0, %v1614
        %1616 = vmatmul.f32.gmra.mxu0 %v848
        %v1617 = vpop.f32.mrf.mxu0
        %v1618 = vadd.f32 0.0, %v1617
        %1619 = vmatmul.f32.gmra.mxu0 %v851
        %v1620 = vpop.f32.mrf.mxu0
        %v1621 = vadd.f32 0.0, %v1620
        %1622 = vmatmul.f32.gmra.mxu0 %v854
        %v1623 = vpop.f32.mrf.mxu0
        %v1624 = vadd.f32 0.0, %v1623
        %1625 = vdwg.mxu0
        %1626 = vmatpush.msra.mxu0 %v1511
        %1627 = vmatpush.msra.mxu0 %v1510
        %1628 = vmatpush.msra.mxu0 %v1509
        %1629 = vmatpush.msra.mxu0 %v1508
        %1630 = vmatpush.msra.mxu0 %v1507
        %1631 = vmatpush.msra.mxu0 %v1506
        %1632 = vmatpush.msra.mxu0 %v1505
        %1633 = vmatpush.msra.mxu0 %v1504
        %1634 = vmatpush.msra.mxu0 %v1503
        %1635 = vmatpush.msra.mxu0 %v1502
        %1636 = vmatpush.msra.mxu0 %v1501
        %1637 = vmatpush.msra.mxu0 %v1500
        %1638 = vmatpush.msra.mxu0 %v1499
        %1639 = vmatpush.msra.mxu0 %v1498
        %1640 = vmatpush.msra.mxu0 %v1497
        %1641 = vmatpush.msra.mxu0 %v1496
        %1642 = vmatmul.f32.gmra.mxu0 %v1464
        %v1643 = vpop.f32.mrf.mxu0
        %v1644 = vadd.f32 %v1531, %v1643
        %1645 = vmatmul.f32.gmra.mxu0 %v1465
        %v1646 = vpop.f32.mrf.mxu0
        %v1647 = vadd.f32 %v1534, %v1646
        %1648 = vmatmul.f32.gmra.mxu0 %v1466
        %v1649 = vpop.f32.mrf.mxu0
        %v1650 = vadd.f32 %v1537, %v1649
        %1651 = vmatmul.f32.gmra.mxu0 %v1467
        %v1652 = vpop.f32.mrf.mxu0
        %v1653 = vadd.f32 %v1540, %v1652
        %1654 = vmatmul.f32.gmra.mxu0 %v1468
        %v1655 = vpop.f32.mrf.mxu0
        %v1656 = vadd.f32 %v1543, %v1655
        %1657 = vmatmul.f32.gmra.mxu0 %v1469
        %v1658 = vpop.f32.mrf.mxu0
        %v1659 = vadd.f32 %v1546, %v1658
        %1660 = vmatmul.f32.gmra.mxu0 %v1470
        %v1661 = vpop.f32.mrf.mxu0
        %v1662 = vadd.f32 %v1549, %v1661
        %1663 = vmatmul.f32.gmra.mxu0 %v1471
        %v1664 = vpop.f32.mrf.mxu0
        %v1665 = vadd.f32 %v1552, %v1664
        %1666 = vmatmul.f32.gmra.mxu0 %v1472
        %v1667 = vpop.f32.mrf.mxu0
        %v1668 = vadd.f32 %v1555, %v1667
        %1669 = vmatmul.f32.gmra.mxu0 %v1473
        %v1670 = vpop.f32.mrf.mxu0
        %v1671 = vadd.f32 %v1558, %v1670
        %1672 = vmatmul.f32.gmra.mxu0 %v1474
        %v1673 = vpop.f32.mrf.mxu0
        %v1674 = vadd.f32 %v1561, %v1673
        %1675 = vmatmul.f32.gmra.mxu0 %v1475
        %v1676 = vpop.f32.mrf.mxu0
        %v1677 = vadd.f32 %v1564, %v1676
        %1678 = vmatmul.f32.gmra.mxu0 %v1476
        %v1679 = vpop.f32.mrf.mxu0
        %v1680 = vadd.f32 %v1567, %v1679
        %1681 = vmatmul.f32.gmra.mxu0 %v1477
        %v1682 = vpop.f32.mrf.mxu0
        %v1683 = vadd.f32 %v1570, %v1682
        %1684 = vmatmul.f32.gmra.mxu0 %v1478
        %v1685 = vpop.f32.mrf.mxu0
        %v1686 = vadd.f32 %v1573, %v1685
        %1687 = vmatmul.f32.gmra.mxu0 %v1479
        %v1688 = vpop.f32.mrf.mxu0
        %v1689 = vadd.f32 %v1576, %v1688
        %1690 = vmatmul.f32.gmra.mxu0 %v1480
        %v1691 = vpop.f32.mrf.mxu0
        %v1692 = vadd.f32 %v1579, %v1691
        %1693 = vmatmul.f32.gmra.mxu0 %v1481
        %v1694 = vpop.f32.mrf.mxu0
        %v1695 = vadd.f32 %v1582, %v1694
        %1696 = vmatmul.f32.gmra.mxu0 %v1482
        %v1697 = vpop.f32.mrf.mxu0
        %v1698 = vadd.f32 %v1585, %v1697
        %1699 = vmatmul.f32.gmra.mxu0 %v1483
        %v1700 = vpop.f32.mrf.mxu0
        %v1701 = vadd.f32 %v1588, %v1700
        %1702 = vmatmul.f32.gmra.mxu0 %v1484
        %v1703 = vpop.f32.mrf.mxu0
        %v1704 = vadd.f32 %v1591, %v1703
        %1705 = vmatmul.f32.gmra.mxu0 %v1485
        %v1706 = vpop.f32.mrf.mxu0
        %v1707 = vadd.f32 %v1594, %v1706
        %1708 = vmatmul.f32.gmra.mxu0 %v1486
        %v1709 = vpop.f32.mrf.mxu0
        %v1710 = vadd.f32 %v1597, %v1709
        %1711 = vmatmul.f32.gmra.mxu0 %v1487
        %v1712 = vpop.f32.mrf.mxu0
        %v1713 = vadd.f32 %v1600, %v1712
        %1714 = vmatmul.f32.gmra.mxu0 %v1488
        %v1715 = vpop.f32.mrf.mxu0
        %v1716 = vadd.f32 %v1603, %v1715
        %1717 = vmatmul.f32.gmra.mxu0 %v1489
        %v1718 = vpop.f32.mrf.mxu0
        %v1719 = vadd.f32 %v1606, %v1718
        %1720 = vmatmul.f32.gmra.mxu0 %v1490
        %v1721 = vpop.f32.mrf.mxu0
        %v1722 = vadd.f32 %v1609, %v1721
        %1723 = vmatmul.f32.gmra.mxu0 %v1491
        %v1724 = vpop.f32.mrf.mxu0
        %v1725 = vadd.f32 %v1612, %v1724
        %1726 = vmatmul.f32.gmra.mxu0 %v1492
        %v1727 = vpop.f32.mrf.mxu0
        %v1728 = vadd.f32 %v1615, %v1727
        %1729 = vmatmul.f32.gmra.mxu0 %v1493
        %v1730 = vpop.f32.mrf.mxu0
        %v1731 = vadd.f32 %v1618, %v1730
        %1732 = vmatmul.f32.gmra.mxu0 %v1494
        %v1733 = vpop.f32.mrf.mxu0
        %v1734 = vadd.f32 %v1621, %v1733
        %1735 = vmatmul.f32.gmra.mxu0 %v1495
        %v1736 = vpop.f32.mrf.mxu0
        %v1737 = vadd.f32 %v1624, %v1736
        %1738 = vdwg.mxu0
        %v1739 = vld [vmem:[%s11] sm:$0x1]
        %v1741 = vperm.slane %v1739, 0
        %v1743 = vadd.f32 %v1644, %v1741
        %v1744 = vadd.f32 %v1647, %v1741
        %v1745 = vadd.f32 %v1650, %v1741
        %v1746 = vadd.f32 %v1653, %v1741
        %v1747 = vadd.f32 %v1656, %v1741
        %v1748 = vadd.f32 %v1659, %v1741
        %v1749 = vadd.f32 %v1662, %v1741
        %v1750 = vadd.f32 %v1665, %v1741
        %v1751 = vadd.f32 %v1668, %v1741
        %v1752 = vadd.f32 %v1671, %v1741
        %v1753 = vadd.f32 %v1674, %v1741
        %v1754 = vadd.f32 %v1677, %v1741
        %v1755 = vadd.f32 %v1680, %v1741
        %v1756 = vadd.f32 %v1683, %v1741
        %v1757 = vadd.f32 %v1686, %v1741
        %v1758 = vadd.f32 %v1689, %v1741
        %v1759 = vadd.f32 %v1692, %v1741
        %v1760 = vadd.f32 %v1695, %v1741
        %v1761 = vadd.f32 %v1698, %v1741
        %v1762 = vadd.f32 %v1701, %v1741
        %v1763 = vadd.f32 %v1704, %v1741
        %v1764 = vadd.f32 %v1707, %v1741
        %v1765 = vadd.f32 %v1710, %v1741
        %v1766 = vadd.f32 %v1713, %v1741
        %v1767 = vadd.f32 %v1716, %v1741
        %v1768 = vadd.f32 %v1719, %v1741
        %v1769 = vadd.f32 %v1722, %v1741
        %v1770 = vadd.f32 %v1725, %v1741
        %v1771 = vadd.f32 %v1728, %v1741
        %v1772 = vadd.f32 %v1731, %v1741
        %v1773 = vadd.f32 %v1734, %v1741
        %v1774 = vadd.f32 %v1737, %v1741
        %v1775 = vmax.f32 %v1743, 0.0
        %v1776 = vmax.f32 %v1744, 0.0
        %v1777 = vmax.f32 %v1745, 0.0
        %v1778 = vmax.f32 %v1746, 0.0
        %v1779 = vmax.f32 %v1747, 0.0
        %v1780 = vmax.f32 %v1748, 0.0
        %v1781 = vmax.f32 %v1749, 0.0
        %v1782 = vmax.f32 %v1750, 0.0
        %v1783 = vmax.f32 %v1751, 0.0
        %v1784 = vmax.f32 %v1752, 0.0
        %v1785 = vmax.f32 %v1753, 0.0
        %v1786 = vmax.f32 %v1754, 0.0
        %v1787 = vmax.f32 %v1755, 0.0
        %v1788 = vmax.f32 %v1756, 0.0
        %v1789 = vmax.f32 %v1757, 0.0
        %v1790 = vmax.f32 %v1758, 0.0
        %v1791 = vmax.f32 %v1759, 0.0
        %v1792 = vmax.f32 %v1760, 0.0
        %v1793 = vmax.f32 %v1761, 0.0
        %v1794 = vmax.f32 %v1762, 0.0
        %v1795 = vmax.f32 %v1763, 0.0
        %v1796 = vmax.f32 %v1764, 0.0
        %v1797 = vmax.f32 %v1765, 0.0
        %v1798 = vmax.f32 %v1766, 0.0
        %v1799 = vmax.f32 %v1767, 0.0
        %v1800 = vmax.f32 %v1768, 0.0
        %v1801 = vmax.f32 %v1769, 0.0
        %v1802 = vmax.f32 %v1770, 0.0
        %v1803 = vmax.f32 %v1771, 0.0
        %v1804 = vmax.f32 %v1772, 0.0
        %v1805 = vmax.f32 %v1773, 0.0
        %v1806 = vmax.f32 %v1774, 0.0
        %v1807 = vld [vmem:[#allocation3] sm:$0xff]
        %v1808 = vld [vmem:[#allocation3 + $0x8] sm:$0xff]
        %v1809 = vld [vmem:[#allocation3 + $0x10] sm:$0xff]
        %v1810 = vld [vmem:[#allocation3 + $0x18] sm:$0xff]
        %v1811 = vld [vmem:[#allocation3 + $0x20] sm:$0xff]
        %v1812 = vld [vmem:[#allocation3 + $0x28] sm:$0xff]
        %v1813 = vld [vmem:[#allocation3 + $0x30] sm:$0xff]
        %v1814 = vld [vmem:[#allocation3 + $0x38] sm:$0xff]
        %v1815 = vld [vmem:[#allocation3 + $0x40] sm:$0xff]
        %v1816 = vld [vmem:[#allocation3 + $0x48] sm:$0xff]
        %v1817 = vld [vmem:[#allocation3 + $0x50] sm:$0xff]
        %v1818 = vld [vmem:[#allocation3 + $0x58] sm:$0xff]
        %v1819 = vld [vmem:[#allocation3 + $0x60] sm:$0xff]
        %v1820 = vld [vmem:[#allocation3 + $0x68] sm:$0xff]
        %v1821 = vld [vmem:[#allocation3 + $0x70] sm:$0xff]
        %v1822 = vld [vmem:[#allocation3 + $0x78] sm:$0xff]
        %v1823 = vld [vmem:[%s13] sm:$0x1]
        %v1825 = vperm.slane %v1823, 0
        %1827 = vmatpush.msra.mxu0 %v1822
        %1828 = vmatpush.msra.mxu0 %v1821
        %1829 = vmatpush.msra.mxu0 %v1820
        %1830 = vmatpush.msra.mxu0 %v1819
        %1831 = vmatpush.msra.mxu0 %v1818
        %1832 = vmatpush.msra.mxu0 %v1817
        %1833 = vmatpush.msra.mxu0 %v1816
        %1834 = vmatpush.msra.mxu0 %v1815
        %1835 = vmatpush.msra.mxu0 %v1814
        %1836 = vmatpush.msra.mxu0 %v1813
        %1837 = vmatpush.msra.mxu0 %v1812
        %1838 = vmatpush.msra.mxu0 %v1811
        %1839 = vmatpush.msra.mxu0 %v1810
        %1840 = vmatpush.msra.mxu0 %v1809
        %1841 = vmatpush.msra.mxu0 %v1808
        %1842 = vmatpush.msra.mxu0 %v1807
        %1843 = vmatmul.f32.gmra.mxu0 %v1775
        %v1844 = vpop.f32.mrf.mxu0
        %v1845 = vadd.f32 %v1825, %v1844
        %1846 = vmatmul.f32.gmra.mxu0 %v1776
        %v1847 = vpop.f32.mrf.mxu0
        %v1848 = vadd.f32 %v1825, %v1847
        %1849 = vmatmul.f32.gmra.mxu0 %v1777
        %v1850 = vpop.f32.mrf.mxu0
        %v1851 = vadd.f32 %v1825, %v1850
        %1852 = vmatmul.f32.gmra.mxu0 %v1778
        %v1853 = vpop.f32.mrf.mxu0
        %v1854 = vadd.f32 %v1825, %v1853
        %1855 = vmatmul.f32.gmra.mxu0 %v1779
        %v1856 = vpop.f32.mrf.mxu0
        %v1857 = vadd.f32 %v1825, %v1856
        %1858 = vmatmul.f32.gmra.mxu0 %v1780
        %v1859 = vpop.f32.mrf.mxu0
        %v1860 = vadd.f32 %v1825, %v1859
        %1861 = vmatmul.f32.gmra.mxu0 %v1781
        %v1862 = vpop.f32.mrf.mxu0
        %v1863 = vadd.f32 %v1825, %v1862
        %1864 = vmatmul.f32.gmra.mxu0 %v1782
        %v1865 = vpop.f32.mrf.mxu0
        %v1866 = vadd.f32 %v1825, %v1865
        %1867 = vmatmul.f32.gmra.mxu0 %v1783
        %v1868 = vpop.f32.mrf.mxu0
        %v1869 = vadd.f32 %v1825, %v1868
        %1870 = vmatmul.f32.gmra.mxu0 %v1784
        %v1871 = vpop.f32.mrf.mxu0
        %v1872 = vadd.f32 %v1825, %v1871
        %1873 = vmatmul.f32.gmra.mxu0 %v1785
        %v1874 = vpop.f32.mrf.mxu0
        %v1875 = vadd.f32 %v1825, %v1874
        %1876 = vmatmul.f32.gmra.mxu0 %v1786
        %v1877 = vpop.f32.mrf.mxu0
        %v1878 = vadd.f32 %v1825, %v1877
        %1879 = vmatmul.f32.gmra.mxu0 %v1787
        %v1880 = vpop.f32.mrf.mxu0
        %v1881 = vadd.f32 %v1825, %v1880
        %1882 = vmatmul.f32.gmra.mxu0 %v1788
        %v1883 = vpop.f32.mrf.mxu0
        %v1884 = vadd.f32 %v1825, %v1883
        %1885 = vmatmul.f32.gmra.mxu0 %v1789
        %v1886 = vpop.f32.mrf.mxu0
        %v1887 = vadd.f32 %v1825, %v1886
        %1888 = vmatmul.f32.gmra.mxu0 %v1790
        %v1889 = vpop.f32.mrf.mxu0
        %v1890 = vadd.f32 %v1825, %v1889
        %1891 = vmatmul.f32.gmra.mxu0 %v1791
        %v1892 = vpop.f32.mrf.mxu0
        %v1893 = vadd.f32 %v1825, %v1892
        %1894 = vmatmul.f32.gmra.mxu0 %v1792
        %v1895 = vpop.f32.mrf.mxu0
        %v1896 = vadd.f32 %v1825, %v1895
        %1897 = vmatmul.f32.gmra.mxu0 %v1793
        %v1898 = vpop.f32.mrf.mxu0
        %v1899 = vadd.f32 %v1825, %v1898
        %1900 = vmatmul.f32.gmra.mxu0 %v1794
        %v1901 = vpop.f32.mrf.mxu0
        %v1902 = vadd.f32 %v1825, %v1901
        %1903 = vmatmul.f32.gmra.mxu0 %v1795
        %v1904 = vpop.f32.mrf.mxu0
        %v1905 = vadd.f32 %v1825, %v1904
        %1906 = vmatmul.f32.gmra.mxu0 %v1796
        %v1907 = vpop.f32.mrf.mxu0
        %v1908 = vadd.f32 %v1825, %v1907
        %1909 = vmatmul.f32.gmra.mxu0 %v1797
        %v1910 = vpop.f32.mrf.mxu0
        %v1911 = vadd.f32 %v1825, %v1910
        %1912 = vmatmul.f32.gmra.mxu0 %v1798
        %v1913 = vpop.f32.mrf.mxu0
        %v1914 = vadd.f32 %v1825, %v1913
        %1915 = vmatmul.f32.gmra.mxu0 %v1799
        %v1916 = vpop.f32.mrf.mxu0
        %v1917 = vadd.f32 %v1825, %v1916
        %1918 = vmatmul.f32.gmra.mxu0 %v1800
        %v1919 = vpop.f32.mrf.mxu0
        %v1920 = vadd.f32 %v1825, %v1919
        %1921 = vmatmul.f32.gmra.mxu0 %v1801
        %v1922 = vpop.f32.mrf.mxu0
        %v1923 = vadd.f32 %v1825, %v1922
        %1924 = vmatmul.f32.gmra.mxu0 %v1802
        %v1925 = vpop.f32.mrf.mxu0
        %v1926 = vadd.f32 %v1825, %v1925
        %1927 = vmatmul.f32.gmra.mxu0 %v1803
        %v1928 = vpop.f32.mrf.mxu0
        %v1929 = vadd.f32 %v1825, %v1928
        %1930 = vmatmul.f32.gmra.mxu0 %v1804
        %v1931 = vpop.f32.mrf.mxu0
        %v1932 = vadd.f32 %v1825, %v1931
        %1933 = vmatmul.f32.gmra.mxu0 %v1805
        %v1934 = vpop.f32.mrf.mxu0
        %v1935 = vadd.f32 %v1825, %v1934
        %1936 = vmatmul.f32.gmra.mxu0 %v1806
        %v1937 = vpop.f32.mrf.mxu0
        %v1938 = vadd.f32 %v1825, %v1937
        %1939 = vdwg.mxu0
        %v1940 = vmax.f32 %v1845, 0.0
        %v1941 = vmax.f32 %v1848, 0.0
        %v1942 = vmax.f32 %v1851, 0.0
        %v1943 = vmax.f32 %v1854, 0.0
        %v1944 = vmax.f32 %v1857, 0.0
        %v1945 = vmax.f32 %v1860, 0.0
        %v1946 = vmax.f32 %v1863, 0.0
        %v1947 = vmax.f32 %v1866, 0.0
        %v1948 = vmax.f32 %v1869, 0.0
        %v1949 = vmax.f32 %v1872, 0.0
        %v1950 = vmax.f32 %v1875, 0.0
        %v1951 = vmax.f32 %v1878, 0.0
        %v1952 = vmax.f32 %v1881, 0.0
        %v1953 = vmax.f32 %v1884, 0.0
        %v1954 = vmax.f32 %v1887, 0.0
        %v1955 = vmax.f32 %v1890, 0.0
        %v1956 = vmax.f32 %v1893, 0.0
        %v1957 = vmax.f32 %v1896, 0.0
        %v1958 = vmax.f32 %v1899, 0.0
        %v1959 = vmax.f32 %v1902, 0.0
        %v1960 = vmax.f32 %v1905, 0.0
        %v1961 = vmax.f32 %v1908, 0.0
        %v1962 = vmax.f32 %v1911, 0.0
        %v1963 = vmax.f32 %v1914, 0.0
        %v1964 = vmax.f32 %v1917, 0.0
        %v1965 = vmax.f32 %v1920, 0.0
        %v1966 = vmax.f32 %v1923, 0.0
        %v1967 = vmax.f32 %v1926, 0.0
        %v1968 = vmax.f32 %v1929, 0.0
        %v1969 = vmax.f32 %v1932, 0.0
        %v1970 = vmax.f32 %v1935, 0.0
        %v1971 = vmax.f32 %v1938, 0.0
        %v1972 = vld [vmem:[#allocation6] sm:$0xff]
        %v1973 = vld [vmem:[#allocation6 + $0x8] sm:$0xff]
        %v1974 = vld [vmem:[#allocation6 + $0x10] sm:$0xff]
        %v1975 = vld [vmem:[#allocation6 + $0x18] sm:$0xff]
        %v1976 = vld [vmem:[#allocation6 + $0x20] sm:$0xff]
        %v1977 = vld [vmem:[#allocation6 + $0x28] sm:$0xff]
        %v1978 = vld [vmem:[#allocation6 + $0x30] sm:$0xff]
        %v1979 = vld [vmem:[#allocation6 + $0x38] sm:$0xff]
        %v1980 = vld [vmem:[#allocation6 + $0x40] sm:$0xff]
        %v1981 = vld [vmem:[#allocation6 + $0x48] sm:$0xff]
        %v1982 = vld [vmem:[#allocation6 + $0x50] sm:$0xff]
        %v1983 = vld [vmem:[#allocation6 + $0x58] sm:$0xff]
        %v1984 = vld [vmem:[#allocation6 + $0x60] sm:$0xff]
        %v1985 = vld [vmem:[#allocation6 + $0x68] sm:$0xff]
        %v1986 = vld [vmem:[#allocation6 + $0x70] sm:$0xff]
        %v1987 = vld [vmem:[#allocation6 + $0x78] sm:$0xff]
        %v1988 = vld [vmem:[%s15] sm:$0x1]
        %v1990 = vperm.slane %v1988, 0
        %1992 = vmatpush.msra.mxu0 %v1987
        %1993 = vmatpush.msra.mxu0 %v1986
        %1994 = vmatpush.msra.mxu0 %v1985
        %1995 = vmatpush.msra.mxu0 %v1984
        %1996 = vmatpush.msra.mxu0 %v1983
        %1997 = vmatpush.msra.mxu0 %v1982
        %1998 = vmatpush.msra.mxu0 %v1981
        %1999 = vmatpush.msra.mxu0 %v1980
        %2000 = vmatpush.msra.mxu0 %v1979
        %2001 = vmatpush.msra.mxu0 %v1978
        %2002 = vmatpush.msra.mxu0 %v1977
        %2003 = vmatpush.msra.mxu0 %v1976
        %2004 = vmatpush.msra.mxu0 %v1975
        %2005 = vmatpush.msra.mxu0 %v1974
        %2006 = vmatpush.msra.mxu0 %v1973
        %2007 = vmatpush.msra.mxu0 %v1972
        %2008 = vmatmul.f32.gmra.mxu0 %v1940
        %v2009 = vpop.f32.mrf.mxu0
        %v2010 = vadd.f32 %v1990, %v2009
        %2011 = vmatmul.f32.gmra.mxu0 %v1941
        %v2012 = vpop.f32.mrf.mxu0
        %v2013 = vadd.f32 %v1990, %v2012
        %2014 = vmatmul.f32.gmra.mxu0 %v1942
        %v2015 = vpop.f32.mrf.mxu0
        %v2016 = vadd.f32 %v1990, %v2015
        %2017 = vmatmul.f32.gmra.mxu0 %v1943
        %v2018 = vpop.f32.mrf.mxu0
        %v2019 = vadd.f32 %v1990, %v2018
        %2020 = vmatmul.f32.gmra.mxu0 %v1944
        %v2021 = vpop.f32.mrf.mxu0
        %v2022 = vadd.f32 %v1990, %v2021
        %2023 = vmatmul.f32.gmra.mxu0 %v1945
        %v2024 = vpop.f32.mrf.mxu0
        %v2025 = vadd.f32 %v1990, %v2024
        %2026 = vmatmul.f32.gmra.mxu0 %v1946
        %v2027 = vpop.f32.mrf.mxu0
        %v2028 = vadd.f32 %v1990, %v2027
        %2029 = vmatmul.f32.gmra.mxu0 %v1947
        %v2030 = vpop.f32.mrf.mxu0
        %v2031 = vadd.f32 %v1990, %v2030
        %2032 = vmatmul.f32.gmra.mxu0 %v1948
        %v2033 = vpop.f32.mrf.mxu0
        %v2034 = vadd.f32 %v1990, %v2033
        %2035 = vmatmul.f32.gmra.mxu0 %v1949
        %v2036 = vpop.f32.mrf.mxu0
        %v2037 = vadd.f32 %v1990, %v2036
        %2038 = vmatmul.f32.gmra.mxu0 %v1950
        %v2039 = vpop.f32.mrf.mxu0
        %v2040 = vadd.f32 %v1990, %v2039
        %2041 = vmatmul.f32.gmra.mxu0 %v1951
        %v2042 = vpop.f32.mrf.mxu0
        %v2043 = vadd.f32 %v1990, %v2042
        %2044 = vmatmul.f32.gmra.mxu0 %v1952
        %v2045 = vpop.f32.mrf.mxu0
        %v2046 = vadd.f32 %v1990, %v2045
        %2047 = vmatmul.f32.gmra.mxu0 %v1953
        %v2048 = vpop.f32.mrf.mxu0
        %v2049 = vadd.f32 %v1990, %v2048
        %2050 = vmatmul.f32.gmra.mxu0 %v1954
        %v2051 = vpop.f32.mrf.mxu0
        %v2052 = vadd.f32 %v1990, %v2051
        %2053 = vmatmul.f32.gmra.mxu0 %v1955
        %v2054 = vpop.f32.mrf.mxu0
        %v2055 = vadd.f32 %v1990, %v2054
        %2056 = vmatmul.f32.gmra.mxu0 %v1956
        %v2057 = vpop.f32.mrf.mxu0
        %v2058 = vadd.f32 %v1990, %v2057
        %2059 = vmatmul.f32.gmra.mxu0 %v1957
        %v2060 = vpop.f32.mrf.mxu0
        %v2061 = vadd.f32 %v1990, %v2060
        %2062 = vmatmul.f32.gmra.mxu0 %v1958
        %v2063 = vpop.f32.mrf.mxu0
        %v2064 = vadd.f32 %v1990, %v2063
        %2065 = vmatmul.f32.gmra.mxu0 %v1959
        %v2066 = vpop.f32.mrf.mxu0
        %v2067 = vadd.f32 %v1990, %v2066
        %2068 = vmatmul.f32.gmra.mxu0 %v1960
        %v2069 = vpop.f32.mrf.mxu0
        %v2070 = vadd.f32 %v1990, %v2069
        %2071 = vmatmul.f32.gmra.mxu0 %v1961
        %v2072 = vpop.f32.mrf.mxu0
        %v2073 = vadd.f32 %v1990, %v2072
        %2074 = vmatmul.f32.gmra.mxu0 %v1962
        %v2075 = vpop.f32.mrf.mxu0
        %v2076 = vadd.f32 %v1990, %v2075
        %2077 = vmatmul.f32.gmra.mxu0 %v1963
        %v2078 = vpop.f32.mrf.mxu0
        %v2079 = vadd.f32 %v1990, %v2078
        %2080 = vmatmul.f32.gmra.mxu0 %v1964
        %v2081 = vpop.f32.mrf.mxu0
        %v2082 = vadd.f32 %v1990, %v2081
        %2083 = vmatmul.f32.gmra.mxu0 %v1965
        %v2084 = vpop.f32.mrf.mxu0
        %v2085 = vadd.f32 %v1990, %v2084
        %2086 = vmatmul.f32.gmra.mxu0 %v1966
        %v2087 = vpop.f32.mrf.mxu0
        %v2088 = vadd.f32 %v1990, %v2087
        %2089 = vmatmul.f32.gmra.mxu0 %v1967
        %v2090 = vpop.f32.mrf.mxu0
        %v2091 = vadd.f32 %v1990, %v2090
        %2092 = vmatmul.f32.gmra.mxu0 %v1968
        %v2093 = vpop.f32.mrf.mxu0
        %v2094 = vadd.f32 %v1990, %v2093
        %2095 = vmatmul.f32.gmra.mxu0 %v1969
        %v2096 = vpop.f32.mrf.mxu0
        %v2097 = vadd.f32 %v1990, %v2096
        %2098 = vmatmul.f32.gmra.mxu0 %v1970
        %v2099 = vpop.f32.mrf.mxu0
        %v2100 = vadd.f32 %v1990, %v2099
        %2101 = vmatmul.f32.gmra.mxu0 %v1971
        %v2102 = vpop.f32.mrf.mxu0
        %v2103 = vadd.f32 %v1990, %v2102
        %2104 = vdwg.mxu0
        %v2105 = vmax.f32 %v2010, 0.0
        %v2106 = vmax.f32 %v2013, 0.0
        %v2107 = vmax.f32 %v2016, 0.0
        %v2108 = vmax.f32 %v2019, 0.0
        %v2109 = vmax.f32 %v2022, 0.0
        %v2110 = vmax.f32 %v2025, 0.0
        %v2111 = vmax.f32 %v2028, 0.0
        %v2112 = vmax.f32 %v2031, 0.0
        %v2113 = vmax.f32 %v2034, 0.0
        %v2114 = vmax.f32 %v2037, 0.0
        %v2115 = vmax.f32 %v2040, 0.0
        %v2116 = vmax.f32 %v2043, 0.0
        %v2117 = vmax.f32 %v2046, 0.0
        %v2118 = vmax.f32 %v2049, 0.0
        %v2119 = vmax.f32 %v2052, 0.0
        %v2120 = vmax.f32 %v2055, 0.0
        %v2121 = vmax.f32 %v2058, 0.0
        %v2122 = vmax.f32 %v2061, 0.0
        %v2123 = vmax.f32 %v2064, 0.0
        %v2124 = vmax.f32 %v2067, 0.0
        %v2125 = vmax.f32 %v2070, 0.0
        %v2126 = vmax.f32 %v2073, 0.0
        %v2127 = vmax.f32 %v2076, 0.0
        %v2128 = vmax.f32 %v2079, 0.0
        %v2129 = vmax.f32 %v2082, 0.0
        %v2130 = vmax.f32 %v2085, 0.0
        %v2131 = vmax.f32 %v2088, 0.0
        %v2132 = vmax.f32 %v2091, 0.0
        %v2133 = vmax.f32 %v2094, 0.0
        %v2134 = vmax.f32 %v2097, 0.0
        %v2135 = vmax.f32 %v2100, 0.0
        %v2136 = vmax.f32 %v2103, 0.0
        %v2137 = vld [vmem:[#allocation8] sm:$0xff]
        %v2138 = vld [vmem:[#allocation8 + $0x8] sm:$0xff]
        %v2139 = vld [vmem:[#allocation8 + $0x10] sm:$0xff]
        %v2140 = vld [vmem:[#allocation8 + $0x18] sm:$0xff]
        %v2141 = vld [vmem:[#allocation8 + $0x20] sm:$0xff]
        %v2142 = vld [vmem:[#allocation8 + $0x28] sm:$0xff]
        %v2143 = vld [vmem:[#allocation8 + $0x30] sm:$0xff]
        %v2144 = vld [vmem:[#allocation8 + $0x38] sm:$0xff]
        %v2145 = vld [vmem:[#allocation8 + $0x40] sm:$0xff]
        %v2146 = vld [vmem:[#allocation8 + $0x48] sm:$0xff]
        %v2147 = vld [vmem:[#allocation8 + $0x50] sm:$0xff]
        %v2148 = vld [vmem:[#allocation8 + $0x58] sm:$0xff]
        %v2149 = vld [vmem:[#allocation8 + $0x60] sm:$0xff]
        %v2150 = vld [vmem:[#allocation8 + $0x68] sm:$0xff]
        %v2151 = vld [vmem:[#allocation8 + $0x70] sm:$0xff]
        %v2152 = vld [vmem:[#allocation8 + $0x78] sm:$0xff]
        %v2153 = vld [vmem:[%s17] sm:$0x1]
        %v2155 = vperm.slane %v2153, 0
        %2157 = vmatpush.msra.mxu0 %v2152
        %2158 = vmatpush.msra.mxu0 %v2151
        %2159 = vmatpush.msra.mxu0 %v2150
        %2160 = vmatpush.msra.mxu0 %v2149
        %2161 = vmatpush.msra.mxu0 %v2148
        %2162 = vmatpush.msra.mxu0 %v2147
        %2163 = vmatpush.msra.mxu0 %v2146
        %2164 = vmatpush.msra.mxu0 %v2145
        %2165 = vmatpush.msra.mxu0 %v2144
        %2166 = vmatpush.msra.mxu0 %v2143
        %2167 = vmatpush.msra.mxu0 %v2142
        %2168 = vmatpush.msra.mxu0 %v2141
        %2169 = vmatpush.msra.mxu0 %v2140
        %2170 = vmatpush.msra.mxu0 %v2139
        %2171 = vmatpush.msra.mxu0 %v2138
        %2172 = vmatpush.msra.mxu0 %v2137
        %2173 = vmatmul.f32.gmra.mxu0 %v2105
        %v2174 = vpop.f32.mrf.mxu0
        %v2175 = vadd.f32 %v2155, %v2174
        %2176 = vmatmul.f32.gmra.mxu0 %v2106
        %v2177 = vpop.f32.mrf.mxu0
        %v2178 = vadd.f32 %v2155, %v2177
        %2179 = vmatmul.f32.gmra.mxu0 %v2107
        %v2180 = vpop.f32.mrf.mxu0
        %v2181 = vadd.f32 %v2155, %v2180
        %2182 = vmatmul.f32.gmra.mxu0 %v2108
        %v2183 = vpop.f32.mrf.mxu0
        %v2184 = vadd.f32 %v2155, %v2183
        %2185 = vmatmul.f32.gmra.mxu0 %v2109
        %v2186 = vpop.f32.mrf.mxu0
        %v2187 = vadd.f32 %v2155, %v2186
        %2188 = vmatmul.f32.gmra.mxu0 %v2110
        %v2189 = vpop.f32.mrf.mxu0
        %v2190 = vadd.f32 %v2155, %v2189
        %2191 = vmatmul.f32.gmra.mxu0 %v2111
        %v2192 = vpop.f32.mrf.mxu0
        %v2193 = vadd.f32 %v2155, %v2192
        %2194 = vmatmul.f32.gmra.mxu0 %v2112
        %v2195 = vpop.f32.mrf.mxu0
        %v2196 = vadd.f32 %v2155, %v2195
        %2197 = vmatmul.f32.gmra.mxu0 %v2113
        %v2198 = vpop.f32.mrf.mxu0
        %v2199 = vadd.f32 %v2155, %v2198
        %2200 = vmatmul.f32.gmra.mxu0 %v2114
        %v2201 = vpop.f32.mrf.mxu0
        %v2202 = vadd.f32 %v2155, %v2201
        %2203 = vmatmul.f32.gmra.mxu0 %v2115
        %v2204 = vpop.f32.mrf.mxu0
        %v2205 = vadd.f32 %v2155, %v2204
        %2206 = vmatmul.f32.gmra.mxu0 %v2116
        %v2207 = vpop.f32.mrf.mxu0
        %v2208 = vadd.f32 %v2155, %v2207
        %2209 = vmatmul.f32.gmra.mxu0 %v2117
        %v2210 = vpop.f32.mrf.mxu0
        %v2211 = vadd.f32 %v2155, %v2210
        %2212 = vmatmul.f32.gmra.mxu0 %v2118
        %v2213 = vpop.f32.mrf.mxu0
        %v2214 = vadd.f32 %v2155, %v2213
        %2215 = vmatmul.f32.gmra.mxu0 %v2119
        %v2216 = vpop.f32.mrf.mxu0
        %v2217 = vadd.f32 %v2155, %v2216
        %2218 = vmatmul.f32.gmra.mxu0 %v2120
        %v2219 = vpop.f32.mrf.mxu0
        %v2220 = vadd.f32 %v2155, %v2219
        %2221 = vmatmul.f32.gmra.mxu0 %v2121
        %v2222 = vpop.f32.mrf.mxu0
        %v2223 = vadd.f32 %v2155, %v2222
        %2224 = vmatmul.f32.gmra.mxu0 %v2122
        %v2225 = vpop.f32.mrf.mxu0
        %v2226 = vadd.f32 %v2155, %v2225
        %2227 = vmatmul.f32.gmra.mxu0 %v2123
        %v2228 = vpop.f32.mrf.mxu0
        %v2229 = vadd.f32 %v2155, %v2228
        %2230 = vmatmul.f32.gmra.mxu0 %v2124
        %v2231 = vpop.f32.mrf.mxu0
        %v2232 = vadd.f32 %v2155, %v2231
        %2233 = vmatmul.f32.gmra.mxu0 %v2125
        %v2234 = vpop.f32.mrf.mxu0
        %v2235 = vadd.f32 %v2155, %v2234
        %2236 = vmatmul.f32.gmra.mxu0 %v2126
        %v2237 = vpop.f32.mrf.mxu0
        %v2238 = vadd.f32 %v2155, %v2237
        %2239 = vmatmul.f32.gmra.mxu0 %v2127
        %v2240 = vpop.f32.mrf.mxu0
        %v2241 = vadd.f32 %v2155, %v2240
        %2242 = vmatmul.f32.gmra.mxu0 %v2128
        %v2243 = vpop.f32.mrf.mxu0
        %v2244 = vadd.f32 %v2155, %v2243
        %2245 = vmatmul.f32.gmra.mxu0 %v2129
        %v2246 = vpop.f32.mrf.mxu0
        %v2247 = vadd.f32 %v2155, %v2246
        %2248 = vmatmul.f32.gmra.mxu0 %v2130
        %v2249 = vpop.f32.mrf.mxu0
        %v2250 = vadd.f32 %v2155, %v2249
        %2251 = vmatmul.f32.gmra.mxu0 %v2131
        %v2252 = vpop.f32.mrf.mxu0
        %v2253 = vadd.f32 %v2155, %v2252
        %2254 = vmatmul.f32.gmra.mxu0 %v2132
        %v2255 = vpop.f32.mrf.mxu0
        %v2256 = vadd.f32 %v2155, %v2255
        %2257 = vmatmul.f32.gmra.mxu0 %v2133
        %v2258 = vpop.f32.mrf.mxu0
        %v2259 = vadd.f32 %v2155, %v2258
        %2260 = vmatmul.f32.gmra.mxu0 %v2134
        %v2261 = vpop.f32.mrf.mxu0
        %v2262 = vadd.f32 %v2155, %v2261
        %2263 = vmatmul.f32.gmra.mxu0 %v2135
        %v2264 = vpop.f32.mrf.mxu0
        %v2265 = vadd.f32 %v2155, %v2264
        %2266 = vmatmul.f32.gmra.mxu0 %v2136
        %v2267 = vpop.f32.mrf.mxu0
        %v2268 = vadd.f32 %v2155, %v2267
        %2269 = vdwg.mxu0
        %v2270 = vmax.f32 %v2175, 0.0
        %v2271 = vmax.f32 %v2178, 0.0
        %v2272 = vmax.f32 %v2181, 0.0
        %v2273 = vmax.f32 %v2184, 0.0
        %v2274 = vmax.f32 %v2187, 0.0
        %v2275 = vmax.f32 %v2190, 0.0
        %v2276 = vmax.f32 %v2193, 0.0
        %v2277 = vmax.f32 %v2196, 0.0
        %v2278 = vmax.f32 %v2199, 0.0
        %v2279 = vmax.f32 %v2202, 0.0
        %v2280 = vmax.f32 %v2205, 0.0
        %v2281 = vmax.f32 %v2208, 0.0
        %v2282 = vmax.f32 %v2211, 0.0
        %v2283 = vmax.f32 %v2214, 0.0
        %v2284 = vmax.f32 %v2217, 0.0
        %v2285 = vmax.f32 %v2220, 0.0
        %v2286 = vmax.f32 %v2223, 0.0
        %v2287 = vmax.f32 %v2226, 0.0
        %v2288 = vmax.f32 %v2229, 0.0
        %v2289 = vmax.f32 %v2232, 0.0
        %v2290 = vmax.f32 %v2235, 0.0
        %v2291 = vmax.f32 %v2238, 0.0
        %v2292 = vmax.f32 %v2241, 0.0
        %v2293 = vmax.f32 %v2244, 0.0
        %v2294 = vmax.f32 %v2247, 0.0
        %v2295 = vmax.f32 %v2250, 0.0
        %v2296 = vmax.f32 %v2253, 0.0
        %v2297 = vmax.f32 %v2256, 0.0
        %v2298 = vmax.f32 %v2259, 0.0
        %v2299 = vmax.f32 %v2262, 0.0
        %v2300 = vmax.f32 %v2265, 0.0
        %v2301 = vmax.f32 %v2268, 0.0
        %v2302 = vld [vmem:[%s18] sm:$0x1]
        %v2303 = vld [vmem:[#allocation2] sm:$0x1]
        %2305 = vset.pattern.permute.xlu0 0
        %2306 = vperm.xlu0 %2305, %v2303
        %v2307 = vpop.permute.xlu0 %2306
        %v2309 = vperm.slane %v2307, 0
        %2310 = vmatpush.xpose.msra.mxu0 %v2285
        %2311 = vmatpush.xpose.msra.mxu0 %v2284
        %2312 = vmatpush.xpose.msra.mxu0 %v2283
        %2313 = vmatpush.xpose.msra.mxu0 %v2282
        %2314 = vmatpush.xpose.msra.mxu0 %v2281
        %2315 = vmatpush.xpose.msra.mxu0 %v2280
        %2316 = vmatpush.xpose.msra.mxu0 %v2279
        %2317 = vmatpush.xpose.msra.mxu0 %v2278
        %2318 = vmatpush.xpose.msra.mxu0 %v2277
        %2319 = vmatpush.xpose.msra.mxu0 %v2276
        %2320 = vmatpush.xpose.msra.mxu0 %v2275
        %2321 = vmatpush.xpose.msra.mxu0 %v2274
        %2322 = vmatpush.xpose.msra.mxu0 %v2273
        %2323 = vmatpush.xpose.msra.mxu0 %v2272
        %2324 = vmatpush.xpose.msra.mxu0 %v2271
        %2325 = vmatpush.xpose.msra.mxu0 %v2270
        %2326 = vmatmul.f32.gmra.mxu0 %v2302
        %v2327 = vpop.f32.mrf.mxu0
        %v2328 = vadd.f32 %v2309, %v2327
        %2329 = vdwg.mxu0
        %2330 = vmatpush.xpose.msra.mxu0 %v2301
        %2331 = vmatpush.xpose.msra.mxu0 %v2300
        %2332 = vmatpush.xpose.msra.mxu0 %v2299
        %2333 = vmatpush.xpose.msra.mxu0 %v2298
        %2334 = vmatpush.xpose.msra.mxu0 %v2297
        %2335 = vmatpush.xpose.msra.mxu0 %v2296
        %2336 = vmatpush.xpose.msra.mxu0 %v2295
        %2337 = vmatpush.xpose.msra.mxu0 %v2294
        %2338 = vmatpush.xpose.msra.mxu0 %v2293
        %2339 = vmatpush.xpose.msra.mxu0 %v2292
        %2340 = vmatpush.xpose.msra.mxu0 %v2291
        %2341 = vmatpush.xpose.msra.mxu0 %v2290
        %2342 = vmatpush.xpose.msra.mxu0 %v2289
        %2343 = vmatpush.xpose.msra.mxu0 %v2288
        %2344 = vmatpush.xpose.msra.mxu0 %v2287
        %2345 = vmatpush.xpose.msra.mxu0 %v2286
        %2346 = vmatmul.f32.gmra.mxu0 %v2302
        %v2347 = vpop.f32.mrf.mxu0
        %v2348 = vadd.f32 %v2309, %v2347
        %2349 = vdwg.mxu0
        %v2350 = vtanh.pop %v2328
        %v2351 = vtanh.pop %v2348
        %v2354 = vrot.slane %v2351, 7
        %vm2355 = vcmask 1040384
        %v2356 = vsel %vm2355, %v2350, %v2354
        %v2358 = vlaneseq
        %vm2359 = vcmp.ge.s32.totalorder %v2358, 0
        %vm2360 = vcmp.lt.s32.totalorder %v2358, 256
        %vm2361 = vmand %vm2359, %vm2360
        %2362 = vst.msk [vmem:[%s706] sm:$0x3] %vm2361, %v2356
        %2363 = vst [vmem:[%s713] sm:$0xff] %v2270
        %2364 = vst [vmem:[%s713 + $0x8] sm:$0xff] %v2271
        %2365 = vst [vmem:[%s713 + $0x10] sm:$0xff] %v2272
        %2366 = vst [vmem:[%s713 + $0x18] sm:$0xff] %v2273
        %2367 = vst [vmem:[%s713 + $0x20] sm:$0xff] %v2274
        %2368 = vst [vmem:[%s713 + $0x28] sm:$0xff] %v2275
        %2369 = vst [vmem:[%s713 + $0x30] sm:$0xff] %v2276
        %2370 = vst [vmem:[%s713 + $0x38] sm:$0xff] %v2277
        %2371 = vst [vmem:[%s713 + $0x40] sm:$0xff] %v2278
        %2372 = vst [vmem:[%s713 + $0x48] sm:$0xff] %v2279
        %2373 = vst [vmem:[%s713 + $0x50] sm:$0xff] %v2280
        %2374 = vst [vmem:[%s713 + $0x58] sm:$0xff] %v2281
        %2375 = vst [vmem:[%s713 + $0x60] sm:$0xff] %v2282
        %2376 = vst [vmem:[%s713 + $0x68] sm:$0xff] %v2283
        %2377 = vst [vmem:[%s713 + $0x70] sm:$0xff] %v2284
        %2378 = vst [vmem:[%s713 + $0x78] sm:$0xff] %v2285
        %2379 = vst [vmem:[%s713 + $0x80] sm:$0xff] %v2286
        %2380 = vst [vmem:[%s713 + $0x88] sm:$0xff] %v2287
        %2381 = vst [vmem:[%s713 + $0x90] sm:$0xff] %v2288
        %2382 = vst [vmem:[%s713 + $0x98] sm:$0xff] %v2289
        %2383 = vst [vmem:[%s713 + $0xa0] sm:$0xff] %v2290
        %2384 = vst [vmem:[%s713 + $0xa8] sm:$0xff] %v2291
        %2385 = vst [vmem:[%s713 + $0xb0] sm:$0xff] %v2292
        %2386 = vst [vmem:[%s713 + $0xb8] sm:$0xff] %v2293
        %2387 = vst [vmem:[%s713 + $0xc0] sm:$0xff] %v2294
        %2388 = vst [vmem:[%s713 + $0xc8] sm:$0xff] %v2295
        %2389 = vst [vmem:[%s713 + $0xd0] sm:$0xff] %v2296
        %2390 = vst [vmem:[%s713 + $0xd8] sm:$0xff] %v2297
        %2391 = vst [vmem:[%s713 + $0xe0] sm:$0xff] %v2298
        %2392 = vst [vmem:[%s713 + $0xe8] sm:$0xff] %v2299
        %2393 = vst [vmem:[%s713 + $0xf0] sm:$0xff] %v2300
        %2394 = vst [vmem:[%s713 + $0xf8] sm:$0xff] %v2301
        %s2395 = sand.u32 %s476, 1
        %s2396 = scalar_lea.sflag [#allocation5], %s2395
        %s2397 = sand.u32 %s476, 1
        %s2398 = smul.addr %s2397, 2
        %s2399 = scalar_lea.vmem [#allocation9], %s2398
        %s2400 = sand.u32 %s502, 1
        %s2401 = scalar_lea.sflag [#allocation11], %s2400
        %s2402 = sand.u32 %s502, 1
        %s2403 = smul.addr %s2402, 256
        %s2404 = scalar_lea.vmem [#allocation10], %s2403
        // Predicated region
        $region113: #{tpu_custom_call.1} parent=99 // pred_check
          %p2405 = pneg %p486
        $region114: #{tpu_custom_call.1} parent=99 // pred_check_branch
          %2407 = sbr.rel (%p2405) target = $region116
        $region115: #{tpu_custom_call.1} parent=99 // pred_region
          %s2408 = smul.u32 2, %s43
          %2410 = vsyncadd %s2396, 0
          %s2411 = scalar_lea.hbm %s20, %s2408
          %s2413 = sshll.u32 %s2399, 4
          %s2414 = int_to_ptr.vmem [resolvable:$true] %s2413
          %s2415 = sshll.u32 %s2411, 4
          %s2416 = int_to_ptr.hbm [resolvable:$true] %s2415
          %2418 = dma.vmem_to_hbm [thread:$0]  %s2414, 32, %s2416, %s2396
        $region116: #{tpu_custom_call.1} parent=99 // pred_fallthru
          _
        // Predicated region
        $region117: #{tpu_custom_call.1} parent=99 // pred_check
          %p2419 = pneg %p512
        $region118: #{tpu_custom_call.1} parent=99 // pred_check_branch
          %2421 = sbr.rel (%p2419) target = $region120
        $region119: #{tpu_custom_call.1} parent=99 // pred_region
          %s2422 = smul.u32 32, %s43
          %2424 = vsyncadd %s2401, 0
          %s2425 = smul.addr %s2422, 8
          %s2426 = scalar_lea.hbm %s21, %s2425
          %s2427 = sshll.u32 %s2404, 4
          %s2428 = int_to_ptr.vmem [resolvable:$true] %s2427
          %s2429 = sshll.u32 %s2426, 4
          %s2430 = int_to_ptr.hbm [resolvable:$true] %s2429
          %2435 = dma.vmem_to_hbm [thread:$0]  %s2428, 4096, %s2430, %s2401, 128, 128, 8
        $region120: #{tpu_custom_call.1} parent=99 // pred_fallthru
          _
      $region100: #{tpu_custom_call.1} parent=5 // pred_fallthru
        _
      %p2436 = scmp.le.s32.totalorder 2, %s38
      // Predicated region
      $region121: #{tpu_custom_call.1} parent=5 // pred_check
        %p2437 = pneg %p2436
      $region122: #{tpu_custom_call.1} parent=5 // pred_check_branch
        %2439 = sbr.rel (%p2437) target = $region124
      $region123: #{tpu_custom_call.1} parent=5 // pred_region
        %s2440 = ssub.s32 %s38, 2
        // Predicated region
        $region125: #{tpu_custom_call.1} parent=123 // pred_check
          %p2441 = pneg %p492
        $region126: #{tpu_custom_call.1} parent=123 // pred_check_branch
          %2443 = sbr.rel (%p2441) target = $region128
        $region127: #{tpu_custom_call.1} parent=123 // pred_region
          %s2444 = sand.u32 %s477, 1
          %s2445 = scalar_lea.sflag [#allocation5], %s2444
          %s2446 = sand.u32 %s477, 1
          %s2447 = smul.addr %s2446, 2
          %s2448 = scalar_lea.vmem [#allocation9], %s2447
          %2450 = dma.done %s2445, 32
        $region128: #{tpu_custom_call.1} parent=123 // pred_fallthru
          _
        // Predicated region
        $region129: #{tpu_custom_call.1} parent=123 // pred_check
          %p2451 = pneg %p518
        $region130: #{tpu_custom_call.1} parent=123 // pred_check_branch
          %2453 = sbr.rel (%p2451) target = $region132
        $region131: #{tpu_custom_call.1} parent=123 // pred_region
          %s2454 = sand.u32 %s503, 1
          %s2455 = scalar_lea.sflag [#allocation11], %s2454
          %s2456 = sand.u32 %s503, 1
          %s2457 = smul.addr %s2456, 256
          %s2458 = scalar_lea.vmem [#allocation10], %s2457
          %2460 = dma.done %s2455, 4096
        $region132: #{tpu_custom_call.1} parent=123 // pred_fallthru
          _
      $region124: #{tpu_custom_call.1} parent=5 // pred_fallthru
        _
    $region6: #{tpu_custom_call.1} parent=1 // loop_footer
      %s42 = sadd.s32 1, %s38
    $region7: #{tpu_custom_call.1} parent=1 // loop_footer_branch
      %37 = sbr.rel target = $region3
    $region8: #{tpu_custom_call.1} parent=1 // loop_exit
      _
    %2461 = vsyncpa [#allocation4], 1
    %s2462 = scalar_lea.sflag [#allocation4], 1
    %2463 = vsyncpa %s2462, 1
    %2464 = vsyncpa [#allocation7], 1
    %2465 = vsyncpa [#allocation5], 1
    %s2466 = scalar_lea.sflag [#allocation5], 1
    %2467 = vsyncpa %s2466, 1
    %2468 = vsyncpa [#allocation11], 1
    %s2469 = scalar_lea.sflag [#allocation11], 1
    %2470 = vsyncpa %s2469, 1

// kernel: tpu_custom_call.1
$region0: #{tpu_custom_call.1}
  #allocation0 [shape = 'u32[]', space=smem, size = 0x4, offset = 0x4, fixed_abs, tag = 'smem constant byte address 0x4 - core index']
  #allocation1 [shape = 'u32[72,128]{1,0:T(1,128)}', space=vmem, size = 0x9000, scoped, tag = 'internal scratch']
  #allocation2 [shape = 'f32[1,1]{1,0:T(1,128)S(1)}', space=vmem, size = 0x200, scoped, tag = 'scoped memory for tpu_custom_call.1']
  %s0 = inlined_call_operand.vmem [shape: f32[512,8], index: 0, kind: input, shape index: {}]
  %s1 = inlined_call_operand.vmem [shape: f32[8,128], index: 1, kind: input, shape index: {}]
  %s2 = inlined_call_operand.vmem [shape: f32[1,128], index: 2, kind: input, shape index: {}]
  %s3 = inlined_call_operand.vmem [shape: f32[128,128], index: 3, kind: input, shape index: {}]
  %s4 = inlined_call_operand.vmem [shape: f32[1,128], index: 4, kind: input, shape index: {}]
  %s5 = inlined_call_operand.vmem [shape: f32[128,128], index: 5, kind: input, shape index: {}]
  %s6 = inlined_call_operand.vmem [shape: f32[1,128], index: 6, kind: input, shape index: {}]
  %s7 = inlined_call_operand.vmem [shape: f32[128,128], index: 7, kind: input, shape index: {}]
  %s8 = inlined_call_operand.vmem [shape: f32[1,128], index: 8, kind: input, shape index: {}]
  %s9 = inlined_call_operand.vmem [shape: f32[128,128], index: 9, kind: input, shape index: {}]
  %s10 = inlined_call_operand.vmem [shape: f32[8,128], index: 10, kind: input, shape index: {}]
  %s11 = inlined_call_operand.vmem [shape: f32[1,128], index: 11, kind: input, shape index: {}]
  %s12 = inlined_call_operand.hbm [shape: f32[128,128], index: 12, kind: input, shape index: {}]
  %s13 = inlined_call_operand.vmem [shape: f32[1,128], index: 13, kind: input, shape index: {}]
  %s14 = inlined_call_operand.hbm [shape: f32[128,128], index: 14, kind: input, shape index: {}]
  %s15 = inlined_call_operand.vmem [shape: f32[1,128], index: 15, kind: input, shape index: {}]
  %s16 = inlined_call_operand.hbm [shape: f32[128,128], index: 16, kind: input, shape index: {}]
  %s17 = inlined_call_operand.vmem [shape: f32[1,128], index: 17, kind: input, shape index: {}]
  %s18 = inlined_call_operand.vmem [shape: f32[1,128], index: 18, kind: input, shape index: {}]
  %s19 = inlined_call_operand.<no memory space> [shape: f32[1,1], index: 19, kind: input, shape index: {}]
  %s20 = inlined_call_operand.hbm [shape: f32[1,512], index: 20, kind: output, shape index: {0}]
  %s21 = inlined_call_operand.hbm [shape: f32[512,128], index: 21, kind: output, shape index: {1}]
  %22 = xla_tuple %s20, %s21
  %s23 = sld [smem:[#allocation0]]
  $region133: #{tpu_custom_call.1} parent=0
    _
  %s25 = ssub.s32 1, %s23
  %s26 = scalar_select 0, %s25, %s23
  %v27 = vstv %s19
  %28 = vst [vmem:[#allocation2] sm:$0x1] %v27
  $region1: #{tpu_custom_call.1} parent=0
    #allocation3 [shape = 'u8[65536]{0}', space=vmem, size = 0x10000, scoped, tag = 'input window, operand 12, single buffered']
    #allocation4 [shape = 's32[2]{0}', space=sflag, size = 0x8, scoped, tag = 'scoped memory for tpu_custom_call.1']
    #allocation5 [shape = 's32[2]{0}', space=sflag, size = 0x8, scoped, tag = 'scoped memory for tpu_custom_call.1']
    #allocation6 [shape = 'u8[65536]{0}', space=vmem, size = 0x10000, scoped, tag = 'input window, operand 14, single buffered']
    #allocation7 [shape = 's32[1]{0}', space=sflag, size = 0x4, scoped, tag = 'scoped memory for tpu_custom_call.1']
    #allocation8 [shape = 'u8[65536]{0}', space=vmem, size = 0x10000, scoped, tag = 'input window, operand 16, single buffered']
    #allocation9 [shape = 'u8[2048]{0}', space=vmem, size = 0x800, scoped, tag = 'output window, operand 0']
    #allocation10 [shape = 'u8[262144]{0}', space=vmem, size = 0x40000, scoped, tag = 'output window, operand 1']
    #allocation11 [shape = 's32[2]{0}', space=sflag, size = 0x8, scoped, tag = 'scoped memory for tpu_custom_call.1']
    %29 = vsyncpa [#allocation4], 0
    %30 = vsyncpa [#allocation7], 0
    %31 = vsyncpa [#allocation5], 0
    %s32 = scalar_lea.sflag [#allocation5], 1
    %33 = vsyncpa %s32, 0
    %34 = vsyncpa [#allocation11], 0
    %s35 = scalar_lea.sflag [#allocation11], 1
    %36 = vsyncpa %s35, 0
    loop: start=0, step=1, limit=4
    $region2: #{tpu_custom_call.1} parent=1 // loop_pre_header
      _
    $region3: #{tpu_custom_call.1} parent=1 // loop_header
      %s38 = sphi 0, %s42
      %p39 = scmp.ge.s32.totalorder %s38, 4
      %s48 = sphi 0, %s50
      %s51 = sphi 0, %s48
      %s52 = sphi 0, %s51
      %s68 = sphi 0, %s52
      %s72 = sphi 0, %s72
      %s74 = sphi 0, %s72
      %s75 = sphi 0, %s74
      %s89 = sphi 0, %s75
      %s93 = sphi 0, %s93
      %s95 = sphi 0, %s93
      %s96 = sphi 0, %s95
      %s110 = sphi 0, %s96
      %s114 = sphi 0, %s114
      %s116 = sphi 0, %s114
      %s117 = sphi 0, %s116
      %s131 = sphi 0, %s117
      %s135 = sphi 0, %s135
      %s137 = sphi 0, %s135
      %s138 = sphi 0, %s137
      %s152 = sphi 0, %s138
      %s156 = sphi 0, %s156
      %s158 = sphi 0, %s156
      %s159 = sphi 0, %s158
      %s173 = sphi 0, %s159
      %s177 = sphi 0, %s177
      %s179 = sphi 0, %s177
      %s180 = sphi 0, %s179
      %s194 = sphi 0, %s180
      %s198 = sphi 0, %s198
      %s200 = sphi 0, %s198
      %s201 = sphi 0, %s200
      %s215 = sphi 0, %s201
      %s219 = sphi 0, %s219
      %s221 = sphi 0, %s219
      %s222 = sphi 0, %s221
      %s236 = sphi 0, %s222
      %s240 = sphi 0, %s240
      %s242 = sphi 0, %s240
      %s243 = sphi 0, %s242
      %s257 = sphi 0, %s243
      %s261 = sphi 0, %s261
      %s263 = sphi 0, %s261
      %s264 = sphi 0, %s263
      %s278 = sphi 0, %s264
      %s282 = sphi 0, %s282
      %s284 = sphi 0, %s282
      %s285 = sphi 0, %s284
      %s299 = sphi 0, %s285
      %s303 = sphi 0, %s303
      %s305 = sphi 0, %s303
      %s306 = sphi 0, %s305
      %s320 = sphi 0, %s306
      %s324 = sphi 0, %s324
      %s326 = sphi 0, %s324
      %s327 = sphi 0, %s326
      %s341 = sphi 0, %s327
      %s345 = sphi 0, %s345
      %s347 = sphi 0, %s345
      %s348 = sphi 0, %s347
      %s362 = sphi 0, %s348
      %s366 = sphi 0, %s366
      %s368 = sphi 0, %s366
      %s369 = sphi 0, %s368
      %s383 = sphi 0, %s369
      %s387 = sphi 0, %s387
      %s389 = sphi 0, %s387
      %s390 = sphi 0, %s389
      %s404 = sphi 0, %s390
      %s408 = sphi 0, %s408
      %s410 = sphi 0, %s408
      %s411 = sphi 0, %s410
      %s425 = sphi 0, %s411
      %s429 = sphi 0, %s429
      %s431 = sphi 0, %s429
      %s432 = sphi 0, %s431
      %s446 = sphi 0, %s432
      %s450 = sphi 0, %s450
      %s452 = sphi 0, %s450
      %s453 = sphi 0, %s452
      %s467 = sphi 0, %s453
      %s473 = sphi 0, %s475
      %s476 = sphi 0, %s473
      %s477 = sphi 0, %s476
      %s493 = sphi 0, %s477
      %s499 = sphi 0, %s501
      %s502 = sphi 0, %s499
      %s503 = sphi 0, %s502
      %s519 = sphi 0, %s503
    $region4: #{tpu_custom_call.1} parent=1 // loop_header_branch
      %41 = sbr.rel (%p39) target = $region8
    $region5: #{tpu_custom_call.1} parent=1 // loop_body
      %s43 = ssub.s32 %s38, 1
      %s44 = ssub.s32 %s38, 2
      %s45 = sadd.s32 %s38, 1
      %s46 = ssub.s32 %s38, %s45
      %p47 = scmp.eq.s32.totalorder %s46, 0
      %s49 = sadd.s32 %s48, 1
      %s50 = scalar_select %p47, %s48, %s49
      %p53 = pneg %p47
      %p54 = scmp.eq.s32.totalorder %s38, 1
      %p55 = por %p53, %p54
      %p56 = scmp.ne.s32.totalorder %s48, %s51
      %p57 = scmp.eq.s32.totalorder %s38, 0
      %p58 = por %p56, %p57
      %p59 = scmp.ne.s32.totalorder %s48, %s51
      %p60 = scmp.eq.s32.totalorder %s43, 1
      %p61 = por %p59, %p60
      %p62 = scmp.ne.s32.totalorder %s51, %s52
      %p63 = scmp.eq.s32.totalorder %s43, 0
      %p64 = por %p62, %p63
      %p65 = scmp.ne.s32.totalorder %s51, %s52
      %p66 = scmp.eq.s32.totalorder %s44, 1
      %p67 = por %p65, %p66
      %p69 = scmp.ne.s32.totalorder %s52, %s68
      %p70 = scmp.eq.s32.totalorder %s44, 0
      %p71 = por %p69, %p70
      %s73 = sadd.s32 %s72, 1
      %p76 = scmp.eq.s32.totalorder %s38, 1
      %p77 = scmp.ne.s32.totalorder %s72, %s74
      %p78 = scmp.eq.s32.totalorder %s38, 0
      %p79 = por %p77, %p78
      %p80 = scmp.ne.s32.totalorder %s72, %s74
      %p81 = scmp.eq.s32.totalorder %s43, 1
      %p82 = por %p80, %p81
      %p83 = scmp.ne.s32.totalorder %s74, %s75
      %p84 = scmp.eq.s32.totalorder %s43, 0
      %p85 = por %p83, %p84
      %p86 = scmp.ne.s32.totalorder %s74, %s75
      %p87 = scmp.eq.s32.totalorder %s44, 1
      %p88 = por %p86, %p87
      %p90 = scmp.ne.s32.totalorder %s75, %s89
      %p91 = scmp.eq.s32.totalorder %s44, 0
      %p92 = por %p90, %p91
      %s94 = sadd.s32 %s93, 1
      %p97 = scmp.eq.s32.totalorder %s38, 1
      %p98 = scmp.ne.s32.totalorder %s93, %s95
      %p99 = scmp.eq.s32.totalorder %s38, 0
      %p100 = por %p98, %p99
      %p101 = scmp.ne.s32.totalorder %s93, %s95
      %p102 = scmp.eq.s32.totalorder %s43, 1
      %p103 = por %p101, %p102
      %p104 = scmp.ne.s32.totalorder %s95, %s96
      %p105 = scmp.eq.s32.totalorder %s43, 0
      %p106 = por %p104, %p105
      %p107 = scmp.ne.s32.totalorder %s95, %s96
      %p108 = scmp.eq.s32.totalorder %s44, 1
      %p109 = por %p107, %p108
      %p111 = scmp.ne.s32.totalorder %s96, %s110
      %p112 = scmp.eq.s32.totalorder %s44, 0
      %p113 = por %p111, %p112
      %s115 = sadd.s32 %s114, 1
      %p118 = scmp.eq.s32.totalorder %s38, 1
      %p119 = scmp.ne.s32.totalorder %s114, %s116
      %p120 = scmp.eq.s32.totalorder %s38, 0
      %p121 = por %p119, %p120
      %p122 = scmp.ne.s32.totalorder %s114, %s116
      %p123 = scmp.eq.s32.totalorder %s43, 1
      %p124 = por %p122, %p123
      %p125 = scmp.ne.s32.totalorder %s116, %s117
      %p126 = scmp.eq.s32.totalorder %s43, 0
      %p127 = por %p125, %p126
      %p128 = scmp.ne.s32.totalorder %s116, %s117
      %p129 = scmp.eq.s32.totalorder %s44, 1
      %p130 = por %p128, %p129
      %p132 = scmp.ne.s32.totalorder %s117, %s131
      %p133 = scmp.eq.s32.totalorder %s44, 0
      %p134 = por %p132, %p133
      %s136 = sadd.s32 %s135, 1
      %p139 = scmp.eq.s32.totalorder %s38, 1
      %p140 = scmp.ne.s32.totalorder %s135, %s137
      %p141 = scmp.eq.s32.totalorder %s38, 0
      %p142 = por %p140, %p141
      %p143 = scmp.ne.s32.totalorder %s135, %s137
      %p144 = scmp.eq.s32.totalorder %s43, 1
      %p145 = por %p143, %p144
      %p146 = scmp.ne.s32.totalorder %s137, %s138
      %p147 = scmp.eq.s32.totalorder %s43, 0
      %p148 = por %p146, %p147
      %p149 = scmp.ne.s32.totalorder %s137, %s138
      %p150 = scmp.eq.s32.totalorder %s44, 1
      %p151 = por %p149, %p150
      %p153 = scmp.ne.s32.totalorder %s138, %s152
      %p154 = scmp.eq.s32.totalorder %s44, 0
      %p155 = por %p153, %p154
      %s157 = sadd.s32 %s156, 1
      %p160 = scmp.eq.s32.totalorder %s38, 1
      %p161 = scmp.ne.s32.totalorder %s156, %s158
      %p162 = scmp.eq.s32.totalorder %s38, 0
      %p163 = por %p161, %p162
      %p164 = scmp.ne.s32.totalorder %s156, %s158
      %p165 = scmp.eq.s32.totalorder %s43, 1
      %p166 = por %p164, %p165
      %p167 = scmp.ne.s32.totalorder %s158, %s159
      %p168 = scmp.eq.s32.totalorder %s43, 0
      %p169 = por %p167, %p168
      %p170 = scmp.ne.s32.totalorder %s158, %s159
      %p171 = scmp.eq.s32.totalorder %s44, 1
      %p172 = por %p170, %p171
      %p174 = scmp.ne.s32.totalorder %s159, %s173
      %p175 = scmp.eq.s32.totalorder %s44, 0
      %p176 = por %p174, %p175
      %s178 = sadd.s32 %s177, 1
      %p181 = scmp.eq.s32.totalorder %s38, 1
      %p182 = scmp.ne.s32.totalorder %s177, %s179
      %p183 = scmp.eq.s32.totalorder %s38, 0
      %p184 = por %p182, %p183
      %p185 = scmp.ne.s32.totalorder %s177, %s179
      %p186 = scmp.eq.s32.totalorder %s43, 1
      %p187 = por %p185, %p186
      %p188 = scmp.ne.s32.totalorder %s179, %s180
      %p189 = scmp.eq.s32.totalorder %s43, 0
      %p190 = por %p188, %p189
      %p191 = scmp.ne.s32.totalorder %s179, %s180
      %p192 = scmp.eq.s32.totalorder %s44, 1
      %p193 = por %p191, %p192
      %p195 = scmp.ne.s32.totalorder %s180, %s194
      %p196 = scmp.eq.s32.totalorder %s44, 0
      %p197 = por %p195, %p196
      %s199 = sadd.s32 %s198, 1
      %p202 = scmp.eq.s32.totalorder %s38, 1
      %p203 = scmp.ne.s32.totalorder %s198, %s200
      %p204 = scmp.eq.s32.totalorder %s38, 0
      %p205 = por %p203, %p204
      %p206 = scmp.ne.s32.totalorder %s198, %s200
      %p207 = scmp.eq.s32.totalorder %s43, 1
      %p208 = por %p206, %p207
      %p209 = scmp.ne.s32.totalorder %s200, %s201
      %p210 = scmp.eq.s32.totalorder %s43, 0
      %p211 = por %p209, %p210
      %p212 = scmp.ne.s32.totalorder %s200, %s201
      %p213 = scmp.eq.s32.totalorder %s44, 1
      %p214 = por %p212, %p213
      %p216 = scmp.ne.s32.totalorder %s201, %s215
      %p217 = scmp.eq.s32.totalorder %s44, 0
      %p218 = por %p216, %p217
      %s220 = sadd.s32 %s219, 1
      %p223 = scmp.eq.s32.totalorder %s38, 1
      %p224 = scmp.ne.s32.totalorder %s219, %s221
      %p225 = scmp.eq.s32.totalorder %s38, 0
      %p226 = por %p224, %p225
      %p227 = scmp.ne.s32.totalorder %s219, %s221
      %p228 = scmp.eq.s32.totalorder %s43, 1
      %p229 = por %p227, %p228
      %p230 = scmp.ne.s32.totalorder %s221, %s222
      %p231 = scmp.eq.s32.totalorder %s43, 0
      %p232 = por %p230, %p231
      %p233 = scmp.ne.s32.totalorder %s221, %s222
      %p234 = scmp.eq.s32.totalorder %s44, 1
      %p235 = por %p233, %p234
      %p237 = scmp.ne.s32.totalorder %s222, %s236
      %p238 = scmp.eq.s32.totalorder %s44, 0
      %p239 = por %p237, %p238
      %s241 = sadd.s32 %s240, 1
      %p244 = scmp.eq.s32.totalorder %s38, 1
      %p245 = scmp.ne.s32.totalorder %s240, %s242
      %p246 = scmp.eq.s32.totalorder %s38, 0
      %p247 = por %p245, %p246
      %p248 = scmp.ne.s32.totalorder %s240, %s242
      %p249 = scmp.eq.s32.totalorder %s43, 1
      %p250 = por %p248, %p249
      %p251 = scmp.ne.s32.totalorder %s242, %s243
      %p252 = scmp.eq.s32.totalorder %s43, 0
      %p253 = por %p251, %p252
      %p254 = scmp.ne.s32.totalorder %s242, %s243
      %p255 = scmp.eq.s32.totalorder %s44, 1
      %p256 = por %p254, %p255
      %p258 = scmp.ne.s32.totalorder %s243, %s257
      %p259 = scmp.eq.s32.totalorder %s44, 0
      %p260 = por %p258, %p259
      %s262 = sadd.s32 %s261, 1
      %p265 = scmp.eq.s32.totalorder %s38, 1
      %p266 = scmp.ne.s32.totalorder %s261, %s263
      %p267 = scmp.eq.s32.totalorder %s38, 0
      %p268 = por %p266, %p267
      %p269 = scmp.ne.s32.totalorder %s261, %s263
      %p270 = scmp.eq.s32.totalorder %s43, 1
      %p271 = por %p269, %p270
      %p272 = scmp.ne.s32.totalorder %s263, %s264
      %p273 = scmp.eq.s32.totalorder %s43, 0
      %p274 = por %p272, %p273
      %p275 = scmp.ne.s32.totalorder %s263, %s264
      %p276 = scmp.eq.s32.totalorder %s44, 1
      %p277 = por %p275, %p276
      %p279 = scmp.ne.s32.totalorder %s264, %s278
      %p280 = scmp.eq.s32.totalorder %s44, 0
      %p281 = por %p279, %p280
      %s283 = sadd.s32 %s282, 1
      %p286 = scmp.eq.s32.totalorder %s38, 1
      %p287 = scmp.ne.s32.totalorder %s282, %s284
      %p288 = scmp.eq.s32.totalorder %s38, 0
      %p289 = por %p287, %p288
      %p290 = scmp.ne.s32.totalorder %s282, %s284
      %p291 = scmp.eq.s32.totalorder %s43, 1
      %p292 = por %p290, %p291
      %p293 = scmp.ne.s32.totalorder %s284, %s285
      %p294 = scmp.eq.s32.totalorder %s43, 0
      %p295 = por %p293, %p294
      %p296 = scmp.ne.s32.totalorder %s284, %s285
      %p297 = scmp.eq.s32.totalorder %s44, 1
      %p298 = por %p296, %p297
      %p300 = scmp.ne.s32.totalorder %s285, %s299
      %p301 = scmp.eq.s32.totalorder %s44, 0
      %p302 = por %p300, %p301
      %s304 = sadd.s32 %s303, 1
      %p307 = scmp.eq.s32.totalorder %s38, 1
      %p308 = scmp.ne.s32.totalorder %s303, %s305
      %p309 = scmp.eq.s32.totalorder %s38, 0
      %p310 = por %p308, %p309
      %p311 = scmp.ne.s32.totalorder %s303, %s305
      %p312 = scmp.eq.s32.totalorder %s43, 1
      %p313 = por %p311, %p312
      %p314 = scmp.ne.s32.totalorder %s305, %s306
      %p315 = scmp.eq.s32.totalorder %s43, 0
      %p316 = por %p314, %p315
      %p317 = scmp.ne.s32.totalorder %s305, %s306
      %p318 = scmp.eq.s32.totalorder %s44, 1
      %p319 = por %p317, %p318
      %p321 = scmp.ne.s32.totalorder %s306, %s320
      %p322 = scmp.eq.s32.totalorder %s44, 0
      %p323 = por %p321, %p322
      %s325 = sadd.s32 %s324, 1
      %p328 = scmp.eq.s32.totalorder %s38, 1
      %p329 = scmp.ne.s32.totalorder %s324, %s326
      %p330 = scmp.eq.s32.totalorder %s38, 0
      %p331 = por %p329, %p330
      %p332 = scmp.ne.s32.totalorder %s324, %s326
      %p333 = scmp.eq.s32.totalorder %s43, 1
      %p334 = por %p332, %p333
      %p335 = scmp.ne.s32.totalorder %s326, %s327
      %p336 = scmp.eq.s32.totalorder %s43, 0
      %p337 = por %p335, %p336
      %p338 = scmp.ne.s32.totalorder %s326, %s327
      %p339 = scmp.eq.s32.totalorder %s44, 1
      %p340 = por %p338, %p339
      %p342 = scmp.ne.s32.totalorder %s327, %s341
      %p343 = scmp.eq.s32.totalorder %s44, 0
      %p344 = por %p342, %p343
      %s346 = sadd.s32 %s345, 1
      %p349 = scmp.eq.s32.totalorder %s38, 1
      %p350 = scmp.ne.s32.totalorder %s345, %s347
      %p351 = scmp.eq.s32.totalorder %s38, 0
      %p352 = por %p350, %p351
      %p353 = scmp.ne.s32.totalorder %s345, %s347
      %p354 = scmp.eq.s32.totalorder %s43, 1
      %p355 = por %p353, %p354
      %p356 = scmp.ne.s32.totalorder %s347, %s348
      %p357 = scmp.eq.s32.totalorder %s43, 0
      %p358 = por %p356, %p357
      %p359 = scmp.ne.s32.totalorder %s347, %s348
      %p360 = scmp.eq.s32.totalorder %s44, 1
      %p361 = por %p359, %p360
      %p363 = scmp.ne.s32.totalorder %s348, %s362
      %p364 = scmp.eq.s32.totalorder %s44, 0
      %p365 = por %p363, %p364
      %s367 = sadd.s32 %s366, 1
      %p370 = scmp.eq.s32.totalorder %s38, 1
      %p371 = scmp.ne.s32.totalorder %s366, %s368
      %p372 = scmp.eq.s32.totalorder %s38, 0
      %p373 = por %p371, %p372
      %p374 = scmp.ne.s32.totalorder %s366, %s368
      %p375 = scmp.eq.s32.totalorder %s43, 1
      %p376 = por %p374, %p375
      %p377 = scmp.ne.s32.totalorder %s368, %s369
      %p378 = scmp.eq.s32.totalorder %s43, 0
      %p379 = por %p377, %p378
      %p380 = scmp.ne.s32.totalorder %s368, %s369
      %p381 = scmp.eq.s32.totalorder %s44, 1
      %p382 = por %p380, %p381
      %p384 = scmp.ne.s32.totalorder %s369, %s383
      %p385 = scmp.eq.s32.totalorder %s44, 0
      %p386 = por %p384, %p385
      %s388 = sadd.s32 %s387, 1
      %p391 = scmp.eq.s32.totalorder %s38, 1
      %p392 = scmp.ne.s32.totalorder %s387, %s389
      %p393 = scmp.eq.s32.totalorder %s38, 0
      %p394 = por %p392, %p393
      %p395 = scmp.ne.s32.totalorder %s387, %s389
      %p396 = scmp.eq.s32.totalorder %s43, 1
      %p397 = por %p395, %p396
      %p398 = scmp.ne.s32.totalorder %s389, %s390
      %p399 = scmp.eq.s32.totalorder %s43, 0
      %p400 = por %p398, %p399
      %p401 = scmp.ne.s32.totalorder %s389, %s390
      %p402 = scmp.eq.s32.totalorder %s44, 1
      %p403 = por %p401, %p402
      %p405 = scmp.ne.s32.totalorder %s390, %s404
      %p406 = scmp.eq.s32.totalorder %s44, 0
      %p407 = por %p405, %p406
      %s409 = sadd.s32 %s408, 1
      %p412 = scmp.eq.s32.totalorder %s38, 1
      %p413 = scmp.ne.s32.totalorder %s408, %s410
      %p414 = scmp.eq.s32.totalorder %s38, 0
      %p415 = por %p413, %p414
      %p416 = scmp.ne.s32.totalorder %s408, %s410
      %p417 = scmp.eq.s32.totalorder %s43, 1
      %p418 = por %p416, %p417
      %p419 = scmp.ne.s32.totalorder %s410, %s411
      %p420 = scmp.eq.s32.totalorder %s43, 0
      %p421 = por %p419, %p420
      %p422 = scmp.ne.s32.totalorder %s410, %s411
      %p423 = scmp.eq.s32.totalorder %s44, 1
      %p424 = por %p422, %p423
      %p426 = scmp.ne.s32.totalorder %s411, %s425
      %p427 = scmp.eq.s32.totalorder %s44, 0
      %p428 = por %p426, %p427
      %s430 = sadd.s32 %s429, 1
      %p433 = scmp.eq.s32.totalorder %s38, 1
      %p434 = scmp.ne.s32.totalorder %s429, %s431
      %p435 = scmp.eq.s32.totalorder %s38, 0
      %p436 = por %p434, %p435
      %p437 = scmp.ne.s32.totalorder %s429, %s431
      %p438 = scmp.eq.s32.totalorder %s43, 1
      %p439 = por %p437, %p438
      %p440 = scmp.ne.s32.totalorder %s431, %s432
      %p441 = scmp.eq.s32.totalorder %s43, 0
      %p442 = por %p440, %p441
      %p443 = scmp.ne.s32.totalorder %s431, %s432
      %p444 = scmp.eq.s32.totalorder %s44, 1
      %p445 = por %p443, %p444
      %p447 = scmp.ne.s32.totalorder %s432, %s446
      %p448 = scmp.eq.s32.totalorder %s44, 0
      %p449 = por %p447, %p448
      %s451 = sadd.s32 %s450, 1
      %p454 = scmp.eq.s32.totalorder %s38, 1
      %p455 = scmp.ne.s32.totalorder %s450, %s452
      %p456 = scmp.eq.s32.totalorder %s38, 0
      %p457 = por %p455, %p456
      %p458 = scmp.ne.s32.totalorder %s450, %s452
      %p459 = scmp.eq.s32.totalorder %s43, 1
      %p460 = por %p458, %p459
      %p461 = scmp.ne.s32.totalorder %s452, %s453
      %p462 = scmp.eq.s32.totalorder %s43, 0
      %p463 = por %p461, %p462
      %p464 = scmp.ne.s32.totalorder %s452, %s453
      %p465 = scmp.eq.s32.totalorder %s44, 1
      %p466 = por %p464, %p465
      %p468 = scmp.ne.s32.totalorder %s453, %s467
      %p469 = scmp.eq.s32.totalorder %s44, 0
      %p470 = por %p468, %p469
      %s471 = ssub.s32 %s38, %s45
      %p472 = scmp.eq.s32.totalorder %s471, 0
      %s474 = sadd.s32 %s473, 1
      %s475 = scalar_select %p472, %s473, %s474
      %p478 = pneg %p472
      %p479 = scmp.eq.s32.totalorder %s38, 1
      %p480 = por %p478, %p479
      %p481 = scmp.ne.s32.totalorder %s473, %s476
      %p482 = scmp.eq.s32.totalorder %s38, 0
      %p483 = por %p481, %p482
      %p484 = scmp.ne.s32.totalorder %s473, %s476
      %p485 = scmp.eq.s32.totalorder %s43, 1
      %p486 = por %p484, %p485
      %p487 = scmp.ne.s32.totalorder %s476, %s477
      %p488 = scmp.eq.s32.totalorder %s43, 0
      %p489 = por %p487, %p488
      %p490 = scmp.ne.s32.totalorder %s476, %s477
      %p491 = scmp.eq.s32.totalorder %s44, 1
      %p492 = por %p490, %p491
      %p494 = scmp.ne.s32.totalorder %s477, %s493
      %p495 = scmp.eq.s32.totalorder %s44, 0
      %p496 = por %p494, %p495
      %s497 = ssub.s32 %s38, %s45
      %p498 = scmp.eq.s32.totalorder %s497, 0
      %s500 = sadd.s32 %s499, 1
      %s501 = scalar_select %p498, %s499, %s500
      %p504 = pneg %p498
      %p505 = scmp.eq.s32.totalorder %s38, 1
      %p506 = por %p504, %p505
      %p507 = scmp.ne.s32.totalorder %s499, %s502
      %p508 = scmp.eq.s32.totalorder %s38, 0
      %p509 = por %p507, %p508
      %p510 = scmp.ne.s32.totalorder %s499, %s502
      %p511 = scmp.eq.s32.totalorder %s43, 1
      %p512 = por %p510, %p511
      %p513 = scmp.ne.s32.totalorder %s502, %s503
      %p514 = scmp.eq.s32.totalorder %s43, 0
      %p515 = por %p513, %p514
      %p516 = scmp.ne.s32.totalorder %s502, %s503
      %p517 = scmp.eq.s32.totalorder %s44, 1
      %p518 = por %p516, %p517
      %p520 = scmp.ne.s32.totalorder %s503, %s519
      %p521 = scmp.eq.s32.totalorder %s44, 0
      %p522 = por %p520, %p521
      %p523 = scmp.le.s32.totalorder 1, %s38
      %p524 = scmp.lt.s32.totalorder %s38, 3
      %p525 = pnand %p523, %p524
      %p526 = pneg %p525
      // Predicated region
      $region9: #{tpu_custom_call.1} parent=5 // pred_check
        _
      $region10: #{tpu_custom_call.1} parent=5 // pred_check_branch
        %528 = sbr.rel (%p525) target = $region12
      $region11: #{tpu_custom_call.1} parent=5 // pred_region
        %s529 = ssub.s32 %s38, 1
        // Predicated region
        $region13: #{tpu_custom_call.1} parent=11 // pred_check
          %p530 = pneg %p85
        $region14: #{tpu_custom_call.1} parent=11 // pred_check_branch
          %532 = sbr.rel (%p530) target = $region16
        $region15: #{tpu_custom_call.1} parent=11 // pred_region
          _
        $region16: #{tpu_custom_call.1} parent=11 // pred_fallthru
          _
        // Predicated region
        $region17: #{tpu_custom_call.1} parent=11 // pred_check
          %p533 = pneg %p106
        $region18: #{tpu_custom_call.1} parent=11 // pred_check_branch
          %535 = sbr.rel (%p533) target = $region20
        $region19: #{tpu_custom_call.1} parent=11 // pred_region
          _
        $region20: #{tpu_custom_call.1} parent=11 // pred_fallthru
          _
        // Predicated region
        $region21: #{tpu_custom_call.1} parent=11 // pred_check
          %p536 = pneg %p127
        $region22: #{tpu_custom_call.1} parent=11 // pred_check_branch
          %538 = sbr.rel (%p536) target = $region24
        $region23: #{tpu_custom_call.1} parent=11 // pred_region
          _
        $region24: #{tpu_custom_call.1} parent=11 // pred_fallthru
          _
        // Predicated region
        $region25: #{tpu_custom_call.1} parent=11 // pred_check
          %p539 = pneg %p148
        $region26: #{tpu_custom_call.1} parent=11 // pred_check_branch
          %541 = sbr.rel (%p539) target = $region28
        $region27: #{tpu_custom_call.1} parent=11 // pred_region
          _
        $region28: #{tpu_custom_call.1} parent=11 // pred_fallthru
          _
        // Predicated region
        $region29: #{tpu_custom_call.1} parent=11 // pred_check
          %p542 = pneg %p169
        $region30: #{tpu_custom_call.1} parent=11 // pred_check_branch
          %544 = sbr.rel (%p542) target = $region32
        $region31: #{tpu_custom_call.1} parent=11 // pred_region
          _
        $region32: #{tpu_custom_call.1} parent=11 // pred_fallthru
          _
        // Predicated region
        $region33: #{tpu_custom_call.1} parent=11 // pred_check
          %p545 = pneg %p190
        $region34: #{tpu_custom_call.1} parent=11 // pred_check_branch
          %547 = sbr.rel (%p545) target = $region36
        $region35: #{tpu_custom_call.1} parent=11 // pred_region
          _
        $region36: #{tpu_custom_call.1} parent=11 // pred_fallthru
          _
        // Predicated region
        $region37: #{tpu_custom_call.1} parent=11 // pred_check
          %p548 = pneg %p211
        $region38: #{tpu_custom_call.1} parent=11 // pred_check_branch
          %550 = sbr.rel (%p548) target = $region40
        $region39: #{tpu_custom_call.1} parent=11 // pred_region
          _
        $region40: #{tpu_custom_call.1} parent=11 // pred_fallthru
          _
        // Predicated region
        $region41: #{tpu_custom_call.1} parent=11 // pred_check
          %p551 = pneg %p232
        $region42: #{tpu_custom_call.1} parent=11 // pred_check_branch
          %553 = sbr.rel (%p551) target = $region44
        $region43: #{tpu_custom_call.1} parent=11 // pred_region
          _
        $region44: #{tpu_custom_call.1} parent=11 // pred_fallthru
          _
        // Predicated region
        $region45: #{tpu_custom_call.1} parent=11 // pred_check
          %p554 = pneg %p253
        $region46: #{tpu_custom_call.1} parent=11 // pred_check_branch
          %556 = sbr.rel (%p554) target = $region48
        $region47: #{tpu_custom_call.1} parent=11 // pred_region
          _
        $region48: #{tpu_custom_call.1} parent=11 // pred_fallthru
          _
        // Predicated region
        $region49: #{tpu_custom_call.1} parent=11 // pred_check
          %p557 = pneg %p274
        $region50: #{tpu_custom_call.1} parent=11 // pred_check_branch
          %559 = sbr.rel (%p557) target = $region52
        $region51: #{tpu_custom_call.1} parent=11 // pred_region
          _
        $region52: #{tpu_custom_call.1} parent=11 // pred_fallthru
          _
        // Predicated region
        $region53: #{tpu_custom_call.1} parent=11 // pred_check
          %p560 = pneg %p295
        $region54: #{tpu_custom_call.1} parent=11 // pred_check_branch
          %562 = sbr.rel (%p560) target = $region56
        $region55: #{tpu_custom_call.1} parent=11 // pred_region
          _
        $region56: #{tpu_custom_call.1} parent=11 // pred_fallthru
          _
        // Predicated region
        $region57: #{tpu_custom_call.1} parent=11 // pred_check
          %p563 = pneg %p316
        $region58: #{tpu_custom_call.1} parent=11 // pred_check_branch
          %565 = sbr.rel (%p563) target = $region60
        $region59: #{tpu_custom_call.1} parent=11 // pred_region
          %567 = vsyncadd [#allocation4], 0
          %s568 = sshll.u32 %s12, 4
          %s569 = int_to_ptr.hbm [resolvable:$true] %s568
          %s570 = sshll.u32 [#allocation3], 4
          %s571 = int_to_ptr.vmem [resolvable:$true] %s570
          %576 = dma.hbm_to_vmem [thread:$0]  %s569, 2048, %s571, [#allocation4], 128, 128, 8
        $region60: #{tpu_custom_call.1} parent=11 // pred_fallthru
          _
        // Predicated region
        $region61: #{tpu_custom_call.1} parent=11 // pred_check
          %p577 = pneg %p337
        $region62: #{tpu_custom_call.1} parent=11 // pred_check_branch
          %579 = sbr.rel (%p577) target = $region64
        $region63: #{tpu_custom_call.1} parent=11 // pred_region
          _
        $region64: #{tpu_custom_call.1} parent=11 // pred_fallthru
          _
        // Predicated region
        $region65: #{tpu_custom_call.1} parent=11 // pred_check
          %p580 = pneg %p358
        $region66: #{tpu_custom_call.1} parent=11 // pred_check_branch
          %582 = sbr.rel (%p580) target = $region68
        $region67: #{tpu_custom_call.1} parent=11 // pred_region
          %584 = vsyncadd [#allocation7], 0
          %s585 = sshll.u32 %s14, 4
          %s586 = int_to_ptr.hbm [resolvable:$true] %s585
          %s587 = sshll.u32 [#allocation6], 4
          %s588 = int_to_ptr.vmem [resolvable:$true] %s587
          %593 = dma.hbm_to_vmem [thread:$0]  %s586, 2048, %s588, [#allocation7], 128, 128, 8
        $region68: #{tpu_custom_call.1} parent=11 // pred_fallthru
          _
        // Predicated region
        $region69: #{tpu_custom_call.1} parent=11 // pred_check
          %p594 = pneg %p379
        $region70: #{tpu_custom_call.1} parent=11 // pred_check_branch
          %596 = sbr.rel (%p594) target = $region72
        $region71: #{tpu_custom_call.1} parent=11 // pred_region
          _
        $region72: #{tpu_custom_call.1} parent=11 // pred_fallthru
          _
        // Predicated region
        $region73: #{tpu_custom_call.1} parent=11 // pred_check
          %p597 = pneg %p400
        $region74: #{tpu_custom_call.1} parent=11 // pred_check_branch
          %599 = sbr.rel (%p597) target = $region76
        $region75: #{tpu_custom_call.1} parent=11 // pred_region
          %601 = vsyncadd [#allocation7], 0
          %s602 = sshll.u32 %s16, 4
          %s603 = int_to_ptr.hbm [resolvable:$true] %s602
          %s604 = sshll.u32 [#allocation8], 4
          %s605 = int_to_ptr.vmem [resolvable:$true] %s604
          %610 = dma.hbm_to_vmem [thread:$0]  %s603, 2048, %s605, [#allocation7], 128, 128, 8
        $region76: #{tpu_custom_call.1} parent=11 // pred_fallthru
          _
        // Predicated region
        $region77: #{tpu_custom_call.1} parent=11 // pred_check
          %p611 = pneg %p421
        $region78: #{tpu_custom_call.1} parent=11 // pred_check_branch
          %613 = sbr.rel (%p611) target = $region80
        $region79: #{tpu_custom_call.1} parent=11 // pred_region
          _
        $region80: #{tpu_custom_call.1} parent=11 // pred_fallthru
          _
        // Predicated region
        $region81: #{tpu_custom_call.1} parent=11 // pred_check
          %p614 = pneg %p442
        $region82: #{tpu_custom_call.1} parent=11 // pred_check_branch
          %616 = sbr.rel (%p614) target = $region84
        $region83: #{tpu_custom_call.1} parent=11 // pred_region
          _
        $region84: #{tpu_custom_call.1} parent=11 // pred_fallthru
          _
        // Predicated region
        $region85: #{tpu_custom_call.1} parent=11 // pred_check
          %p617 = pneg %p463
        $region86: #{tpu_custom_call.1} parent=11 // pred_check_branch
          %619 = sbr.rel (%p617) target = $region88
        $region87: #{tpu_custom_call.1} parent=11 // pred_region
          _
        $region88: #{tpu_custom_call.1} parent=11 // pred_fallthru
          _
      $region12: #{tpu_custom_call.1} parent=5 // pred_fallthru
        _
      %p620 = scmp.lt.s32.totalorder %s38, 2
      // Predicated region
      $region89: #{tpu_custom_call.1} parent=5 // pred_check
        %p621 = pneg %p620
      $region90: #{tpu_custom_call.1} parent=5 // pred_check_branch
        %623 = sbr.rel (%p621) target = $region92
      $region91: #{tpu_custom_call.1} parent=5 // pred_region
        // Predicated region
        $region93: #{tpu_custom_call.1} parent=91 // pred_check
          %p624 = pneg %p58
        $region94: #{tpu_custom_call.1} parent=91 // pred_check_branch
          %626 = sbr.rel (%p624) target = $region96
        $region95: #{tpu_custom_call.1} parent=91 // pred_region
          %s627 = smul.u32 32, %s38
          %p628 = scmp.lt.s32.totalorder %s627, 63
          %s629 = scalar_select %p628, %s627, 63
          %s630 = smul.addr %s629, 8
          %s631 = scalar_lea.vmem %s0, %s630
          %s632 = smul.u32 32, %s38
        $region96: #{tpu_custom_call.1} parent=91 // pred_fallthru
          _
      $region92: #{tpu_custom_call.1} parent=5 // pred_fallthru
        _
      %p633 = scmp.le.s32.totalorder 1, %s38
      %p634 = scmp.lt.s32.totalorder %s38, 3
      %p635 = pnand %p633, %p634
      %p636 = pneg %p635
      // Predicated region
      $region97: #{tpu_custom_call.1} parent=5 // pred_check
        _
      $region98: #{tpu_custom_call.1} parent=5 // pred_check_branch
        %638 = sbr.rel (%p635) target = $region100
      $region99: #{tpu_custom_call.1} parent=5 // pred_region
        %s639 = ssub.s32 %s38, 1
        // Predicated region
        $region101: #{tpu_custom_call.1} parent=99 // pred_check
          %p640 = pneg %p316
        $region102: #{tpu_custom_call.1} parent=99 // pred_check_branch
          %642 = sbr.rel (%p640) target = $region104
        $region103: #{tpu_custom_call.1} parent=99 // pred_region
          %644 = dma.done [#allocation4], 2048
        $region104: #{tpu_custom_call.1} parent=99 // pred_fallthru
          _
        // Predicated region
        $region105: #{tpu_custom_call.1} parent=99 // pred_check
          %p645 = pneg %p358
        $region106: #{tpu_custom_call.1} parent=99 // pred_check_branch
          %647 = sbr.rel (%p645) target = $region108
        $region107: #{tpu_custom_call.1} parent=99 // pred_region
          %649 = dma.done [#allocation7], 2048
        $region108: #{tpu_custom_call.1} parent=99 // pred_fallthru
          _
        // Predicated region
        $region109: #{tpu_custom_call.1} parent=99 // pred_check
          %p650 = pneg %p400
        $region110: #{tpu_custom_call.1} parent=99 // pred_check_branch
          %652 = sbr.rel (%p650) target = $region112
        $region111: #{tpu_custom_call.1} parent=99 // pred_region
          %654 = dma.done [#allocation7], 2048
        $region112: #{tpu_custom_call.1} parent=99 // pred_fallthru
          _
        %s655 = smul.u32 32, %s43
        %p656 = scmp.lt.s32.totalorder %s655, 63
        %s657 = scalar_select %p656, %s655, 63
        %s658 = smul.addr %s657, 8
        %s659 = scalar_lea.vmem %s0, %s658
        %p660 = pneg %p64
        %p661 = pneg %p61
        %p662 = pneg %p85
        %p663 = pneg %p82
        %p664 = pneg %p106
        %p665 = pneg %p103
        %p666 = pneg %p127
        %p667 = pneg %p124
        %p668 = pneg %p148
        %p669 = pneg %p145
        %p670 = pneg %p169
        %p671 = pneg %p166
        %p672 = pneg %p190
        %p673 = pneg %p187
        %p674 = pneg %p211
        %p675 = pneg %p208
        %p676 = pneg %p232
        %p677 = pneg %p229
        %p678 = pneg %p253
        %p679 = pneg %p250
        %p680 = pneg %p274
        %p681 = pneg %p271
        %p682 = pneg %p295
        %p683 = pneg %p292
        %p684 = pneg %p316
        %p685 = pneg %p313
        %p686 = pneg %p337
        %p687 = pneg %p334
        %p688 = pneg %p358
        %p689 = pneg %p355
        %p690 = pneg %p379
        %p691 = pneg %p376
        %p692 = pneg %p400
        %p693 = pneg %p397
        %p694 = pneg %p421
        %p695 = pneg %p418
        %p696 = pneg %p442
        %p697 = pneg %p439
        %p698 = pneg %p463
        %p699 = pneg %p460
        %p700 = pneg %p489
        %p701 = pneg %p486
        %s702 = sand.u32 %s476, 1
        %s703 = scalar_lea.sflag [#allocation5], %s702
        %s704 = sand.u32 %s476, 1
        %s705 = smul.addr %s704, 2
        %s706 = scalar_lea.vmem [#allocation9], %s705
        %p707 = pneg %p515
        %p708 = pneg %p512
        %s709 = sand.u32 %s502, 1
        %s710 = scalar_lea.sflag [#allocation11], %s709
        %s711 = sand.u32 %s502, 1
        %s712 = smul.addr %s711, 256
        %s713 = scalar_lea.vmem [#allocation10], %s712
        %s714 = smul.u32 32, %s43
        %p715 = scmp.lt.s32.totalorder %s714, 63
        %s716 = scalar_select %p715, %s714, 63
        %s717 = smul.addr %s716, 8
        %s718 = scalar_lea.vmem %s0, %s717
        %s719 = smul.u32 32, %s43
        %s720 = smul.u32 2, %s43
        %s721 = smul.u32 32, %s43
        %v722 = vld [vmem:[%s718] sm:$0xff]
        %v723 = vld [vmem:[%s718 + $0x8] sm:$0xff]
        %v724 = vld [vmem:[%s718 + $0x10] sm:$0xff]
        %v725 = vld [vmem:[%s718 + $0x18] sm:$0xff]
        %v726 = vld [vmem:[%s718 + $0x20] sm:$0xff]
        %v727 = vld [vmem:[%s718 + $0x28] sm:$0xff]
        %v728 = vld [vmem:[%s718 + $0x30] sm:$0xff]
        %v729 = vld [vmem:[%s718 + $0x38] sm:$0xff]
        %v730 = vld [vmem:[%s718 + $0x40] sm:$0xff]
        %v731 = vld [vmem:[%s718 + $0x48] sm:$0xff]
        %v732 = vld [vmem:[%s718 + $0x50] sm:$0xff]
        %v733 = vld [vmem:[%s718 + $0x58] sm:$0xff]
        %v734 = vld [vmem:[%s718 + $0x60] sm:$0xff]
        %v735 = vld [vmem:[%s718 + $0x68] sm:$0xff]
        %v736 = vld [vmem:[%s718 + $0x70] sm:$0xff]
        %v737 = vld [vmem:[%s718 + $0x78] sm:$0xff]
        %v738 = vld [vmem:[%s718 + $0x80] sm:$0xff]
        %v739 = vld [vmem:[%s718 + $0x88] sm:$0xff]
        %v740 = vld [vmem:[%s718 + $0x90] sm:$0xff]
        %v741 = vld [vmem:[%s718 + $0x98] sm:$0xff]
        %v742 = vld [vmem:[%s718 + $0xa0] sm:$0xff]
        %v743 = vld [vmem:[%s718 + $0xa8] sm:$0xff]
        %v744 = vld [vmem:[%s718 + $0xb0] sm:$0xff]
        %v745 = vld [vmem:[%s718 + $0xb8] sm:$0xff]
        %v746 = vld [vmem:[%s718 + $0xc0] sm:$0xff]
        %v747 = vld [vmem:[%s718 + $0xc8] sm:$0xff]
        %v748 = vld [vmem:[%s718 + $0xd0] sm:$0xff]
        %v749 = vld [vmem:[%s718 + $0xd8] sm:$0xff]
        %v750 = vld [vmem:[%s718 + $0xe0] sm:$0xff]
        %v751 = vld [vmem:[%s718 + $0xe8] sm:$0xff]
        %v752 = vld [vmem:[%s718 + $0xf0] sm:$0xff]
        %v753 = vld [vmem:[%s718 + $0xf8] sm:$0xff]
        %v754 = vld [vmem:[%s1] sm:$0xff]
        %v755 = vld [vmem:[%s2] sm:$0x1]
        %v757 = vperm.slane %v755, 0
        %vm759 = vcmask 64512
        %v761 = vsel %vm759, %v722, 0
        %v764 = vsel %vm759, %v723, 0
        %v767 = vsel %vm759, %v724, 0
        %v770 = vsel %vm759, %v725, 0
        %v773 = vsel %vm759, %v726, 0
        %v776 = vsel %vm759, %v727, 0
        %v779 = vsel %vm759, %v728, 0
        %v782 = vsel %vm759, %v729, 0
        %v785 = vsel %vm759, %v730, 0
        %v788 = vsel %vm759, %v731, 0
        %v791 = vsel %vm759, %v732, 0
        %v794 = vsel %vm759, %v733, 0
        %v797 = vsel %vm759, %v734, 0
        %v800 = vsel %vm759, %v735, 0
        %v803 = vsel %vm759, %v736, 0
        %v806 = vsel %vm759, %v737, 0
        %v809 = vsel %vm759, %v738, 0
        %v812 = vsel %vm759, %v739, 0
        %v815 = vsel %vm759, %v740, 0
        %v818 = vsel %vm759, %v741, 0
        %v821 = vsel %vm759, %v742, 0
        %v824 = vsel %vm759, %v743, 0
        %v827 = vsel %vm759, %v744, 0
        %v830 = vsel %vm759, %v745, 0
        %v833 = vsel %vm759, %v746, 0
        %v836 = vsel %vm759, %v747, 0
        %v839 = vsel %vm759, %v748, 0
        %v842 = vsel %vm759, %v749, 0
        %v845 = vsel %vm759, %v750, 0
        %v848 = vsel %vm759, %v751, 0
        %v851 = vsel %vm759, %v752, 0
        %v854 = vsel %vm759, %v753, 0
        %856 = vmatpush.msra.mxu0 0.0
        %857 = vmatpush.msra.mxu0 0.0
        %858 = vmatpush.msra.mxu0 0.0
        %859 = vmatpush.msra.mxu0 0.0
        %860 = vmatpush.msra.mxu0 0.0
        %861 = vmatpush.msra.mxu0 0.0
        %862 = vmatpush.msra.mxu0 0.0
        %863 = vmatpush.msra.mxu0 0.0
        %864 = vmatpush.msra.mxu0 0.0
        %865 = vmatpush.msra.mxu0 0.0
        %866 = vmatpush.msra.mxu0 0.0
        %867 = vmatpush.msra.mxu0 0.0
        %868 = vmatpush.msra.mxu0 0.0
        %869 = vmatpush.msra.mxu0 0.0
        %870 = vmatpush.msra.mxu0 0.0
        %871 = vmatpush.msra.mxu0 %v754
        %872 = vmatmul.f32.gmra.mxu0 %v761
        %v873 = vpop.f32.mrf.mxu0
        %v874 = vadd.f32 %v757, %v873
        %875 = vmatmul.f32.gmra.mxu0 %v764
        %v876 = vpop.f32.mrf.mxu0
        %v877 = vadd.f32 %v757, %v876
        %878 = vmatmul.f32.gmra.mxu0 %v767
        %v879 = vpop.f32.mrf.mxu0
        %v880 = vadd.f32 %v757, %v879
        %881 = vmatmul.f32.gmra.mxu0 %v770
        %v882 = vpop.f32.mrf.mxu0
        %v883 = vadd.f32 %v757, %v882
        %884 = vmatmul.f32.gmra.mxu0 %v773
        %v885 = vpop.f32.mrf.mxu0
        %v886 = vadd.f32 %v757, %v885
        %887 = vmatmul.f32.gmra.mxu0 %v776
        %v888 = vpop.f32.mrf.mxu0
        %v889 = vadd.f32 %v757, %v888
        %890 = vmatmul.f32.gmra.mxu0 %v779
        %v891 = vpop.f32.mrf.mxu0
        %v892 = vadd.f32 %v757, %v891
        %893 = vmatmul.f32.gmra.mxu0 %v782
        %v894 = vpop.f32.mrf.mxu0
        %v895 = vadd.f32 %v757, %v894
        %896 = vmatmul.f32.gmra.mxu0 %v785
        %v897 = vpop.f32.mrf.mxu0
        %v898 = vadd.f32 %v757, %v897
        %899 = vmatmul.f32.gmra.mxu0 %v788
        %v900 = vpop.f32.mrf.mxu0
        %v901 = vadd.f32 %v757, %v900
        %902 = vmatmul.f32.gmra.mxu0 %v791
        %v903 = vpop.f32.mrf.mxu0
        %v904 = vadd.f32 %v757, %v903
        %905 = vmatmul.f32.gmra.mxu0 %v794
        %v906 = vpop.f32.mrf.mxu0
        %v907 = vadd.f32 %v757, %v906
        %908 = vmatmul.f32.gmra.mxu0 %v797
        %v909 = vpop.f32.mrf.mxu0
        %v910 = vadd.f32 %v757, %v909
        %911 = vmatmul.f32.gmra.mxu0 %v800
        %v912 = vpop.f32.mrf.mxu0
        %v913 = vadd.f32 %v757, %v912
        %914 = vmatmul.f32.gmra.mxu0 %v803
        %v915 = vpop.f32.mrf.mxu0
        %v916 = vadd.f32 %v757, %v915
        %917 = vmatmul.f32.gmra.mxu0 %v806
        %v918 = vpop.f32.mrf.mxu0
        %v919 = vadd.f32 %v757, %v918
        %920 = vmatmul.f32.gmra.mxu0 %v809
        %v921 = vpop.f32.mrf.mxu0
        %v922 = vadd.f32 %v757, %v921
        %923 = vmatmul.f32.gmra.mxu0 %v812
        %v924 = vpop.f32.mrf.mxu0
        %v925 = vadd.f32 %v757, %v924
        %926 = vmatmul.f32.gmra.mxu0 %v815
        %v927 = vpop.f32.mrf.mxu0
        %v928 = vadd.f32 %v757, %v927
        %929 = vmatmul.f32.gmra.mxu0 %v818
        %v930 = vpop.f32.mrf.mxu0
        %v931 = vadd.f32 %v757, %v930
        %932 = vmatmul.f32.gmra.mxu0 %v821
        %v933 = vpop.f32.mrf.mxu0
        %v934 = vadd.f32 %v757, %v933
        %935 = vmatmul.f32.gmra.mxu0 %v824
        %v936 = vpop.f32.mrf.mxu0
        %v937 = vadd.f32 %v757, %v936
        %938 = vmatmul.f32.gmra.mxu0 %v827
        %v939 = vpop.f32.mrf.mxu0
        %v940 = vadd.f32 %v757, %v939
        %941 = vmatmul.f32.gmra.mxu0 %v830
        %v942 = vpop.f32.mrf.mxu0
        %v943 = vadd.f32 %v757, %v942
        %944 = vmatmul.f32.gmra.mxu0 %v833
        %v945 = vpop.f32.mrf.mxu0
        %v946 = vadd.f32 %v757, %v945
        %947 = vmatmul.f32.gmra.mxu0 %v836
        %v948 = vpop.f32.mrf.mxu0
        %v949 = vadd.f32 %v757, %v948
        %950 = vmatmul.f32.gmra.mxu0 %v839
        %v951 = vpop.f32.mrf.mxu0
        %v952 = vadd.f32 %v757, %v951
        %953 = vmatmul.f32.gmra.mxu0 %v842
        %v954 = vpop.f32.mrf.mxu0
        %v955 = vadd.f32 %v757, %v954
        %956 = vmatmul.f32.gmra.mxu0 %v845
        %v957 = vpop.f32.mrf.mxu0
        %v958 = vadd.f32 %v757, %v957
        %959 = vmatmul.f32.gmra.mxu0 %v848
        %v960 = vpop.f32.mrf.mxu0
        %v961 = vadd.f32 %v757, %v960
        %962 = vmatmul.f32.gmra.mxu0 %v851
        %v963 = vpop.f32.mrf.mxu0
        %v964 = vadd.f32 %v757, %v963
        %965 = vmatmul.f32.gmra.mxu0 %v854
        %v966 = vpop.f32.mrf.mxu0
        %v967 = vadd.f32 %v757, %v966
        %968 = vdwg.mxu0
        %v969 = vmax.f32 %v874, 0.0
        %v970 = vmax.f32 %v877, 0.0
        %v971 = vmax.f32 %v880, 0.0
        %v972 = vmax.f32 %v883, 0.0
        %v973 = vmax.f32 %v886, 0.0
        %v974 = vmax.f32 %v889, 0.0
        %v975 = vmax.f32 %v892, 0.0
        %v976 = vmax.f32 %v895, 0.0
        %v977 = vmax.f32 %v898, 0.0
        %v978 = vmax.f32 %v901, 0.0
        %v979 = vmax.f32 %v904, 0.0
        %v980 = vmax.f32 %v907, 0.0
        %v981 = vmax.f32 %v910, 0.0
        %v982 = vmax.f32 %v913, 0.0
        %v983 = vmax.f32 %v916, 0.0
        %v984 = vmax.f32 %v919, 0.0
        %v985 = vmax.f32 %v922, 0.0
        %v986 = vmax.f32 %v925, 0.0
        %v987 = vmax.f32 %v928, 0.0
        %v988 = vmax.f32 %v931, 0.0
        %v989 = vmax.f32 %v934, 0.0
        %v990 = vmax.f32 %v937, 0.0
        %v991 = vmax.f32 %v940, 0.0
        %v992 = vmax.f32 %v943, 0.0
        %v993 = vmax.f32 %v946, 0.0
        %v994 = vmax.f32 %v949, 0.0
        %v995 = vmax.f32 %v952, 0.0
        %v996 = vmax.f32 %v955, 0.0
        %v997 = vmax.f32 %v958, 0.0
        %v998 = vmax.f32 %v961, 0.0
        %v999 = vmax.f32 %v964, 0.0
        %v1000 = vmax.f32 %v967, 0.0
        %v1001 = vld [vmem:[%s3] sm:$0xff]
        %v1002 = vld [vmem:[%s3 + $0x8] sm:$0xff]
        %v1003 = vld [vmem:[%s3 + $0x10] sm:$0xff]
        %v1004 = vld [vmem:[%s3 + $0x18] sm:$0xff]
        %v1005 = vld [vmem:[%s3 + $0x20] sm:$0xff]
        %v1006 = vld [vmem:[%s3 + $0x28] sm:$0xff]
        %v1007 = vld [vmem:[%s3 + $0x30] sm:$0xff]
        %v1008 = vld [vmem:[%s3 + $0x38] sm:$0xff]
        %v1009 = vld [vmem:[%s3 + $0x40] sm:$0xff]
        %v1010 = vld [vmem:[%s3 + $0x48] sm:$0xff]
        %v1011 = vld [vmem:[%s3 + $0x50] sm:$0xff]
        %v1012 = vld [vmem:[%s3 + $0x58] sm:$0xff]
        %v1013 = vld [vmem:[%s3 + $0x60] sm:$0xff]
        %v1014 = vld [vmem:[%s3 + $0x68] sm:$0xff]
        %v1015 = vld [vmem:[%s3 + $0x70] sm:$0xff]
        %v1016 = vld [vmem:[%s3 + $0x78] sm:$0xff]
        %v1017 = vld [vmem:[%s4] sm:$0x1]
        %v1019 = vperm.slane %v1017, 0
        %1021 = vmatpush.msra.mxu0 %v1016
        %1022 = vmatpush.msra.mxu0 %v1015
        %1023 = vmatpush.msra.mxu0 %v1014
        %1024 = vmatpush.msra.mxu0 %v1013
        %1025 = vmatpush.msra.mxu0 %v1012
        %1026 = vmatpush.msra.mxu0 %v1011
        %1027 = vmatpush.msra.mxu0 %v1010
        %1028 = vmatpush.msra.mxu0 %v1009
        %1029 = vmatpush.msra.mxu0 %v1008
        %1030 = vmatpush.msra.mxu0 %v1007
        %1031 = vmatpush.msra.mxu0 %v1006
        %1032 = vmatpush.msra.mxu0 %v1005
        %1033 = vmatpush.msra.mxu0 %v1004
        %1034 = vmatpush.msra.mxu0 %v1003
        %1035 = vmatpush.msra.mxu0 %v1002
        %1036 = vmatpush.msra.mxu0 %v1001
        %1037 = vmatmul.f32.gmra.mxu0 %v969
        %v1038 = vpop.f32.mrf.mxu0
        %v1039 = vadd.f32 %v1019, %v1038
        %1040 = vmatmul.f32.gmra.mxu0 %v970
        %v1041 = vpop.f32.mrf.mxu0
        %v1042 = vadd.f32 %v1019, %v1041
        %1043 = vmatmul.f32.gmra.mxu0 %v971
        %v1044 = vpop.f32.mrf.mxu0
        %v1045 = vadd.f32 %v1019, %v1044
        %1046 = vmatmul.f32.gmra.mxu0 %v972
        %v1047 = vpop.f32.mrf.mxu0
        %v1048 = vadd.f32 %v1019, %v1047
        %1049 = vmatmul.f32.gmra.mxu0 %v973
        %v1050 = vpop.f32.mrf.mxu0
        %v1051 = vadd.f32 %v1019, %v1050
        %1052 = vmatmul.f32.gmra.mxu0 %v974
        %v1053 = vpop.f32.mrf.mxu0
        %v1054 = vadd.f32 %v1019, %v1053
        %1055 = vmatmul.f32.gmra.mxu0 %v975
        %v1056 = vpop.f32.mrf.mxu0
        %v1057 = vadd.f32 %v1019, %v1056
        %1058 = vmatmul.f32.gmra.mxu0 %v976
        %v1059 = vpop.f32.mrf.mxu0
        %v1060 = vadd.f32 %v1019, %v1059
        %1061 = vmatmul.f32.gmra.mxu0 %v977
        %v1062 = vpop.f32.mrf.mxu0
        %v1063 = vadd.f32 %v1019, %v1062
        %1064 = vmatmul.f32.gmra.mxu0 %v978
        %v1065 = vpop.f32.mrf.mxu0
        %v1066 = vadd.f32 %v1019, %v1065
        %1067 = vmatmul.f32.gmra.mxu0 %v979
        %v1068 = vpop.f32.mrf.mxu0
        %v1069 = vadd.f32 %v1019, %v1068
        %1070 = vmatmul.f32.gmra.mxu0 %v980
        %v1071 = vpop.f32.mrf.mxu0
        %v1072 = vadd.f32 %v1019, %v1071
        %1073 = vmatmul.f32.gmra.mxu0 %v981
        %v1074 = vpop.f32.mrf.mxu0
        %v1075 = vadd.f32 %v1019, %v1074
        %1076 = vmatmul.f32.gmra.mxu0 %v982
        %v1077 = vpop.f32.mrf.mxu0
        %v1078 = vadd.f32 %v1019, %v1077
        %1079 = vmatmul.f32.gmra.mxu0 %v983
        %v1080 = vpop.f32.mrf.mxu0
        %v1081 = vadd.f32 %v1019, %v1080
        %1082 = vmatmul.f32.gmra.mxu0 %v984
        %v1083 = vpop.f32.mrf.mxu0
        %v1084 = vadd.f32 %v1019, %v1083
        %1085 = vmatmul.f32.gmra.mxu0 %v985
        %v1086 = vpop.f32.mrf.mxu0
        %v1087 = vadd.f32 %v1019, %v1086
        %1088 = vmatmul.f32.gmra.mxu0 %v986
        %v1089 = vpop.f32.mrf.mxu0
        %v1090 = vadd.f32 %v1019, %v1089
        %1091 = vmatmul.f32.gmra.mxu0 %v987
        %v1092 = vpop.f32.mrf.mxu0
        %v1093 = vadd.f32 %v1019, %v1092
        %1094 = vmatmul.f32.gmra.mxu0 %v988
        %v1095 = vpop.f32.mrf.mxu0
        %v1096 = vadd.f32 %v1019, %v1095
        %1097 = vmatmul.f32.gmra.mxu0 %v989
        %v1098 = vpop.f32.mrf.mxu0
        %v1099 = vadd.f32 %v1019, %v1098
        %1100 = vmatmul.f32.gmra.mxu0 %v990
        %v1101 = vpop.f32.mrf.mxu0
        %v1102 = vadd.f32 %v1019, %v1101
        %1103 = vmatmul.f32.gmra.mxu0 %v991
        %v1104 = vpop.f32.mrf.mxu0
        %v1105 = vadd.f32 %v1019, %v1104
        %1106 = vmatmul.f32.gmra.mxu0 %v992
        %v1107 = vpop.f32.mrf.mxu0
        %v1108 = vadd.f32 %v1019, %v1107
        %1109 = vmatmul.f32.gmra.mxu0 %v993
        %v1110 = vpop.f32.mrf.mxu0
        %v1111 = vadd.f32 %v1019, %v1110
        %1112 = vmatmul.f32.gmra.mxu0 %v994
        %v1113 = vpop.f32.mrf.mxu0
        %v1114 = vadd.f32 %v1019, %v1113
        %1115 = vmatmul.f32.gmra.mxu0 %v995
        %v1116 = vpop.f32.mrf.mxu0
        %v1117 = vadd.f32 %v1019, %v1116
        %1118 = vmatmul.f32.gmra.mxu0 %v996
        %v1119 = vpop.f32.mrf.mxu0
        %v1120 = vadd.f32 %v1019, %v1119
        %1121 = vmatmul.f32.gmra.mxu0 %v997
        %v1122 = vpop.f32.mrf.mxu0
        %v1123 = vadd.f32 %v1019, %v1122
        %1124 = vmatmul.f32.gmra.mxu0 %v998
        %v1125 = vpop.f32.mrf.mxu0
        %v1126 = vadd.f32 %v1019, %v1125
        %1127 = vmatmul.f32.gmra.mxu0 %v999
        %v1128 = vpop.f32.mrf.mxu0
        %v1129 = vadd.f32 %v1019, %v1128
        %1130 = vmatmul.f32.gmra.mxu0 %v1000
        %v1131 = vpop.f32.mrf.mxu0
        %v1132 = vadd.f32 %v1019, %v1131
        %1133 = vdwg.mxu0
        %v1134 = vmax.f32 %v1039, 0.0
        %v1135 = vmax.f32 %v1042, 0.0
        %v1136 = vmax.f32 %v1045, 0.0
        %v1137 = vmax.f32 %v1048, 0.0
        %v1138 = vmax.f32 %v1051, 0.0
        %v1139 = vmax.f32 %v1054, 0.0
        %v1140 = vmax.f32 %v1057, 0.0
        %v1141 = vmax.f32 %v1060, 0.0
        %v1142 = vmax.f32 %v1063, 0.0
        %v1143 = vmax.f32 %v1066, 0.0
        %v1144 = vmax.f32 %v1069, 0.0
        %v1145 = vmax.f32 %v1072, 0.0
        %v1146 = vmax.f32 %v1075, 0.0
        %v1147 = vmax.f32 %v1078, 0.0
        %v1148 = vmax.f32 %v1081, 0.0
        %v1149 = vmax.f32 %v1084, 0.0
        %v1150 = vmax.f32 %v1087, 0.0
        %v1151 = vmax.f32 %v1090, 0.0
        %v1152 = vmax.f32 %v1093, 0.0
        %v1153 = vmax.f32 %v1096, 0.0
        %v1154 = vmax.f32 %v1099, 0.0
        %v1155 = vmax.f32 %v1102, 0.0
        %v1156 = vmax.f32 %v1105, 0.0
        %v1157 = vmax.f32 %v1108, 0.0
        %v1158 = vmax.f32 %v1111, 0.0
        %v1159 = vmax.f32 %v1114, 0.0
        %v1160 = vmax.f32 %v1117, 0.0
        %v1161 = vmax.f32 %v1120, 0.0
        %v1162 = vmax.f32 %v1123, 0.0
        %v1163 = vmax.f32 %v1126, 0.0
        %v1164 = vmax.f32 %v1129, 0.0
        %v1165 = vmax.f32 %v1132, 0.0
        %v1166 = vld [vmem:[%s5] sm:$0xff]
        %v1167 = vld [vmem:[%s5 + $0x8] sm:$0xff]
        %v1168 = vld [vmem:[%s5 + $0x10] sm:$0xff]
        %v1169 = vld [vmem:[%s5 + $0x18] sm:$0xff]
        %v1170 = vld [vmem:[%s5 + $0x20] sm:$0xff]
        %v1171 = vld [vmem:[%s5 + $0x28] sm:$0xff]
        %v1172 = vld [vmem:[%s5 + $0x30] sm:$0xff]
        %v1173 = vld [vmem:[%s5 + $0x38] sm:$0xff]
        %v1174 = vld [vmem:[%s5 + $0x40] sm:$0xff]
        %v1175 = vld [vmem:[%s5 + $0x48] sm:$0xff]
        %v1176 = vld [vmem:[%s5 + $0x50] sm:$0xff]
        %v1177 = vld [vmem:[%s5 + $0x58] sm:$0xff]
        %v1178 = vld [vmem:[%s5 + $0x60] sm:$0xff]
        %v1179 = vld [vmem:[%s5 + $0x68] sm:$0xff]
        %v1180 = vld [vmem:[%s5 + $0x70] sm:$0xff]
        %v1181 = vld [vmem:[%s5 + $0x78] sm:$0xff]
        %v1182 = vld [vmem:[%s6] sm:$0x1]
        %v1184 = vperm.slane %v1182, 0
        %1186 = vmatpush.msra.mxu0 %v1181
        %1187 = vmatpush.msra.mxu0 %v1180
        %1188 = vmatpush.msra.mxu0 %v1179
        %1189 = vmatpush.msra.mxu0 %v1178
        %1190 = vmatpush.msra.mxu0 %v1177
        %1191 = vmatpush.msra.mxu0 %v1176
        %1192 = vmatpush.msra.mxu0 %v1175
        %1193 = vmatpush.msra.mxu0 %v1174
        %1194 = vmatpush.msra.mxu0 %v1173
        %1195 = vmatpush.msra.mxu0 %v1172
        %1196 = vmatpush.msra.mxu0 %v1171
        %1197 = vmatpush.msra.mxu0 %v1170
        %1198 = vmatpush.msra.mxu0 %v1169
        %1199 = vmatpush.msra.mxu0 %v1168
        %1200 = vmatpush.msra.mxu0 %v1167
        %1201 = vmatpush.msra.mxu0 %v1166
        %1202 = vmatmul.f32.gmra.mxu0 %v1134
        %v1203 = vpop.f32.mrf.mxu0
        %v1204 = vadd.f32 %v1184, %v1203
        %1205 = vmatmul.f32.gmra.mxu0 %v1135
        %v1206 = vpop.f32.mrf.mxu0
        %v1207 = vadd.f32 %v1184, %v1206
        %1208 = vmatmul.f32.gmra.mxu0 %v1136
        %v1209 = vpop.f32.mrf.mxu0
        %v1210 = vadd.f32 %v1184, %v1209
        %1211 = vmatmul.f32.gmra.mxu0 %v1137
        %v1212 = vpop.f32.mrf.mxu0
        %v1213 = vadd.f32 %v1184, %v1212
        %1214 = vmatmul.f32.gmra.mxu0 %v1138
        %v1215 = vpop.f32.mrf.mxu0
        %v1216 = vadd.f32 %v1184, %v1215
        %1217 = vmatmul.f32.gmra.mxu0 %v1139
        %v1218 = vpop.f32.mrf.mxu0
        %v1219 = vadd.f32 %v1184, %v1218
        %1220 = vmatmul.f32.gmra.mxu0 %v1140
        %v1221 = vpop.f32.mrf.mxu0
        %v1222 = vadd.f32 %v1184, %v1221
        %1223 = vmatmul.f32.gmra.mxu0 %v1141
        %v1224 = vpop.f32.mrf.mxu0
        %v1225 = vadd.f32 %v1184, %v1224
        %1226 = vmatmul.f32.gmra.mxu0 %v1142
        %v1227 = vpop.f32.mrf.mxu0
        %v1228 = vadd.f32 %v1184, %v1227
        %1229 = vmatmul.f32.gmra.mxu0 %v1143
        %v1230 = vpop.f32.mrf.mxu0
        %v1231 = vadd.f32 %v1184, %v1230
        %1232 = vmatmul.f32.gmra.mxu0 %v1144
        %v1233 = vpop.f32.mrf.mxu0
        %v1234 = vadd.f32 %v1184, %v1233
        %1235 = vmatmul.f32.gmra.mxu0 %v1145
        %v1236 = vpop.f32.mrf.mxu0
        %v1237 = vadd.f32 %v1184, %v1236
        %1238 = vmatmul.f32.gmra.mxu0 %v1146
        %v1239 = vpop.f32.mrf.mxu0
        %v1240 = vadd.f32 %v1184, %v1239
        %1241 = vmatmul.f32.gmra.mxu0 %v1147
        %v1242 = vpop.f32.mrf.mxu0
        %v1243 = vadd.f32 %v1184, %v1242
        %1244 = vmatmul.f32.gmra.mxu0 %v1148
        %v1245 = vpop.f32.mrf.mxu0
        %v1246 = vadd.f32 %v1184, %v1245
        %1247 = vmatmul.f32.gmra.mxu0 %v1149
        %v1248 = vpop.f32.mrf.mxu0
        %v1249 = vadd.f32 %v1184, %v1248
        %1250 = vmatmul.f32.gmra.mxu0 %v1150
        %v1251 = vpop.f32.mrf.mxu0
        %v1252 = vadd.f32 %v1184, %v1251
        %1253 = vmatmul.f32.gmra.mxu0 %v1151
        %v1254 = vpop.f32.mrf.mxu0
        %v1255 = vadd.f32 %v1184, %v1254
        %1256 = vmatmul.f32.gmra.mxu0 %v1152
        %v1257 = vpop.f32.mrf.mxu0
        %v1258 = vadd.f32 %v1184, %v1257
        %1259 = vmatmul.f32.gmra.mxu0 %v1153
        %v1260 = vpop.f32.mrf.mxu0
        %v1261 = vadd.f32 %v1184, %v1260
        %1262 = vmatmul.f32.gmra.mxu0 %v1154
        %v1263 = vpop.f32.mrf.mxu0
        %v1264 = vadd.f32 %v1184, %v1263
        %1265 = vmatmul.f32.gmra.mxu0 %v1155
        %v1266 = vpop.f32.mrf.mxu0
        %v1267 = vadd.f32 %v1184, %v1266
        %1268 = vmatmul.f32.gmra.mxu0 %v1156
        %v1269 = vpop.f32.mrf.mxu0
        %v1270 = vadd.f32 %v1184, %v1269
        %1271 = vmatmul.f32.gmra.mxu0 %v1157
        %v1272 = vpop.f32.mrf.mxu0
        %v1273 = vadd.f32 %v1184, %v1272
        %1274 = vmatmul.f32.gmra.mxu0 %v1158
        %v1275 = vpop.f32.mrf.mxu0
        %v1276 = vadd.f32 %v1184, %v1275
        %1277 = vmatmul.f32.gmra.mxu0 %v1159
        %v1278 = vpop.f32.mrf.mxu0
        %v1279 = vadd.f32 %v1184, %v1278
        %1280 = vmatmul.f32.gmra.mxu0 %v1160
        %v1281 = vpop.f32.mrf.mxu0
        %v1282 = vadd.f32 %v1184, %v1281
        %1283 = vmatmul.f32.gmra.mxu0 %v1161
        %v1284 = vpop.f32.mrf.mxu0
        %v1285 = vadd.f32 %v1184, %v1284
        %1286 = vmatmul.f32.gmra.mxu0 %v1162
        %v1287 = vpop.f32.mrf.mxu0
        %v1288 = vadd.f32 %v1184, %v1287
        %1289 = vmatmul.f32.gmra.mxu0 %v1163
        %v1290 = vpop.f32.mrf.mxu0
        %v1291 = vadd.f32 %v1184, %v1290
        %1292 = vmatmul.f32.gmra.mxu0 %v1164
        %v1293 = vpop.f32.mrf.mxu0
        %v1294 = vadd.f32 %v1184, %v1293
        %1295 = vmatmul.f32.gmra.mxu0 %v1165
        %v1296 = vpop.f32.mrf.mxu0
        %v1297 = vadd.f32 %v1184, %v1296
        %1298 = vdwg.mxu0
        %v1299 = vmax.f32 %v1204, 0.0
        %v1300 = vmax.f32 %v1207, 0.0
        %v1301 = vmax.f32 %v1210, 0.0
        %v1302 = vmax.f32 %v1213, 0.0
        %v1303 = vmax.f32 %v1216, 0.0
        %v1304 = vmax.f32 %v1219, 0.0
        %v1305 = vmax.f32 %v1222, 0.0
        %v1306 = vmax.f32 %v1225, 0.0
        %v1307 = vmax.f32 %v1228, 0.0
        %v1308 = vmax.f32 %v1231, 0.0
        %v1309 = vmax.f32 %v1234, 0.0
        %v1310 = vmax.f32 %v1237, 0.0
        %v1311 = vmax.f32 %v1240, 0.0
        %v1312 = vmax.f32 %v1243, 0.0
        %v1313 = vmax.f32 %v1246, 0.0
        %v1314 = vmax.f32 %v1249, 0.0
        %v1315 = vmax.f32 %v1252, 0.0
        %v1316 = vmax.f32 %v1255, 0.0
        %v1317 = vmax.f32 %v1258, 0.0
        %v1318 = vmax.f32 %v1261, 0.0
        %v1319 = vmax.f32 %v1264, 0.0
        %v1320 = vmax.f32 %v1267, 0.0
        %v1321 = vmax.f32 %v1270, 0.0
        %v1322 = vmax.f32 %v1273, 0.0
        %v1323 = vmax.f32 %v1276, 0.0
        %v1324 = vmax.f32 %v1279, 0.0
        %v1325 = vmax.f32 %v1282, 0.0
        %v1326 = vmax.f32 %v1285, 0.0
        %v1327 = vmax.f32 %v1288, 0.0
        %v1328 = vmax.f32 %v1291, 0.0
        %v1329 = vmax.f32 %v1294, 0.0
        %v1330 = vmax.f32 %v1297, 0.0
        %v1331 = vld [vmem:[%s7] sm:$0xff]
        %v1332 = vld [vmem:[%s7 + $0x8] sm:$0xff]
        %v1333 = vld [vmem:[%s7 + $0x10] sm:$0xff]
        %v1334 = vld [vmem:[%s7 + $0x18] sm:$0xff]
        %v1335 = vld [vmem:[%s7 + $0x20] sm:$0xff]
        %v1336 = vld [vmem:[%s7 + $0x28] sm:$0xff]
        %v1337 = vld [vmem:[%s7 + $0x30] sm:$0xff]
        %v1338 = vld [vmem:[%s7 + $0x38] sm:$0xff]
        %v1339 = vld [vmem:[%s7 + $0x40] sm:$0xff]
        %v1340 = vld [vmem:[%s7 + $0x48] sm:$0xff]
        %v1341 = vld [vmem:[%s7 + $0x50] sm:$0xff]
        %v1342 = vld [vmem:[%s7 + $0x58] sm:$0xff]
        %v1343 = vld [vmem:[%s7 + $0x60] sm:$0xff]
        %v1344 = vld [vmem:[%s7 + $0x68] sm:$0xff]
        %v1345 = vld [vmem:[%s7 + $0x70] sm:$0xff]
        %v1346 = vld [vmem:[%s7 + $0x78] sm:$0xff]
        %v1347 = vld [vmem:[%s8] sm:$0x1]
        %v1349 = vperm.slane %v1347, 0
        %1351 = vmatpush.msra.mxu0 %v1346
        %1352 = vmatpush.msra.mxu0 %v1345
        %1353 = vmatpush.msra.mxu0 %v1344
        %1354 = vmatpush.msra.mxu0 %v1343
        %1355 = vmatpush.msra.mxu0 %v1342
        %1356 = vmatpush.msra.mxu0 %v1341
        %1357 = vmatpush.msra.mxu0 %v1340
        %1358 = vmatpush.msra.mxu0 %v1339
        %1359 = vmatpush.msra.mxu0 %v1338
        %1360 = vmatpush.msra.mxu0 %v1337
        %1361 = vmatpush.msra.mxu0 %v1336
        %1362 = vmatpush.msra.mxu0 %v1335
        %1363 = vmatpush.msra.mxu0 %v1334
        %1364 = vmatpush.msra.mxu0 %v1333
        %1365 = vmatpush.msra.mxu0 %v1332
        %1366 = vmatpush.msra.mxu0 %v1331
        %1367 = vmatmul.f32.gmra.mxu0 %v1299
        %v1368 = vpop.f32.mrf.mxu0
        %v1369 = vadd.f32 %v1349, %v1368
        %1370 = vmatmul.f32.gmra.mxu0 %v1300
        %v1371 = vpop.f32.mrf.mxu0
        %v1372 = vadd.f32 %v1349, %v1371
        %1373 = vmatmul.f32.gmra.mxu0 %v1301
        %v1374 = vpop.f32.mrf.mxu0
        %v1375 = vadd.f32 %v1349, %v1374
        %1376 = vmatmul.f32.gmra.mxu0 %v1302
        %v1377 = vpop.f32.mrf.mxu0
        %v1378 = vadd.f32 %v1349, %v1377
        %1379 = vmatmul.f32.gmra.mxu0 %v1303
        %v1380 = vpop.f32.mrf.mxu0
        %v1381 = vadd.f32 %v1349, %v1380
        %1382 = vmatmul.f32.gmra.mxu0 %v1304
        %v1383 = vpop.f32.mrf.mxu0
        %v1384 = vadd.f32 %v1349, %v1383
        %1385 = vmatmul.f32.gmra.mxu0 %v1305
        %v1386 = vpop.f32.mrf.mxu0
        %v1387 = vadd.f32 %v1349, %v1386
        %1388 = vmatmul.f32.gmra.mxu0 %v1306
        %v1389 = vpop.f32.mrf.mxu0
        %v1390 = vadd.f32 %v1349, %v1389
        %1391 = vmatmul.f32.gmra.mxu0 %v1307
        %v1392 = vpop.f32.mrf.mxu0
        %v1393 = vadd.f32 %v1349, %v1392
        %1394 = vmatmul.f32.gmra.mxu0 %v1308
        %v1395 = vpop.f32.mrf.mxu0
        %v1396 = vadd.f32 %v1349, %v1395
        %1397 = vmatmul.f32.gmra.mxu0 %v1309
        %v1398 = vpop.f32.mrf.mxu0
        %v1399 = vadd.f32 %v1349, %v1398
        %1400 = vmatmul.f32.gmra.mxu0 %v1310
        %v1401 = vpop.f32.mrf.mxu0
        %v1402 = vadd.f32 %v1349, %v1401
        %1403 = vmatmul.f32.gmra.mxu0 %v1311
        %v1404 = vpop.f32.mrf.mxu0
        %v1405 = vadd.f32 %v1349, %v1404
        %1406 = vmatmul.f32.gmra.mxu0 %v1312
        %v1407 = vpop.f32.mrf.mxu0
        %v1408 = vadd.f32 %v1349, %v1407
        %1409 = vmatmul.f32.gmra.mxu0 %v1313
        %v1410 = vpop.f32.mrf.mxu0
        %v1411 = vadd.f32 %v1349, %v1410
        %1412 = vmatmul.f32.gmra.mxu0 %v1314
        %v1413 = vpop.f32.mrf.mxu0
        %v1414 = vadd.f32 %v1349, %v1413
        %1415 = vmatmul.f32.gmra.mxu0 %v1315
        %v1416 = vpop.f32.mrf.mxu0
        %v1417 = vadd.f32 %v1349, %v1416
        %1418 = vmatmul.f32.gmra.mxu0 %v1316
        %v1419 = vpop.f32.mrf.mxu0
        %v1420 = vadd.f32 %v1349, %v1419
        %1421 = vmatmul.f32.gmra.mxu0 %v1317
        %v1422 = vpop.f32.mrf.mxu0
        %v1423 = vadd.f32 %v1349, %v1422
        %1424 = vmatmul.f32.gmra.mxu0 %v1318
        %v1425 = vpop.f32.mrf.mxu0
        %v1426 = vadd.f32 %v1349, %v1425
        %1427 = vmatmul.f32.gmra.mxu0 %v1319
        %v1428 = vpop.f32.mrf.mxu0
        %v1429 = vadd.f32 %v1349, %v1428
        %1430 = vmatmul.f32.gmra.mxu0 %v1320
        %v1431 = vpop.f32.mrf.mxu0
        %v1432 = vadd.f32 %v1349, %v1431
        %1433 = vmatmul.f32.gmra.mxu0 %v1321
        %v1434 = vpop.f32.mrf.mxu0
        %v1435 = vadd.f32 %v1349, %v1434
        %1436 = vmatmul.f32.gmra.mxu0 %v1322
        %v1437 = vpop.f32.mrf.mxu0
        %v1438 = vadd.f32 %v1349, %v1437
        %1439 = vmatmul.f32.gmra.mxu0 %v1323
        %v1440 = vpop.f32.mrf.mxu0
        %v1441 = vadd.f32 %v1349, %v1440
        %1442 = vmatmul.f32.gmra.mxu0 %v1324
        %v1443 = vpop.f32.mrf.mxu0
        %v1444 = vadd.f32 %v1349, %v1443
        %1445 = vmatmul.f32.gmra.mxu0 %v1325
        %v1446 = vpop.f32.mrf.mxu0
        %v1447 = vadd.f32 %v1349, %v1446
        %1448 = vmatmul.f32.gmra.mxu0 %v1326
        %v1449 = vpop.f32.mrf.mxu0
        %v1450 = vadd.f32 %v1349, %v1449
        %1451 = vmatmul.f32.gmra.mxu0 %v1327
        %v1452 = vpop.f32.mrf.mxu0
        %v1453 = vadd.f32 %v1349, %v1452
        %1454 = vmatmul.f32.gmra.mxu0 %v1328
        %v1455 = vpop.f32.mrf.mxu0
        %v1456 = vadd.f32 %v1349, %v1455
        %1457 = vmatmul.f32.gmra.mxu0 %v1329
        %v1458 = vpop.f32.mrf.mxu0
        %v1459 = vadd.f32 %v1349, %v1458
        %1460 = vmatmul.f32.gmra.mxu0 %v1330
        %v1461 = vpop.f32.mrf.mxu0
        %v1462 = vadd.f32 %v1349, %v1461
        %1463 = vdwg.mxu0
        %v1464 = vmax.f32 %v1369, 0.0
        %v1465 = vmax.f32 %v1372, 0.0
        %v1466 = vmax.f32 %v1375, 0.0
        %v1467 = vmax.f32 %v1378, 0.0
        %v1468 = vmax.f32 %v1381, 0.0
        %v1469 = vmax.f32 %v1384, 0.0
        %v1470 = vmax.f32 %v1387, 0.0
        %v1471 = vmax.f32 %v1390, 0.0
        %v1472 = vmax.f32 %v1393, 0.0
        %v1473 = vmax.f32 %v1396, 0.0
        %v1474 = vmax.f32 %v1399, 0.0
        %v1475 = vmax.f32 %v1402, 0.0
        %v1476 = vmax.f32 %v1405, 0.0
        %v1477 = vmax.f32 %v1408, 0.0
        %v1478 = vmax.f32 %v1411, 0.0
        %v1479 = vmax.f32 %v1414, 0.0
        %v1480 = vmax.f32 %v1417, 0.0
        %v1481 = vmax.f32 %v1420, 0.0
        %v1482 = vmax.f32 %v1423, 0.0
        %v1483 = vmax.f32 %v1426, 0.0
        %v1484 = vmax.f32 %v1429, 0.0
        %v1485 = vmax.f32 %v1432, 0.0
        %v1486 = vmax.f32 %v1435, 0.0
        %v1487 = vmax.f32 %v1438, 0.0
        %v1488 = vmax.f32 %v1441, 0.0
        %v1489 = vmax.f32 %v1444, 0.0
        %v1490 = vmax.f32 %v1447, 0.0
        %v1491 = vmax.f32 %v1450, 0.0
        %v1492 = vmax.f32 %v1453, 0.0
        %v1493 = vmax.f32 %v1456, 0.0
        %v1494 = vmax.f32 %v1459, 0.0
        %v1495 = vmax.f32 %v1462, 0.0
        %v1496 = vld [vmem:[%s9] sm:$0xff]
        %v1497 = vld [vmem:[%s9 + $0x8] sm:$0xff]
        %v1498 = vld [vmem:[%s9 + $0x10] sm:$0xff]
        %v1499 = vld [vmem:[%s9 + $0x18] sm:$0xff]
        %v1500 = vld [vmem:[%s9 + $0x20] sm:$0xff]
        %v1501 = vld [vmem:[%s9 + $0x28] sm:$0xff]
        %v1502 = vld [vmem:[%s9 + $0x30] sm:$0xff]
        %v1503 = vld [vmem:[%s9 + $0x38] sm:$0xff]
        %v1504 = vld [vmem:[%s9 + $0x40] sm:$0xff]
        %v1505 = vld [vmem:[%s9 + $0x48] sm:$0xff]
        %v1506 = vld [vmem:[%s9 + $0x50] sm:$0xff]
        %v1507 = vld [vmem:[%s9 + $0x58] sm:$0xff]
        %v1508 = vld [vmem:[%s9 + $0x60] sm:$0xff]
        %v1509 = vld [vmem:[%s9 + $0x68] sm:$0xff]
        %v1510 = vld [vmem:[%s9 + $0x70] sm:$0xff]
        %v1511 = vld [vmem:[%s9 + $0x78] sm:$0xff]
        %v1512 = vld [vmem:[%s10] sm:$0xff]
        %1513 = vmatpush.msra.mxu0 0.0
        %1514 = vmatpush.msra.mxu0 0.0
        %1515 = vmatpush.msra.mxu0 0.0
        %1516 = vmatpush.msra.mxu0 0.0
        %1517 = vmatpush.msra.mxu0 0.0
        %1518 = vmatpush.msra.mxu0 0.0
        %1519 = vmatpush.msra.mxu0 0.0
        %1520 = vmatpush.msra.mxu0 0.0
        %1521 = vmatpush.msra.mxu0 0.0
        %1522 = vmatpush.msra.mxu0 0.0
        %1523 = vmatpush.msra.mxu0 0.0
        %1524 = vmatpush.msra.mxu0 0.0
        %1525 = vmatpush.msra.mxu0 0.0
        %1526 = vmatpush.msra.mxu0 0.0
        %1527 = vmatpush.msra.mxu0 0.0
        %1528 = vmatpush.msra.mxu0 %v1512
        %1529 = vmatmul.f32.gmra.mxu0 %v761
        %v1530 = vpop.f32.mrf.mxu0
        %v1531 = vadd.f32 0.0, %v1530
        %1532 = vmatmul.f32.gmra.mxu0 %v764
        %v1533 = vpop.f32.mrf.mxu0
        %v1534 = vadd.f32 0.0, %v1533
        %1535 = vmatmul.f32.gmra.mxu0 %v767
        %v1536 = vpop.f32.mrf.mxu0
        %v1537 = vadd.f32 0.0, %v1536
        %1538 = vmatmul.f32.gmra.mxu0 %v770
        %v1539 = vpop.f32.mrf.mxu0
        %v1540 = vadd.f32 0.0, %v1539
        %1541 = vmatmul.f32.gmra.mxu0 %v773
        %v1542 = vpop.f32.mrf.mxu0
        %v1543 = vadd.f32 0.0, %v1542
        %1544 = vmatmul.f32.gmra.mxu0 %v776
        %v1545 = vpop.f32.mrf.mxu0
        %v1546 = vadd.f32 0.0, %v1545
        %1547 = vmatmul.f32.gmra.mxu0 %v779
        %v1548 = vpop.f32.mrf.mxu0
        %v1549 = vadd.f32 0.0, %v1548
        %1550 = vmatmul.f32.gmra.mxu0 %v782
        %v1551 = vpop.f32.mrf.mxu0
        %v1552 = vadd.f32 0.0, %v1551
        %1553 = vmatmul.f32.gmra.mxu0 %v785
        %v1554 = vpop.f32.mrf.mxu0
        %v1555 = vadd.f32 0.0, %v1554
        %1556 = vmatmul.f32.gmra.mxu0 %v788
        %v1557 = vpop.f32.mrf.mxu0
        %v1558 = vadd.f32 0.0, %v1557
        %1559 = vmatmul.f32.gmra.mxu0 %v791
        %v1560 = vpop.f32.mrf.mxu0
        %v1561 = vadd.f32 0.0, %v1560
        %1562 = vmatmul.f32.gmra.mxu0 %v794
        %v1563 = vpop.f32.mrf.mxu0
        %v1564 = vadd.f32 0.0, %v1563
        %1565 = vmatmul.f32.gmra.mxu0 %v797
        %v1566 = vpop.f32.mrf.mxu0
        %v1567 = vadd.f32 0.0, %v1566
        %1568 = vmatmul.f32.gmra.mxu0 %v800
        %v1569 = vpop.f32.mrf.mxu0
        %v1570 = vadd.f32 0.0, %v1569
        %1571 = vmatmul.f32.gmra.mxu0 %v803
        %v1572 = vpop.f32.mrf.mxu0
        %v1573 = vadd.f32 0.0, %v1572
        %1574 = vmatmul.f32.gmra.mxu0 %v806
        %v1575 = vpop.f32.mrf.mxu0
        %v1576 = vadd.f32 0.0, %v1575
        %1577 = vmatmul.f32.gmra.mxu0 %v809
        %v1578 = vpop.f32.mrf.mxu0
        %v1579 = vadd.f32 0.0, %v1578
        %1580 = vmatmul.f32.gmra.mxu0 %v812
        %v1581 = vpop.f32.mrf.mxu0
        %v1582 = vadd.f32 0.0, %v1581
        %1583 = vmatmul.f32.gmra.mxu0 %v815
        %v1584 = vpop.f32.mrf.mxu0
        %v1585 = vadd.f32 0.0, %v1584
        %1586 = vmatmul.f32.gmra.mxu0 %v818
        %v1587 = vpop.f32.mrf.mxu0
        %v1588 = vadd.f32 0.0, %v1587
        %1589 = vmatmul.f32.gmra.mxu0 %v821
        %v1590 = vpop.f32.mrf.mxu0
        %v1591 = vadd.f32 0.0, %v1590
        %1592 = vmatmul.f32.gmra.mxu0 %v824
        %v1593 = vpop.f32.mrf.mxu0
        %v1594 = vadd.f32 0.0, %v1593
        %1595 = vmatmul.f32.gmra.mxu0 %v827
        %v1596 = vpop.f32.mrf.mxu0
        %v1597 = vadd.f32 0.0, %v1596
        %1598 = vmatmul.f32.gmra.mxu0 %v830
        %v1599 = vpop.f32.mrf.mxu0
        %v1600 = vadd.f32 0.0, %v1599
        %1601 = vmatmul.f32.gmra.mxu0 %v833
        %v1602 = vpop.f32.mrf.mxu0
        %v1603 = vadd.f32 0.0, %v1602
        %1604 = vmatmul.f32.gmra.mxu0 %v836
        %v1605 = vpop.f32.mrf.mxu0
        %v1606 = vadd.f32 0.0, %v1605
        %1607 = vmatmul.f32.gmra.mxu0 %v839
        %v1608 = vpop.f32.mrf.mxu0
        %v1609 = vadd.f32 0.0, %v1608
        %1610 = vmatmul.f32.gmra.mxu0 %v842
        %v1611 = vpop.f32.mrf.mxu0
        %v1612 = vadd.f32 0.0, %v1611
        %1613 = vmatmul.f32.gmra.mxu0 %v845
        %v1614 = vpop.f32.mrf.mxu0
        %v1615 = vadd.f32 0.0, %v1614
        %1616 = vmatmul.f32.gmra.mxu0 %v848
        %v1617 = vpop.f32.mrf.mxu0
        %v1618 = vadd.f32 0.0, %v1617
        %1619 = vmatmul.f32.gmra.mxu0 %v851
        %v1620 = vpop.f32.mrf.mxu0
        %v1621 = vadd.f32 0.0, %v1620
        %1622 = vmatmul.f32.gmra.mxu0 %v854
        %v1623 = vpop.f32.mrf.mxu0
        %v1624 = vadd.f32 0.0, %v1623
        %1625 = vdwg.mxu0
        %1626 = vmatpush.msra.mxu0 %v1511
        %1627 = vmatpush.msra.mxu0 %v1510
        %1628 = vmatpush.msra.mxu0 %v1509
        %1629 = vmatpush.msra.mxu0 %v1508
        %1630 = vmatpush.msra.mxu0 %v1507
        %1631 = vmatpush.msra.mxu0 %v1506
        %1632 = vmatpush.msra.mxu0 %v1505
        %1633 = vmatpush.msra.mxu0 %v1504
        %1634 = vmatpush.msra.mxu0 %v1503
        %1635 = vmatpush.msra.mxu0 %v1502
        %1636 = vmatpush.msra.mxu0 %v1501
        %1637 = vmatpush.msra.mxu0 %v1500
        %1638 = vmatpush.msra.mxu0 %v1499
        %1639 = vmatpush.msra.mxu0 %v1498
        %1640 = vmatpush.msra.mxu0 %v1497
        %1641 = vmatpush.msra.mxu0 %v1496
        %1642 = vmatmul.f32.gmra.mxu0 %v1464
        %v1643 = vpop.f32.mrf.mxu0
        %v1644 = vadd.f32 %v1531, %v1643
        %1645 = vmatmul.f32.gmra.mxu0 %v1465
        %v1646 = vpop.f32.mrf.mxu0
        %v1647 = vadd.f32 %v1534, %v1646
        %1648 = vmatmul.f32.gmra.mxu0 %v1466
        %v1649 = vpop.f32.mrf.mxu0
        %v1650 = vadd.f32 %v1537, %v1649
        %1651 = vmatmul.f32.gmra.mxu0 %v1467
        %v1652 = vpop.f32.mrf.mxu0
        %v1653 = vadd.f32 %v1540, %v1652
        %1654 = vmatmul.f32.gmra.mxu0 %v1468
        %v1655 = vpop.f32.mrf.mxu0
        %v1656 = vadd.f32 %v1543, %v1655
        %1657 = vmatmul.f32.gmra.mxu0 %v1469
        %v1658 = vpop.f32.mrf.mxu0
        %v1659 = vadd.f32 %v1546, %v1658
        %1660 = vmatmul.f32.gmra.mxu0 %v1470
        %v1661 = vpop.f32.mrf.mxu0
        %v1662 = vadd.f32 %v1549, %v1661
        %1663 = vmatmul.f32.gmra.mxu0 %v1471
        %v1664 = vpop.f32.mrf.mxu0
        %v1665 = vadd.f32 %v1552, %v1664
        %1666 = vmatmul.f32.gmra.mxu0 %v1472
        %v1667 = vpop.f32.mrf.mxu0
        %v1668 = vadd.f32 %v1555, %v1667
        %1669 = vmatmul.f32.gmra.mxu0 %v1473
        %v1670 = vpop.f32.mrf.mxu0
        %v1671 = vadd.f32 %v1558, %v1670
        %1672 = vmatmul.f32.gmra.mxu0 %v1474
        %v1673 = vpop.f32.mrf.mxu0
        %v1674 = vadd.f32 %v1561, %v1673
        %1675 = vmatmul.f32.gmra.mxu0 %v1475
        %v1676 = vpop.f32.mrf.mxu0
        %v1677 = vadd.f32 %v1564, %v1676
        %1678 = vmatmul.f32.gmra.mxu0 %v1476
        %v1679 = vpop.f32.mrf.mxu0
        %v1680 = vadd.f32 %v1567, %v1679
        %1681 = vmatmul.f32.gmra.mxu0 %v1477
        %v1682 = vpop.f32.mrf.mxu0
        %v1683 = vadd.f32 %v1570, %v1682
        %1684 = vmatmul.f32.gmra.mxu0 %v1478
        %v1685 = vpop.f32.mrf.mxu0
        %v1686 = vadd.f32 %v1573, %v1685
        %1687 = vmatmul.f32.gmra.mxu0 %v1479
        %v1688 = vpop.f32.mrf.mxu0
        %v1689 = vadd.f32 %v1576, %v1688
        %1690 = vmatmul.f32.gmra.mxu0 %v1480
        %v1691 = vpop.f32.mrf.mxu0
        %v1692 = vadd.f32 %v1579, %v1691
        %1693 = vmatmul.f32.gmra.mxu0 %v1481
        %v1694 = vpop.f32.mrf.mxu0
        %v1695 = vadd.f32 %v1582, %v1694
        %1696 = vmatmul.f32.gmra.mxu0 %v1482
        %v1697 = vpop.f32.mrf.mxu0
        %v1698 = vadd.f32 %v1585, %v1697
        %1699 = vmatmul.f32.gmra.mxu0 %v1483
        %v1700 = vpop.f32.mrf.mxu0
        %v1701 = vadd.f32 %v1588, %v1700
        %1702 = vmatmul.f32.gmra.mxu0 %v1484
        %v1703 = vpop.f32.mrf.mxu0
        %v1704 = vadd.f32 %v1591, %v1703
        %1705 = vmatmul.f32.gmra.mxu0 %v1485
        %v1706 = vpop.f32.mrf.mxu0
        %v1707 = vadd.f32 %v1594, %v1706
        %1708 = vmatmul.f32.gmra.mxu0 %v1486
        %v1709 = vpop.f32.mrf.mxu0
        %v1710 = vadd.f32 %v1597, %v1709
        %1711 = vmatmul.f32.gmra.mxu0 %v1487
        %v1712 = vpop.f32.mrf.mxu0
        %v1713 = vadd.f32 %v1600, %v1712
        %1714 = vmatmul.f32.gmra.mxu0 %v1488
        %v1715 = vpop.f32.mrf.mxu0
        %v1716 = vadd.f32 %v1603, %v1715
        %1717 = vmatmul.f32.gmra.mxu0 %v1489
        %v1718 = vpop.f32.mrf.mxu0
        %v1719 = vadd.f32 %v1606, %v1718
        %1720 = vmatmul.f32.gmra.mxu0 %v1490
        %v1721 = vpop.f32.mrf.mxu0
        %v1722 = vadd.f32 %v1609, %v1721
        %1723 = vmatmul.f32.gmra.mxu0 %v1491
        %v1724 = vpop.f32.mrf.mxu0
        %v1725 = vadd.f32 %v1612, %v1724
        %1726 = vmatmul.f32.gmra.mxu0 %v1492
        %v1727 = vpop.f32.mrf.mxu0
        %v1728 = vadd.f32 %v1615, %v1727
        %1729 = vmatmul.f32.gmra.mxu0 %v1493
        %v1730 = vpop.f32.mrf.mxu0
        %v1731 = vadd.f32 %v1618, %v1730
        %1732 = vmatmul.f32.gmra.mxu0 %v1494
        %v1733 = vpop.f32.mrf.mxu0
        %v1734 = vadd.f32 %v1621, %v1733
        %1735 = vmatmul.f32.gmra.mxu0 %v1495
        %v1736 = vpop.f32.mrf.mxu0
        %v1737 = vadd.f32 %v1624, %v1736
        %1738 = vdwg.mxu0
        %v1739 = vld [vmem:[%s11] sm:$0x1]
        %v1741 = vperm.slane %v1739, 0
        %v1743 = vadd.f32 %v1644, %v1741
        %v1744 = vadd.f32 %v1647, %v1741
        %v1745 = vadd.f32 %v1650, %v1741
        %v1746 = vadd.f32 %v1653, %v1741
        %v1747 = vadd.f32 %v1656, %v1741
        %v1748 = vadd.f32 %v1659, %v1741
        %v1749 = vadd.f32 %v1662, %v1741
        %v1750 = vadd.f32 %v1665, %v1741
        %v1751 = vadd.f32 %v1668, %v1741
        %v1752 = vadd.f32 %v1671, %v1741
        %v1753 = vadd.f32 %v1674, %v1741
        %v1754 = vadd.f32 %v1677, %v1741
        %v1755 = vadd.f32 %v1680, %v1741
        %v1756 = vadd.f32 %v1683, %v1741
        %v1757 = vadd.f32 %v1686, %v1741
        %v1758 = vadd.f32 %v1689, %v1741
        %v1759 = vadd.f32 %v1692, %v1741
        %v1760 = vadd.f32 %v1695, %v1741
        %v1761 = vadd.f32 %v1698, %v1741
        %v1762 = vadd.f32 %v1701, %v1741
        %v1763 = vadd.f32 %v1704, %v1741
        %v1764 = vadd.f32 %v1707, %v1741
        %v1765 = vadd.f32 %v1710, %v1741
        %v1766 = vadd.f32 %v1713, %v1741
        %v1767 = vadd.f32 %v1716, %v1741
        %v1768 = vadd.f32 %v1719, %v1741
        %v1769 = vadd.f32 %v1722, %v1741
        %v1770 = vadd.f32 %v1725, %v1741
        %v1771 = vadd.f32 %v1728, %v1741
        %v1772 = vadd.f32 %v1731, %v1741
        %v1773 = vadd.f32 %v1734, %v1741
        %v1774 = vadd.f32 %v1737, %v1741
        %v1775 = vmax.f32 %v1743, 0.0
        %v1776 = vmax.f32 %v1744, 0.0
        %v1777 = vmax.f32 %v1745, 0.0
        %v1778 = vmax.f32 %v1746, 0.0
        %v1779 = vmax.f32 %v1747, 0.0
        %v1780 = vmax.f32 %v1748, 0.0
        %v1781 = vmax.f32 %v1749, 0.0
        %v1782 = vmax.f32 %v1750, 0.0
        %v1783 = vmax.f32 %v1751, 0.0
        %v1784 = vmax.f32 %v1752, 0.0
        %v1785 = vmax.f32 %v1753, 0.0
        %v1786 = vmax.f32 %v1754, 0.0
        %v1787 = vmax.f32 %v1755, 0.0
        %v1788 = vmax.f32 %v1756, 0.0
        %v1789 = vmax.f32 %v1757, 0.0
        %v1790 = vmax.f32 %v1758, 0.0
        %v1791 = vmax.f32 %v1759, 0.0
        %v1792 = vmax.f32 %v1760, 0.0
        %v1793 = vmax.f32 %v1761, 0.0
        %v1794 = vmax.f32 %v1762, 0.0
        %v1795 = vmax.f32 %v1763, 0.0
        %v1796 = vmax.f32 %v1764, 0.0
        %v1797 = vmax.f32 %v1765, 0.0
        %v1798 = vmax.f32 %v1766, 0.0
        %v1799 = vmax.f32 %v1767, 0.0
        %v1800 = vmax.f32 %v1768, 0.0
        %v1801 = vmax.f32 %v1769, 0.0
        %v1802 = vmax.f32 %v1770, 0.0
        %v1803 = vmax.f32 %v1771, 0.0
        %v1804 = vmax.f32 %v1772, 0.0
        %v1805 = vmax.f32 %v1773, 0.0
        %v1806 = vmax.f32 %v1774, 0.0
        %v1807 = vld [vmem:[#allocation3] sm:$0xff]
        %v1808 = vld [vmem:[#allocation3 + $0x8] sm:$0xff]
        %v1809 = vld [vmem:[#allocation3 + $0x10] sm:$0xff]
        %v1810 = vld [vmem:[#allocation3 + $0x18] sm:$0xff]
        %v1811 = vld [vmem:[#allocation3 + $0x20] sm:$0xff]
        %v1812 = vld [vmem:[#allocation3 + $0x28] sm:$0xff]
        %v1813 = vld [vmem:[#allocation3 + $0x30] sm:$0xff]
        %v1814 = vld [vmem:[#allocation3 + $0x38] sm:$0xff]
        %v1815 = vld [vmem:[#allocation3 + $0x40] sm:$0xff]
        %v1816 = vld [vmem:[#allocation3 + $0x48] sm:$0xff]
        %v1817 = vld [vmem:[#allocation3 + $0x50] sm:$0xff]
        %v1818 = vld [vmem:[#allocation3 + $0x58] sm:$0xff]
        %v1819 = vld [vmem:[#allocation3 + $0x60] sm:$0xff]
        %v1820 = vld [vmem:[#allocation3 + $0x68] sm:$0xff]
        %v1821 = vld [vmem:[#allocation3 + $0x70] sm:$0xff]
        %v1822 = vld [vmem:[#allocation3 + $0x78] sm:$0xff]
        %v1823 = vld [vmem:[%s13] sm:$0x1]
        %v1825 = vperm.slane %v1823, 0
        %1827 = vmatpush.msra.mxu0 %v1822
        %1828 = vmatpush.msra.mxu0 %v1821
        %1829 = vmatpush.msra.mxu0 %v1820
        %1830 = vmatpush.msra.mxu0 %v1819
        %1831 = vmatpush.msra.mxu0 %v1818
        %1832 = vmatpush.msra.mxu0 %v1817
        %1833 = vmatpush.msra.mxu0 %v1816
        %1834 = vmatpush.msra.mxu0 %v1815
        %1835 = vmatpush.msra.mxu0 %v1814
        %1836 = vmatpush.msra.mxu0 %v1813
        %1837 = vmatpush.msra.mxu0 %v1812
        %1838 = vmatpush.msra.mxu0 %v1811
        %1839 = vmatpush.msra.mxu0 %v1810
        %1840 = vmatpush.msra.mxu0 %v1809
        %1841 = vmatpush.msra.mxu0 %v1808
        %1842 = vmatpush.msra.mxu0 %v1807
        %1843 = vmatmul.f32.gmra.mxu0 %v1775
        %v1844 = vpop.f32.mrf.mxu0
        %v1845 = vadd.f32 %v1825, %v1844
        %1846 = vmatmul.f32.gmra.mxu0 %v1776
        %v1847 = vpop.f32.mrf.mxu0
        %v1848 = vadd.f32 %v1825, %v1847
        %1849 = vmatmul.f32.gmra.mxu0 %v1777
        %v1850 = vpop.f32.mrf.mxu0
        %v1851 = vadd.f32 %v1825, %v1850
        %1852 = vmatmul.f32.gmra.mxu0 %v1778
        %v1853 = vpop.f32.mrf.mxu0
        %v1854 = vadd.f32 %v1825, %v1853
        %1855 = vmatmul.f32.gmra.mxu0 %v1779
        %v1856 = vpop.f32.mrf.mxu0
        %v1857 = vadd.f32 %v1825, %v1856
        %1858 = vmatmul.f32.gmra.mxu0 %v1780
        %v1859 = vpop.f32.mrf.mxu0
        %v1860 = vadd.f32 %v1825, %v1859
        %1861 = vmatmul.f32.gmra.mxu0 %v1781
        %v1862 = vpop.f32.mrf.mxu0
        %v1863 = vadd.f32 %v1825, %v1862
        %1864 = vmatmul.f32.gmra.mxu0 %v1782
        %v1865 = vpop.f32.mrf.mxu0
        %v1866 = vadd.f32 %v1825, %v1865
        %1867 = vmatmul.f32.gmra.mxu0 %v1783
        %v1868 = vpop.f32.mrf.mxu0
        %v1869 = vadd.f32 %v1825, %v1868
        %1870 = vmatmul.f32.gmra.mxu0 %v1784
        %v1871 = vpop.f32.mrf.mxu0
        %v1872 = vadd.f32 %v1825, %v1871
        %1873 = vmatmul.f32.gmra.mxu0 %v1785
        %v1874 = vpop.f32.mrf.mxu0
        %v1875 = vadd.f32 %v1825, %v1874
        %1876 = vmatmul.f32.gmra.mxu0 %v1786
        %v1877 = vpop.f32.mrf.mxu0
        %v1878 = vadd.f32 %v1825, %v1877
        %1879 = vmatmul.f32.gmra.mxu0 %v1787
        %v1880 = vpop.f32.mrf.mxu0
        %v1881 = vadd.f32 %v1825, %v1880
        %1882 = vmatmul.f32.gmra.mxu0 %v1788
        %v1883 = vpop.f32.mrf.mxu0
        %v1884 = vadd.f32 %v1825, %v1883
        %1885 = vmatmul.f32.gmra.mxu0 %v1789
        %v1886 = vpop.f32.mrf.mxu0
        %v1887 = vadd.f32 %v1825, %v1886
        %1888 = vmatmul.f32.gmra.mxu0 %v1790
        %v1889 = vpop.f32.mrf.mxu0
        %v1890 = vadd.f32 %v1825, %v1889
        %1891 = vmatmul.f32.gmra.mxu0 %v1791
        %v1892 = vpop.f32.mrf.mxu0
        %v1893 = vadd.f32 %v1825, %v1892
        %1894 = vmatmul.f32.gmra.mxu0 %v1792
        %v1895 = vpop.f32.mrf.mxu0
        %v1896 = vadd.f32 %v1825, %v1895
        %1897 = vmatmul.f32.gmra.mxu0 %v1793
        %v1898 = vpop.f32.mrf.mxu0
        %v1899 = vadd.f32 %v1825, %v1898
        %1900 = vmatmul.f32.gmra.mxu0 %v1794
        %v1901 = vpop.f32.mrf.mxu0
        %v1902 = vadd.f32 %v1825, %v1901
        %1903 = vmatmul.f32.gmra.mxu0 %v1795
        %v1904 = vpop.f32.mrf.mxu0
        %v1905 = vadd.f32 %v1825, %v1904
        %1906 = vmatmul.f32.gmra.mxu0 %v1796
        %v1907 = vpop.f32.mrf.mxu0
        %v1908 = vadd.f32 %v1825, %v1907
        %1909 = vmatmul.f32.gmra.mxu0 %v1797
        %v1910 = vpop.f32.mrf.mxu0
        %v1911 = vadd.f32 %v1825, %v1910
        %1912 = vmatmul.f32.gmra.mxu0 %v1798
        %v1913 = vpop.f32.mrf.mxu0
        %v1914 = vadd.f32 %v1825, %v1913
        %1915 = vmatmul.f32.gmra.mxu0 %v1799
        %v1916 = vpop.f32.mrf.mxu0
        %v1917 = vadd.f32 %v1825, %v1916
        %1918 = vmatmul.f32.gmra.mxu0 %v1800
        %v1919 = vpop.f32.mrf.mxu0
        %v1920 = vadd.f32 %v1825, %v1919
        %1921 = vmatmul.f32.gmra.mxu0 %v1801
        %v1922 = vpop.f32.mrf.mxu0
        %v1923 = vadd.f32 %v1825, %v1922
        %1924 = vmatmul.f32.gmra.mxu0 %v1802
        %v1925 = vpop.f32.mrf.mxu0
        %v1926 = vadd.f32 %v1825, %v1925
        %1927 = vmatmul.f32.gmra.mxu0 %v1803
        %v1928 = vpop.f32.mrf.mxu0
        %v1929 = vadd.f32 %v1825, %v1928
        %1930 = vmatmul.f32.gmra.mxu0 %v1804
        %v1931 = vpop.f32.mrf.mxu0
        %v1932 = vadd.f32 %v1825, %v1931
        %1933 = vmatmul.f32.gmra.mxu0 %v1805
        %v1934 = vpop.f32.mrf.mxu0
        %v1935 = vadd.f32 %v1825, %v1934
        %1936 = vmatmul.f32.gmra.mxu0 %v1806
        %v1937 = vpop.f32.mrf.mxu0
        %v1938 = vadd.f32 %v1825, %v1937
        %1939 = vdwg.mxu0
        %v1940 = vmax.f32 %v1845, 0.0
        %v1941 = vmax.f32 %v1848, 0.0
        %v1942 = vmax.f32 %v1851, 0.0
        %v1943 = vmax.f32 %v1854, 0.0
        %v1944 = vmax.f32 %v1857, 0.0
        %v1945 = vmax.f32 %v1860, 0.0
        %v1946 = vmax.f32 %v1863, 0.0
        %v1947 = vmax.f32 %v1866, 0.0
        %v1948 = vmax.f32 %v1869, 0.0
        %v1949 = vmax.f32 %v1872, 0.0
        %v1950 = vmax.f32 %v1875, 0.0
        %v1951 = vmax.f32 %v1878, 0.0
        %v1952 = vmax.f32 %v1881, 0.0
        %v1953 = vmax.f32 %v1884, 0.0
        %v1954 = vmax.f32 %v1887, 0.0
        %v1955 = vmax.f32 %v1890, 0.0
        %v1956 = vmax.f32 %v1893, 0.0
        %v1957 = vmax.f32 %v1896, 0.0
        %v1958 = vmax.f32 %v1899, 0.0
        %v1959 = vmax.f32 %v1902, 0.0
        %v1960 = vmax.f32 %v1905, 0.0
        %v1961 = vmax.f32 %v1908, 0.0
        %v1962 = vmax.f32 %v1911, 0.0
        %v1963 = vmax.f32 %v1914, 0.0
        %v1964 = vmax.f32 %v1917, 0.0
        %v1965 = vmax.f32 %v1920, 0.0
        %v1966 = vmax.f32 %v1923, 0.0
        %v1967 = vmax.f32 %v1926, 0.0
        %v1968 = vmax.f32 %v1929, 0.0
        %v1969 = vmax.f32 %v1932, 0.0
        %v1970 = vmax.f32 %v1935, 0.0
        %v1971 = vmax.f32 %v1938, 0.0
        %v1972 = vld [vmem:[#allocation6] sm:$0xff]
        %v1973 = vld [vmem:[#allocation6 + $0x8] sm:$0xff]
        %v1974 = vld [vmem:[#allocation6 + $0x10] sm:$0xff]
        %v1975 = vld [vmem:[#allocation6 + $0x18] sm:$0xff]
        %v1976 = vld [vmem:[#allocation6 + $0x20] sm:$0xff]
        %v1977 = vld [vmem:[#allocation6 + $0x28] sm:$0xff]
        %v1978 = vld [vmem:[#allocation6 + $0x30] sm:$0xff]
        %v1979 = vld [vmem:[#allocation6 + $0x38] sm:$0xff]
        %v1980 = vld [vmem:[#allocation6 + $0x40] sm:$0xff]
        %v1981 = vld [vmem:[#allocation6 + $0x48] sm:$0xff]
        %v1982 = vld [vmem:[#allocation6 + $0x50] sm:$0xff]
        %v1983 = vld [vmem:[#allocation6 + $0x58] sm:$0xff]
        %v1984 = vld [vmem:[#allocation6 + $0x60] sm:$0xff]
        %v1985 = vld [vmem:[#allocation6 + $0x68] sm:$0xff]
        %v1986 = vld [vmem:[#allocation6 + $0x70] sm:$0xff]
        %v1987 = vld [vmem:[#allocation6 + $0x78] sm:$0xff]
        %v1988 = vld [vmem:[%s15] sm:$0x1]
        %v1990 = vperm.slane %v1988, 0
        %1992 = vmatpush.msra.mxu0 %v1987
        %1993 = vmatpush.msra.mxu0 %v1986
        %1994 = vmatpush.msra.mxu0 %v1985
        %1995 = vmatpush.msra.mxu0 %v1984
        %1996 = vmatpush.msra.mxu0 %v1983
        %1997 = vmatpush.msra.mxu0 %v1982
        %1998 = vmatpush.msra.mxu0 %v1981
        %1999 = vmatpush.msra.mxu0 %v1980
        %2000 = vmatpush.msra.mxu0 %v1979
        %2001 = vmatpush.msra.mxu0 %v1978
        %2002 = vmatpush.msra.mxu0 %v1977
        %2003 = vmatpush.msra.mxu0 %v1976
        %2004 = vmatpush.msra.mxu0 %v1975
        %2005 = vmatpush.msra.mxu0 %v1974
        %2006 = vmatpush.msra.mxu0 %v1973
        %2007 = vmatpush.msra.mxu0 %v1972
        %2008 = vmatmul.f32.gmra.mxu0 %v1940
        %v2009 = vpop.f32.mrf.mxu0
        %v2010 = vadd.f32 %v1990, %v2009
        %2011 = vmatmul.f32.gmra.mxu0 %v1941
        %v2012 = vpop.f32.mrf.mxu0
        %v2013 = vadd.f32 %v1990, %v2012
        %2014 = vmatmul.f32.gmra.mxu0 %v1942
        %v2015 = vpop.f32.mrf.mxu0
        %v2016 = vadd.f32 %v1990, %v2015
        %2017 = vmatmul.f32.gmra.mxu0 %v1943
        %v2018 = vpop.f32.mrf.mxu0
        %v2019 = vadd.f32 %v1990, %v2018
        %2020 = vmatmul.f32.gmra.mxu0 %v1944
        %v2021 = vpop.f32.mrf.mxu0
        %v2022 = vadd.f32 %v1990, %v2021
        %2023 = vmatmul.f32.gmra.mxu0 %v1945
        %v2024 = vpop.f32.mrf.mxu0
        %v2025 = vadd.f32 %v1990, %v2024
        %2026 = vmatmul.f32.gmra.mxu0 %v1946
        %v2027 = vpop.f32.mrf.mxu0
        %v2028 = vadd.f32 %v1990, %v2027
        %2029 = vmatmul.f32.gmra.mxu0 %v1947
        %v2030 = vpop.f32.mrf.mxu0
        %v2031 = vadd.f32 %v1990, %v2030
        %2032 = vmatmul.f32.gmra.mxu0 %v1948
        %v2033 = vpop.f32.mrf.mxu0
        %v2034 = vadd.f32 %v1990, %v2033
        %2035 = vmatmul.f32.gmra.mxu0 %v1949
        %v2036 = vpop.f32.mrf.mxu0
        %v2037 = vadd.f32 %v1990, %v2036
        %2038 = vmatmul.f32.gmra.mxu0 %v1950
        %v2039 = vpop.f32.mrf.mxu0
        %v2040 = vadd.f32 %v1990, %v2039
        %2041 = vmatmul.f32.gmra.mxu0 %v1951
        %v2042 = vpop.f32.mrf.mxu0
        %v2043 = vadd.f32 %v1990, %v2042
        %2044 = vmatmul.f32.gmra.mxu0 %v1952
        %v2045 = vpop.f32.mrf.mxu0
        %v2046 = vadd.f32 %v1990, %v2045
        %2047 = vmatmul.f32.gmra.mxu0 %v1953
        %v2048 = vpop.f32.mrf.mxu0
        %v2049 = vadd.f32 %v1990, %v2048
        %2050 = vmatmul.f32.gmra.mxu0 %v1954
        %v2051 = vpop.f32.mrf.mxu0
        %v2052 = vadd.f32 %v1990, %v2051
        %2053 = vmatmul.f32.gmra.mxu0 %v1955
        %v2054 = vpop.f32.mrf.mxu0
        %v2055 = vadd.f32 %v1990, %v2054
        %2056 = vmatmul.f32.gmra.mxu0 %v1956
        %v2057 = vpop.f32.mrf.mxu0
        %v2058 = vadd.f32 %v1990, %v2057
        %2059 = vmatmul.f32.gmra.mxu0 %v1957
        %v2060 = vpop.f32.mrf.mxu0
        %v2061 = vadd.f32 %v1990, %v2060
        %2062 = vmatmul.f32.gmra.mxu0 %v1958
        %v2063 = vpop.f32.mrf.mxu0
        %v2064 = vadd.f32 %v1990, %v2063
        %2065 = vmatmul.f32.gmra.mxu0 %v1959
        %v2066 = vpop.f32.mrf.mxu0
        %v2067 = vadd.f32 %v1990, %v2066
        %2068 = vmatmul.f32.gmra.mxu0 %v1960
        %v2069 = vpop.f32.mrf.mxu0
        %v2070 = vadd.f32 %v1990, %v2069
        %2071 = vmatmul.f32.gmra.mxu0 %v1961
        %v2072 = vpop.f32.mrf.mxu0
        %v2073 = vadd.f32 %v1990, %v2072
        %2074 = vmatmul.f32.gmra.mxu0 %v1962
        %v2075 = vpop.f32.mrf.mxu0
        %v2076 = vadd.f32 %v1990, %v2075
        %2077 = vmatmul.f32.gmra.mxu0 %v1963
        %v2078 = vpop.f32.mrf.mxu0
        %v2079 = vadd.f32 %v1990, %v2078
        %2080 = vmatmul.f32.gmra.mxu0 %v1964
        %v2081 = vpop.f32.mrf.mxu0
        %v2082 = vadd.f32 %v1990, %v2081
        %2083 = vmatmul.f32.gmra.mxu0 %v1965
        %v2084 = vpop.f32.mrf.mxu0
        %v2085 = vadd.f32 %v1990, %v2084
        %2086 = vmatmul.f32.gmra.mxu0 %v1966
        %v2087 = vpop.f32.mrf.mxu0
        %v2088 = vadd.f32 %v1990, %v2087
        %2089 = vmatmul.f32.gmra.mxu0 %v1967
        %v2090 = vpop.f32.mrf.mxu0
        %v2091 = vadd.f32 %v1990, %v2090
        %2092 = vmatmul.f32.gmra.mxu0 %v1968
        %v2093 = vpop.f32.mrf.mxu0
        %v2094 = vadd.f32 %v1990, %v2093
        %2095 = vmatmul.f32.gmra.mxu0 %v1969
        %v2096 = vpop.f32.mrf.mxu0
        %v2097 = vadd.f32 %v1990, %v2096
        %2098 = vmatmul.f32.gmra.mxu0 %v1970
        %v2099 = vpop.f32.mrf.mxu0
        %v2100 = vadd.f32 %v1990, %v2099
        %2101 = vmatmul.f32.gmra.mxu0 %v1971
        %v2102 = vpop.f32.mrf.mxu0
        %v2103 = vadd.f32 %v1990, %v2102
        %2104 = vdwg.mxu0
        %v2105 = vmax.f32 %v2010, 0.0
        %v2106 = vmax.f32 %v2013, 0.0
        %v2107 = vmax.f32 %v2016, 0.0
        %v2108 = vmax.f32 %v2019, 0.0
        %v2109 = vmax.f32 %v2022, 0.0
        %v2110 = vmax.f32 %v2025, 0.0
        %v2111 = vmax.f32 %v2028, 0.0
        %v2112 = vmax.f32 %v2031, 0.0
        %v2113 = vmax.f32 %v2034, 0.0
        %v2114 = vmax.f32 %v2037, 0.0
        %v2115 = vmax.f32 %v2040, 0.0
        %v2116 = vmax.f32 %v2043, 0.0
        %v2117 = vmax.f32 %v2046, 0.0
        %v2118 = vmax.f32 %v2049, 0.0
        %v2119 = vmax.f32 %v2052, 0.0
        %v2120 = vmax.f32 %v2055, 0.0
        %v2121 = vmax.f32 %v2058, 0.0
        %v2122 = vmax.f32 %v2061, 0.0
        %v2123 = vmax.f32 %v2064, 0.0
        %v2124 = vmax.f32 %v2067, 0.0
        %v2125 = vmax.f32 %v2070, 0.0
        %v2126 = vmax.f32 %v2073, 0.0
        %v2127 = vmax.f32 %v2076, 0.0
        %v2128 = vmax.f32 %v2079, 0.0
        %v2129 = vmax.f32 %v2082, 0.0
        %v2130 = vmax.f32 %v2085, 0.0
        %v2131 = vmax.f32 %v2088, 0.0
        %v2132 = vmax.f32 %v2091, 0.0
        %v2133 = vmax.f32 %v2094, 0.0
        %v2134 = vmax.f32 %v2097, 0.0
        %v2135 = vmax.f32 %v2100, 0.0
        %v2136 = vmax.f32 %v2103, 0.0
        %v2137 = vld [vmem:[#allocation8] sm:$0xff]
        %v2138 = vld [vmem:[#allocation8 + $0x8] sm:$0xff]
        %v2139 = vld [vmem:[#allocation8 + $0x10] sm:$0xff]
        %v2140 = vld [vmem:[#allocation8 + $0x18] sm:$0xff]
        %v2141 = vld [vmem:[#allocation8 + $0x20] sm:$0xff]
        %v2142 = vld [vmem:[#allocation8 + $0x28] sm:$0xff]
        %v2143 = vld [vmem:[#allocation8 + $0x30] sm:$0xff]
        %v2144 = vld [vmem:[#allocation8 + $0x38] sm:$0xff]
        %v2145 = vld [vmem:[#allocation8 + $0x40] sm:$0xff]
        %v2146 = vld [vmem:[#allocation8 + $0x48] sm:$0xff]
        %v2147 = vld [vmem:[#allocation8 + $0x50] sm:$0xff]
        %v2148 = vld [vmem:[#allocation8 + $0x58] sm:$0xff]
        %v2149 = vld [vmem:[#allocation8 + $0x60] sm:$0xff]
        %v2150 = vld [vmem:[#allocation8 + $0x68] sm:$0xff]
        %v2151 = vld [vmem:[#allocation8 + $0x70] sm:$0xff]
        %v2152 = vld [vmem:[#allocation8 + $0x78] sm:$0xff]
        %v2153 = vld [vmem:[%s17] sm:$0x1]
        %v2155 = vperm.slane %v2153, 0
        %2157 = vmatpush.msra.mxu0 %v2152
        %2158 = vmatpush.msra.mxu0 %v2151
        %2159 = vmatpush.msra.mxu0 %v2150
        %2160 = vmatpush.msra.mxu0 %v2149
        %2161 = vmatpush.msra.mxu0 %v2148
        %2162 = vmatpush.msra.mxu0 %v2147
        %2163 = vmatpush.msra.mxu0 %v2146
        %2164 = vmatpush.msra.mxu0 %v2145
        %2165 = vmatpush.msra.mxu0 %v2144
        %2166 = vmatpush.msra.mxu0 %v2143
        %2167 = vmatpush.msra.mxu0 %v2142
        %2168 = vmatpush.msra.mxu0 %v2141
        %2169 = vmatpush.msra.mxu0 %v2140
        %2170 = vmatpush.msra.mxu0 %v2139
        %2171 = vmatpush.msra.mxu0 %v2138
        %2172 = vmatpush.msra.mxu0 %v2137
        %2173 = vmatmul.f32.gmra.mxu0 %v2105
        %v2174 = vpop.f32.mrf.mxu0
        %v2175 = vadd.f32 %v2155, %v2174
        %2176 = vmatmul.f32.gmra.mxu0 %v2106
        %v2177 = vpop.f32.mrf.mxu0
        %v2178 = vadd.f32 %v2155, %v2177
        %2179 = vmatmul.f32.gmra.mxu0 %v2107
        %v2180 = vpop.f32.mrf.mxu0
        %v2181 = vadd.f32 %v2155, %v2180
        %2182 = vmatmul.f32.gmra.mxu0 %v2108
        %v2183 = vpop.f32.mrf.mxu0
        %v2184 = vadd.f32 %v2155, %v2183
        %2185 = vmatmul.f32.gmra.mxu0 %v2109
        %v2186 = vpop.f32.mrf.mxu0
        %v2187 = vadd.f32 %v2155, %v2186
        %2188 = vmatmul.f32.gmra.mxu0 %v2110
        %v2189 = vpop.f32.mrf.mxu0
        %v2190 = vadd.f32 %v2155, %v2189
        %2191 = vmatmul.f32.gmra.mxu0 %v2111
        %v2192 = vpop.f32.mrf.mxu0
        %v2193 = vadd.f32 %v2155, %v2192
        %2194 = vmatmul.f32.gmra.mxu0 %v2112
        %v2195 = vpop.f32.mrf.mxu0
        %v2196 = vadd.f32 %v2155, %v2195
        %2197 = vmatmul.f32.gmra.mxu0 %v2113
        %v2198 = vpop.f32.mrf.mxu0
        %v2199 = vadd.f32 %v2155, %v2198
        %2200 = vmatmul.f32.gmra.mxu0 %v2114
        %v2201 = vpop.f32.mrf.mxu0
        %v2202 = vadd.f32 %v2155, %v2201
        %2203 = vmatmul.f32.gmra.mxu0 %v2115
        %v2204 = vpop.f32.mrf.mxu0
        %v2205 = vadd.f32 %v2155, %v2204
        %2206 = vmatmul.f32.gmra.mxu0 %v2116
        %v2207 = vpop.f32.mrf.mxu0
        %v2208 = vadd.f32 %v2155, %v2207
        %2209 = vmatmul.f32.gmra.mxu0 %v2117
        %v2210 = vpop.f32.mrf.mxu0
        %v2211 = vadd.f32 %v2155, %v2210
        %2212 = vmatmul.f32.gmra.mxu0 %v2118
        %v2213 = vpop.f32.mrf.mxu0
        %v2214 = vadd.f32 %v2155, %v2213
        %2215 = vmatmul.f32.gmra.mxu0 %v2119
        %v2216 = vpop.f32.mrf.mxu0
        %v2217 = vadd.f32 %v2155, %v2216
        %2218 = vmatmul.f32.gmra.mxu0 %v2120
        %v2219 = vpop.f32.mrf.mxu0
        %v2220 = vadd.f32 %v2155, %v2219
        %2221 = vmatmul.f32.gmra.mxu0 %v2121
        %v2222 = vpop.f32.mrf.mxu0
        %v2223 = vadd.f32 %v2155, %v2222
        %2224 = vmatmul.f32.gmra.mxu0 %v2122
        %v2225 = vpop.f32.mrf.mxu0
        %v2226 = vadd.f32 %v2155, %v2225
        %2227 = vmatmul.f32.gmra.mxu0 %v2123
        %v2228 = vpop.f32.mrf.mxu0
        %v2229 = vadd.f32 %v2155, %v2228
        %2230 = vmatmul.f32.gmra.mxu0 %v2124
        %v2231 = vpop.f32.mrf.mxu0
        %v2232 = vadd.f32 %v2155, %v2231
        %2233 = vmatmul.f32.gmra.mxu0 %v2125
        %v2234 = vpop.f32.mrf.mxu0
        %v2235 = vadd.f32 %v2155, %v2234
        %2236 = vmatmul.f32.gmra.mxu0 %v2126
        %v2237 = vpop.f32.mrf.mxu0
        %v2238 = vadd.f32 %v2155, %v2237
        %2239 = vmatmul.f32.gmra.mxu0 %v2127
        %v2240 = vpop.f32.mrf.mxu0
        %v2241 = vadd.f32 %v2155, %v2240
        %2242 = vmatmul.f32.gmra.mxu0 %v2128
        %v2243 = vpop.f32.mrf.mxu0
        %v2244 = vadd.f32 %v2155, %v2243
        %2245 = vmatmul.f32.gmra.mxu0 %v2129
        %v2246 = vpop.f32.mrf.mxu0
        %v2247 = vadd.f32 %v2155, %v2246
        %2248 = vmatmul.f32.gmra.mxu0 %v2130
        %v2249 = vpop.f32.mrf.mxu0
        %v2250 = vadd.f32 %v2155, %v2249
        %2251 = vmatmul.f32.gmra.mxu0 %v2131
        %v2252 = vpop.f32.mrf.mxu0
        %v2253 = vadd.f32 %v2155, %v2252
        %2254 = vmatmul.f32.gmra.mxu0 %v2132
        %v2255 = vpop.f32.mrf.mxu0
        %v2256 = vadd.f32 %v2155, %v2255
        %2257 = vmatmul.f32.gmra.mxu0 %v2133
        %v2258 = vpop.f32.mrf.mxu0
        %v2259 = vadd.f32 %v2155, %v2258
        %2260 = vmatmul.f32.gmra.mxu0 %v2134
        %v2261 = vpop.f32.mrf.mxu0
        %v2262 = vadd.f32 %v2155, %v2261
        %2263 = vmatmul.f32.gmra.mxu0 %v2135
        %v2264 = vpop.f32.mrf.mxu0
        %v2265 = vadd.f32 %v2155, %v2264
        %2266 = vmatmul.f32.gmra.mxu0 %v2136
        %v2267 = vpop.f32.mrf.mxu0
        %v2268 = vadd.f32 %v2155, %v2267
        %2269 = vdwg.mxu0
        %v2270 = vmax.f32 %v2175, 0.0
        %v2271 = vmax.f32 %v2178, 0.0
        %v2272 = vmax.f32 %v2181, 0.0
        %v2273 = vmax.f32 %v2184, 0.0
        %v2274 = vmax.f32 %v2187, 0.0
        %v2275 = vmax.f32 %v2190, 0.0
        %v2276 = vmax.f32 %v2193, 0.0
        %v2277 = vmax.f32 %v2196, 0.0
        %v2278 = vmax.f32 %v2199, 0.0
        %v2279 = vmax.f32 %v2202, 0.0
        %v2280 = vmax.f32 %v2205, 0.0
        %v2281 = vmax.f32 %v2208, 0.0
        %v2282 = vmax.f32 %v2211, 0.0
        %v2283 = vmax.f32 %v2214, 0.0
        %v2284 = vmax.f32 %v2217, 0.0
        %v2285 = vmax.f32 %v2220, 0.0
        %v2286 = vmax.f32 %v2223, 0.0
        %v2287 = vmax.f32 %v2226, 0.0
        %v2288 = vmax.f32 %v2229, 0.0
        %v2289 = vmax.f32 %v2232, 0.0
        %v2290 = vmax.f32 %v2235, 0.0
        %v2291 = vmax.f32 %v2238, 0.0
        %v2292 = vmax.f32 %v2241, 0.0
        %v2293 = vmax.f32 %v2244, 0.0
        %v2294 = vmax.f32 %v2247, 0.0
        %v2295 = vmax.f32 %v2250, 0.0
        %v2296 = vmax.f32 %v2253, 0.0
        %v2297 = vmax.f32 %v2256, 0.0
        %v2298 = vmax.f32 %v2259, 0.0
        %v2299 = vmax.f32 %v2262, 0.0
        %v2300 = vmax.f32 %v2265, 0.0
        %v2301 = vmax.f32 %v2268, 0.0
        %v2302 = vld [vmem:[%s18] sm:$0x1]
        %v2303 = vld [vmem:[#allocation2] sm:$0x1]
        %2305 = vset.pattern.permute.xlu0 0
        %2306 = vperm.xlu0 %2305, %v2303
        %v2307 = vpop.permute.xlu0 %2306
        %v2309 = vperm.slane %v2307, 0
        %2310 = vmatpush.xpose.msra.mxu0 %v2285
        %2311 = vmatpush.xpose.msra.mxu0 %v2284
        %2312 = vmatpush.xpose.msra.mxu0 %v2283
        %2313 = vmatpush.xpose.msra.mxu0 %v2282
        %2314 = vmatpush.xpose.msra.mxu0 %v2281
        %2315 = vmatpush.xpose.msra.mxu0 %v2280
        %2316 = vmatpush.xpose.msra.mxu0 %v2279
        %2317 = vmatpush.xpose.msra.mxu0 %v2278
        %2318 = vmatpush.xpose.msra.mxu0 %v2277
        %2319 = vmatpush.xpose.msra.mxu0 %v2276
        %2320 = vmatpush.xpose.msra.mxu0 %v2275
        %2321 = vmatpush.xpose.msra.mxu0 %v2274
        %2322 = vmatpush.xpose.msra.mxu0 %v2273
        %2323 = vmatpush.xpose.msra.mxu0 %v2272
        %2324 = vmatpush.xpose.msra.mxu0 %v2271
        %2325 = vmatpush.xpose.msra.mxu0 %v2270
        %2326 = vmatmul.f32.gmra.mxu0 %v2302
        %v2327 = vpop.f32.mrf.mxu0
        %v2328 = vadd.f32 %v2309, %v2327
        %2329 = vdwg.mxu0
        %2330 = vmatpush.xpose.msra.mxu0 %v2301
        %2331 = vmatpush.xpose.msra.mxu0 %v2300
        %2332 = vmatpush.xpose.msra.mxu0 %v2299
        %2333 = vmatpush.xpose.msra.mxu0 %v2298
        %2334 = vmatpush.xpose.msra.mxu0 %v2297
        %2335 = vmatpush.xpose.msra.mxu0 %v2296
        %2336 = vmatpush.xpose.msra.mxu0 %v2295
        %2337 = vmatpush.xpose.msra.mxu0 %v2294
        %2338 = vmatpush.xpose.msra.mxu0 %v2293
        %2339 = vmatpush.xpose.msra.mxu0 %v2292
        %2340 = vmatpush.xpose.msra.mxu0 %v2291
        %2341 = vmatpush.xpose.msra.mxu0 %v2290
        %2342 = vmatpush.xpose.msra.mxu0 %v2289
        %2343 = vmatpush.xpose.msra.mxu0 %v2288
        %2344 = vmatpush.xpose.msra.mxu0 %v2287
        %2345 = vmatpush.xpose.msra.mxu0 %v2286
        %2346 = vmatmul.f32.gmra.mxu0 %v2302
        %v2347 = vpop.f32.mrf.mxu0
        %v2348 = vadd.f32 %v2309, %v2347
        %2349 = vdwg.mxu0
        %v2350 = vtanh.pop %v2328
        %v2351 = vtanh.pop %v2348
        %v2354 = vrot.slane %v2351, 7
        %vm2355 = vcmask 1040384
        %v2356 = vsel %vm2355, %v2350, %v2354
        %v2358 = vlaneseq
        %vm2359 = vcmp.ge.s32.totalorder %v2358, 0
        %vm2360 = vcmp.lt.s32.totalorder %v2358, 256
        %vm2361 = vmand %vm2359, %vm2360
        %2362 = vst.msk [vmem:[%s706] sm:$0x3] %vm2361, %v2356
        %2363 = vst [vmem:[%s713] sm:$0xff] %v2270
        %2364 = vst [vmem:[%s713 + $0x8] sm:$0xff] %v2271
        %2365 = vst [vmem:[%s713 + $0x10] sm:$0xff] %v2272
        %2366 = vst [vmem:[%s713 + $0x18] sm:$0xff] %v2273
        %2367 = vst [vmem:[%s713 + $0x20] sm:$0xff] %v2274
        %2368 = vst [vmem:[%s713 + $0x28] sm:$0xff] %v2275
        %2369 = vst [vmem:[%s713 + $0x30] sm:$0xff] %v2276
        %2370 = vst [vmem:[%s713 + $0x38] sm:$0xff] %v2277
        %2371 = vst [vmem:[%s713 + $0x40] sm:$0xff] %v2278
        %2372 = vst [vmem:[%s713 + $0x48] sm:$0xff] %v2279
        %2373 = vst [vmem:[%s713 + $0x50] sm:$0xff] %v2280
        %2374 = vst [vmem:[%s713 + $0x58] sm:$0xff] %v2281
        %2375 = vst [vmem:[%s713 + $0x60] sm:$0xff] %v2282
        %2376 = vst [vmem:[%s713 + $0x68] sm:$0xff] %v2283
        %2377 = vst [vmem:[%s713 + $0x70] sm:$0xff] %v2284
        %2378 = vst [vmem:[%s713 + $0x78] sm:$0xff] %v2285
        %2379 = vst [vmem:[%s713 + $0x80] sm:$0xff] %v2286
        %2380 = vst [vmem:[%s713 + $0x88] sm:$0xff] %v2287
        %2381 = vst [vmem:[%s713 + $0x90] sm:$0xff] %v2288
        %2382 = vst [vmem:[%s713 + $0x98] sm:$0xff] %v2289
        %2383 = vst [vmem:[%s713 + $0xa0] sm:$0xff] %v2290
        %2384 = vst [vmem:[%s713 + $0xa8] sm:$0xff] %v2291
        %2385 = vst [vmem:[%s713 + $0xb0] sm:$0xff] %v2292
        %2386 = vst [vmem:[%s713 + $0xb8] sm:$0xff] %v2293
        %2387 = vst [vmem:[%s713 + $0xc0] sm:$0xff] %v2294
        %2388 = vst [vmem:[%s713 + $0xc8] sm:$0xff] %v2295
        %2389 = vst [vmem:[%s713 + $0xd0] sm:$0xff] %v2296
        %2390 = vst [vmem:[%s713 + $0xd8] sm:$0xff] %v2297
        %2391 = vst [vmem:[%s713 + $0xe0] sm:$0xff] %v2298
        %2392 = vst [vmem:[%s713 + $0xe8] sm:$0xff] %v2299
        %2393 = vst [vmem:[%s713 + $0xf0] sm:$0xff] %v2300
        %2394 = vst [vmem:[%s713 + $0xf8] sm:$0xff] %v2301
        %s2395 = sand.u32 %s476, 1
        %s2396 = scalar_lea.sflag [#allocation5], %s2395
        %s2397 = sand.u32 %s476, 1
        %s2398 = smul.addr %s2397, 2
        %s2399 = scalar_lea.vmem [#allocation9], %s2398
        %s2400 = sand.u32 %s502, 1
        %s2401 = scalar_lea.sflag [#allocation11], %s2400
        %s2402 = sand.u32 %s502, 1
        %s2403 = smul.addr %s2402, 256
        %s2404 = scalar_lea.vmem [#allocation10], %s2403
        // Predicated region
        $region113: #{tpu_custom_call.1} parent=99 // pred_check
          %p2405 = pneg %p486
        $region114: #{tpu_custom_call.1} parent=99 // pred_check_branch
          %2407 = sbr.rel (%p2405) target = $region116
        $region115: #{tpu_custom_call.1} parent=99 // pred_region
          %s2408 = smul.u32 2, %s43
          %2410 = vsyncadd %s2396, 0
          %s2411 = scalar_lea.hbm %s20, %s2408
          %s2413 = sshll.u32 %s2399, 4
          %s2414 = int_to_ptr.vmem [resolvable:$true] %s2413
          %s2415 = sshll.u32 %s2411, 4
          %s2416 = int_to_ptr.hbm [resolvable:$true] %s2415
          %2418 = dma.vmem_to_hbm [thread:$0]  %s2414, 32, %s2416, %s2396
        $region116: #{tpu_custom_call.1} parent=99 // pred_fallthru
          _
        // Predicated region
        $region117: #{tpu_custom_call.1} parent=99 // pred_check
          %p2419 = pneg %p512
        $region118: #{tpu_custom_call.1} parent=99 // pred_check_branch
          %2421 = sbr.rel (%p2419) target = $region120
        $region119: #{tpu_custom_call.1} parent=99 // pred_region
          %s2422 = smul.u32 32, %s43
          %2424 = vsyncadd %s2401, 0
          %s2425 = smul.addr %s2422, 8
          %s2426 = scalar_lea.hbm %s21, %s2425
          %s2427 = sshll.u32 %s2404, 4
          %s2428 = int_to_ptr.vmem [resolvable:$true] %s2427
          %s2429 = sshll.u32 %s2426, 4
          %s2430 = int_to_ptr.hbm [resolvable:$true] %s2429
          %2435 = dma.vmem_to_hbm [thread:$0]  %s2428, 4096, %s2430, %s2401, 128, 128, 8
        $region120: #{tpu_custom_call.1} parent=99 // pred_fallthru
          _
      $region100: #{tpu_custom_call.1} parent=5 // pred_fallthru
        _
      %p2436 = scmp.le.s32.totalorder 2, %s38
      // Predicated region
      $region121: #{tpu_custom_call.1} parent=5 // pred_check
        %p2437 = pneg %p2436
      $region122: #{tpu_custom_call.1} parent=5 // pred_check_branch
        %2439 = sbr.rel (%p2437) target = $region124
      $region123: #{tpu_custom_call.1} parent=5 // pred_region
        %s2440 = ssub.s32 %s38, 2
        // Predicated region
        $region125: #{tpu_custom_call.1} parent=123 // pred_check
          %p2441 = pneg %p492
        $region126: #{tpu_custom_call.1} parent=123 // pred_check_branch
          %2443 = sbr.rel (%p2441) target = $region128
        $region127: #{tpu_custom_call.1} parent=123 // pred_region
          %s2444 = sand.u32 %s477, 1
          %s2445 = scalar_lea.sflag [#allocation5], %s2444
          %s2446 = sand.u32 %s477, 1
          %s2447 = smul.addr %s2446, 2
          %s2448 = scalar_lea.vmem [#allocation9], %s2447
          %2450 = dma.done %s2445, 32
        $region128: #{tpu_custom_call.1} parent=123 // pred_fallthru
          _
        // Predicated region
        $region129: #{tpu_custom_call.1} parent=123 // pred_check
          %p2451 = pneg %p518
        $region130: #{tpu_custom_call.1} parent=123 // pred_check_branch
          %2453 = sbr.rel (%p2451) target = $region132
        $region131: #{tpu_custom_call.1} parent=123 // pred_region
          %s2454 = sand.u32 %s503, 1
          %s2455 = scalar_lea.sflag [#allocation11], %s2454
          %s2456 = sand.u32 %s503, 1
          %s2457 = smul.addr %s2456, 256
          %s2458 = scalar_lea.vmem [#allocation10], %s2457
          %2460 = dma.done %s2455, 4096
        $region132: #{tpu_custom_call.1} parent=123 // pred_fallthru
          _
      $region124: #{tpu_custom_call.1} parent=5 // pred_fallthru
        _
    $region6: #{tpu_custom_call.1} parent=1 // loop_footer
      %s42 = sadd.s32 1, %s38
    $region7: #{tpu_custom_call.1} parent=1 // loop_footer_branch
      %37 = sbr.rel target = $region3
    $region8: #{tpu_custom_call.1} parent=1 // loop_exit
      _
    %2461 = vsyncpa [#allocation4], 1
    %s2462 = scalar_lea.sflag [#allocation4], 1
    %2463 = vsyncpa %s2462, 1
    %2464 = vsyncpa [#allocation7], 1
    %2465 = vsyncpa [#allocation5], 1
    %s2466 = scalar_lea.sflag [#allocation5], 1
    %2467 = vsyncpa %s2466, 1
    %2468 = vsyncpa [#allocation11], 1
    %s2469 = scalar_lea.sflag [#allocation11], 1
    %2470 = vsyncpa %s2469, 1

</llo_original>
